<compile_context>
chip_gen: v7x
topology: tpu7x:2x2x1
jax: 0.10.0
libtpu: 0.0.40
codegen_flags: <defaults>
</compile_context>

<pallas_src>
import functools

import jax
import jax.numpy as jnp
from jax.experimental import pallas as pl
from jax.experimental.pallas import tpu as pltpu


# ----------------------------------------------------------------------------- 
# Kernel
# -----------------------------------------------------------------------------
def _make_generator_kernel(prune_flags, use_sigmoid):
    """prune_flags: tuple of 4 static bools (fc4, fc3, fc2, fc1); use_sigmoid: bool."""

    def kernel(th_ref,                       # SMEM (4,) f32 per-layer |score| thresholds
               z_ref,                        # (TB, d_in) f32 batch tile
               w0_ref, s0_ref, b0_ref,       # fc4
               w1_ref, s1_ref, b1_ref,       # fc3
               w2_ref, s2_ref, b2_ref,       # fc2
               w3_ref, s3_ref, b3_ref,       # fc1
               out_ref):                     # (TB, x_dim) f32
        layer_refs = (
            (w0_ref, s0_ref, b0_ref),
            (w1_ref, s1_ref, b1_ref),
            (w2_ref, s2_ref, b2_ref),
            (w3_ref, s3_ref, b3_ref),
        )
        n_layers = len(layer_refs)

        h = z_ref[...].astype(jnp.float32)
        for li, (w_ref, s_ref, b_ref) in enumerate(layer_refs):
            w = w_ref[...]
            if prune_flags[li]:
                # Supermask: keep weights whose |score| is >= the rank threshold.
                mask = (jnp.abs(s_ref[...]) >= th_ref[li]).astype(w.dtype)
                w = w * mask
            # MXU matmul; inputs may be bf16, accumulation always f32.
            acc = jnp.dot(h.astype(w.dtype), w, preferred_element_type=jnp.float32)
            h = acc + b_ref[...]                       # bias add in f32
            if li < n_layers - 1:
                h = jnp.maximum(h, 0.0)                # ReLU in f32
        if use_sigmoid:
            h = 1.0 / (1.0 + jnp.exp(-h))              # EUP exp
        out_ref[...] = h.astype(out_ref.dtype)

    return kernel


# ----------------------------------------------------------------------------- 
# Wrapper helpers
# -----------------------------------------------------------------------------
def svs1_threshold(scores_abs, var_sparsity):
    """Scalar t such that (|scores| >= t) reproduces the torch sort/scatter mask.

    torch: j = int(sigmoid(var_sparsity) * numel); bottom-j of |scores| -> 0, rest -> 1.
    """
    flat = scores_abs.reshape(-1).astype(jnp.float32)
    n = flat.shape[0]
    j = jnp.floor(jax.nn.sigmoid(var_sparsity.reshape(())) * n).astype(jnp.int32)
    j = jnp.clip(j, 0, n - 1)
    return jnp.sort(flat)[j]


def supermask_svs1_generator_forward(z, layers, prune_flags, *, use_sigmoid,
                                     block_b=512, weight_dtype=jnp.float32):
    """layers: list of 4 dicts (fc4, fc3, fc2, fc1 order) with keys
         'w' (in, out) f32   -- already transposed vs. torch's (out, in)
         'b' (1, out)  f32
         'scores' (in, out) f32
         'var_sparsity' ()   f32
    """
    assert block_b % 8 == 0
    B, d_in = z.shape
    out_dim = layers[-1]["w"].shape[1]
    tb = B if B <= block_b else block_b
    grid = (pl.cdiv(B, tb),)

    # Per-layer rank thresholds (sort done here; no clean in-kernel sort on TPU).
    th_list = []
    for flag, layer in zip(prune_flags, layers):
        if flag:
            th_list.append(svs1_threshold(jnp.abs(layer["scores"]),
                                          layer["var_sparsity"]))
        else:
            th_list.append(jnp.float32(0.0))  # unused (static flag skips the mask)
    thresholds = jnp.stack(th_list).astype(jnp.float32)      # (4,)

    operands = [thresholds, z]
    in_specs = [
        pl.BlockSpec(memory_space=pltpu.MemorySpace.SMEM),    # thresholds -> SMEM
        pl.BlockSpec((tb, d_in), lambda i: (i, 0)),           # z batch tile
    ]
    for layer in layers:
        w = layer["w"].astype(weight_dtype)
        s = layer["scores"]                                   # keep f32 for exact mask
        b = layer["b"]
        din, dout = w.shape
        operands += [w, s, b]
        in_specs += [
            pl.BlockSpec((din, dout), lambda i: (0, 0)),      # weight: VMEM-resident
            pl.BlockSpec((din, dout), lambda i: (0, 0)),      # scores: VMEM-resident
            pl.BlockSpec((1, dout), lambda i: (0, 0)),        # bias:   VMEM-resident
        ]
    out_spec = pl.BlockSpec((tb, out_dim), lambda i: (i, 0))

    # Advisory cost estimate for XLA's scheduler.
    flops = sum(2 * B * l["w"].shape[0] * l["w"].shape[1] for l in layers)
    transcendentals = B * out_dim if use_sigmoid else 0
    bytes_accessed = int(z.size) * 4 + int(B * out_dim) * 4
    for op in operands:
        bytes_accessed += int(op.size) * jnp.dtype(op.dtype).itemsize

    kernel = _make_generator_kernel(tuple(bool(f) for f in prune_flags),
                                    bool(use_sigmoid))

    return pl.pallas_call(
        kernel,
        out_shape=jax.ShapeDtypeStruct((B, out_dim), jnp.float32),
        grid=grid,
        in_specs=in_specs,
        out_specs=out_spec,
        compiler_params=pltpu.CompilerParams(
            dimension_semantics=("parallel",),        # megacore-split the batch tiles
            vmem_limit_bytes=32 * 1024 * 1024,
        ),
        cost_estimate=pl.CostEstimate(
            flops=flops,
            transcendentals=transcendentals,
            bytes_accessed=bytes_accessed,
        ),
    )(*operands)


# ----------------------------------------------------------------------------- 
# Pure-JAX reference (mirrors the torch module semantics)
# -----------------------------------------------------------------------------
def _svs1_mask_reference(scores_abs, var_sparsity):
    flat = scores_abs.reshape(-1).astype(jnp.float32)
    n = flat.shape[0]
    j = jnp.floor(jax.nn.sigmoid(var_sparsity.reshape(())) * n).astype(jnp.int32)
    ranks = jnp.argsort(jnp.argsort(flat))            # ascending rank of each |score|
    mask = (ranks >= j).astype(jnp.float32)
    return mask.reshape(scores_abs.shape)


def generator_reference(z, layers, prune_flags, use_sigmoid,
                        weight_dtype=jnp.float32):
    h = z.astype(jnp.float32)
    n_layers = len(layers)
    for li, layer in enumerate(layers):
        w = layer["w"].astype(weight_dtype)
        if prune_flags[li]:
            mask = _svs1_mask_reference(jnp.abs(layer["scores"]),
                                        layer["var_sparsity"])
            w = w * mask.astype(weight_dtype)
        acc = jnp.dot(h.astype(weight_dtype), w, preferred_element_type=jnp.float32)
        h = acc + layer["b"]
        if li < n_layers - 1:
            h = jnp.maximum(h, 0.0)
    if use_sigmoid:
        h = 1.0 / (1.0 + jnp.exp(-h))
    return h


# ----------------------------------------------------------------------------- 
# Demo / self-check
# -----------------------------------------------------------------------------
if __name__ == "__main__":
    key = jax.random.PRNGKey(0)

    # Generator dims: z has h_dim4 features, output has x_dim features.
    # x_dim = 128 keeps the output store lane-dense.
    x_dim, h_dim1, h_dim2, h_dim3, h_dim4 = 128, 64, 64, 32, 16
    B = 1024
    weights_to_prune = "5678"          # all four layers are Supermask_SVS1_Linear
    use_sigmoid = True

    prune_flags = ('5' in weights_to_prune, '6' in weights_to_prune,
                   '7' in weights_to_prune, '8' in weights_to_prune)
    # Forward order: fc4, fc3, fc2, fc1  -> (in, out) per layer.
    layer_dims = [(h_dim4, h_dim3), (h_dim3, h_dim2),
                  (h_dim2, h_dim1), (h_dim1, x_dim)]

    keys = jax.random.split(key, 1 + 4 * len(layer_dims))
    z = jax.random.normal(keys[0], (B, h_dim4), dtype=jnp.float32)

    layers = []
    for li, (din, dout) in enumerate(layer_dims):
        kw, kb, ks, kv = keys[1 + 4 * li: 1 + 4 * li + 4]
        bound = 1.0 / (din ** 0.5)
        # kaiming_normal_(mode='fan_in', nonlinearity='relu') -> std = sqrt(2/fan_in)
        w = jax.random.normal(kw, (din, dout), jnp.float32) * (2.0 / din) ** 0.5
        # nn.Linear default bias init
        b = jax.random.uniform(kb, (1, dout), jnp.float32, -bound, bound)
        # kaiming_uniform_(a=sqrt(5)) -> bound = 1/sqrt(fan_in)
        s = jax.random.uniform(ks, (din, dout), jnp.float32, -bound, bound)
        vs = jax.random.normal(kv, (), jnp.float32)          # var_sparsity ~ randn(1)
        layers.append(dict(w=w, b=b, scores=s, var_sparsity=vs))

    # --- f32 path (exact module semantics) ---------------------------------
    out = supermask_svs1_generator_forward(z, layers, prune_flags,
                                           use_sigmoid=use_sigmoid, block_b=512)
    out = jax.block_until_ready(out)
    ref = generator_reference(z, layers, prune_flags, use_sigmoid)
    assert out.shape == (B, x_dim)
    assert jnp.allclose(out, ref, atol=2e-3, rtol=2e-3), (
        "f32 mismatch, max abs err = %f" % float(jnp.max(jnp.abs(out - ref))))

    # --- bf16-weight path (v6e/v7x: full-rate MXU, half weight DMA) --------
    out_bf16 = supermask_svs1_generator_forward(z, layers, prune_flags,
                                                use_sigmoid=use_sigmoid,
                                                block_b=512,
                                                weight_dtype=jnp.bfloat16)
    out_bf16 = jax.block_until_ready(out_bf16)
    ref_bf16 = generator_reference(z, layers, prune_flags, use_sigmoid,
                                   weight_dtype=jnp.bfloat16)
    assert jnp.allclose(out_bf16, ref_bf16, atol=2e-2, rtol=2e-2), (
        "bf16 mismatch, max abs err = %f"
        % float(jnp.max(jnp.abs(out_bf16 - ref_bf16))))

    print("KERNEL_OK")
</pallas_src>

<mosaic_0001>
module attributes {stable_mosaic.version = 11 : i64} {
  func.func @kernel(%arg0: i32, %arg1: memref<4xf32, #tpu.memory_space<smem>>, %arg2: memref<512x16xf32, #tpu.memory_space<vmem>>, %arg3: memref<16x32xf32, #tpu.memory_space<vmem>>, %arg4: memref<16x32xf32, #tpu.memory_space<vmem>>, %arg5: memref<1x32xf32, #tpu.memory_space<vmem>>, %arg6: memref<32x64xf32, #tpu.memory_space<vmem>>, %arg7: memref<32x64xf32, #tpu.memory_space<vmem>>, %arg8: memref<1x64xf32, #tpu.memory_space<vmem>>, %arg9: memref<64x64xf32, #tpu.memory_space<vmem>>, %arg10: memref<64x64xf32, #tpu.memory_space<vmem>>, %arg11: memref<1x64xf32, #tpu.memory_space<vmem>>, %arg12: memref<64x128xf32, #tpu.memory_space<vmem>>, %arg13: memref<64x128xf32, #tpu.memory_space<vmem>>, %arg14: memref<1x128xf32, #tpu.memory_space<vmem>>, %arg15: memref<512x128xf32, #tpu.memory_space<vmem>>) attributes {dimension_semantics = [#tpu.dimension_semantics<parallel>], iteration_bounds = array<i64: 2>, scalar_prefetch = 0 : i64, scratch_operands = 0 : i64, tpu.core_type = #tpu.core_type<tc>, window_params = [{transform_indices = @transform_0, window_bounds = array<i64: 4>}, {transform_indices = @transform_1, window_bounds = array<i64: 512, 16>}, {pipeline_mode = #tpu.pipeline_mode<synchronous>, transform_indices = @transform_2, window_bounds = array<i64: 16, 32>}, {pipeline_mode = #tpu.pipeline_mode<synchronous>, transform_indices = @transform_3, window_bounds = array<i64: 16, 32>}, {pipeline_mode = #tpu.pipeline_mode<synchronous>, transform_indices = @transform_4, window_bounds = array<i64: 1, 32>}, {pipeline_mode = #tpu.pipeline_mode<synchronous>, transform_indices = @transform_5, window_bounds = array<i64: 32, 64>}, {pipeline_mode = #tpu.pipeline_mode<synchronous>, transform_indices = @transform_6, window_bounds = array<i64: 32, 64>}, {pipeline_mode = #tpu.pipeline_mode<synchronous>, transform_indices = @transform_7, window_bounds = array<i64: 1, 64>}, {pipeline_mode = #tpu.pipeline_mode<synchronous>, transform_indices = @transform_8, window_bounds = array<i64: 64, 64>}, {pipeline_mode = #tpu.pipeline_mode<synchronous>, transform_indices = @transform_9, window_bounds = array<i64: 64, 64>}, {pipeline_mode = #tpu.pipeline_mode<synchronous>, transform_indices = @transform_10, window_bounds = array<i64: 1, 64>}, {pipeline_mode = #tpu.pipeline_mode<synchronous>, transform_indices = @transform_11, window_bounds = array<i64: 64, 128>}, {pipeline_mode = #tpu.pipeline_mode<synchronous>, transform_indices = @transform_12, window_bounds = array<i64: 64, 128>}, {pipeline_mode = #tpu.pipeline_mode<synchronous>, transform_indices = @transform_13, window_bounds = array<i64: 1, 128>}, {transform_indices = @transform_14, window_bounds = array<i64: 512, 128>}]} {
    %c0 = arith.constant 0 : index
    %c0_0 = arith.constant 0 : index
    %0 = vector.load %arg2[%c0, %c0_0] : memref<512x16xf32, #tpu.memory_space<vmem>>, vector<512x16xf32>
    %c0_1 = arith.constant 0 : index
    %c0_2 = arith.constant 0 : index
    %1 = vector.load %arg3[%c0_1, %c0_2] : memref<16x32xf32, #tpu.memory_space<vmem>>, vector<16x32xf32>
    %c0_3 = arith.constant 0 : index
    %c0_4 = arith.constant 0 : index
    %2 = vector.load %arg4[%c0_3, %c0_4] : memref<16x32xf32, #tpu.memory_space<vmem>>, vector<16x32xf32>
    %3 = math.absf %2 : vector<16x32xf32>
    %c0_5 = arith.constant 0 : index
    %4 = memref.load %arg1[%c0_5] : memref<4xf32, #tpu.memory_space<smem>>
    %5 = vector.broadcast %4 : f32 to vector<16x32xf32>
    %6 = arith.cmpf oge, %3, %5 : vector<16x32xf32>
    %7 = arith.extui %6 : vector<16x32xi1> to vector<16x32xi32>
    %8 = arith.sitofp %7 : vector<16x32xi32> to vector<16x32xf32>
    %9 = arith.mulf %1, %8 : vector<16x32xf32>
    %cst = arith.constant dense<0.000000e+00> : vector<512x32xf32>
    %10 = tpu.matmul %0, %9, %cst {dimension_numbers = #tpu.dot_dimension_numbers<[1], [0], [0], [1], [0, 0, 1, 1], [], []>} : vector<512x16xf32>, vector<16x32xf32>, vector<512x32xf32> -> vector<512x32xf32>
    %c0_6 = arith.constant 0 : index
    %c0_7 = arith.constant 0 : index
    %11 = vector.load %arg5[%c0_6, %c0_7] : memref<1x32xf32, #tpu.memory_space<vmem>>, vector<1x32xf32>
    %12 = vector.broadcast %11 : vector<1x32xf32> to vector<512x32xf32>
    %13 = arith.addf %10, %12 : vector<512x32xf32>
    %cst_8 = arith.constant 0.000000e+00 : f32
    %14 = vector.broadcast %cst_8 : f32 to vector<512x32xf32>
    %15 = arith.maximumf %13, %14 : vector<512x32xf32>
    %c0_9 = arith.constant 0 : index
    %c0_10 = arith.constant 0 : index
    %16 = vector.load %arg6[%c0_9, %c0_10] : memref<32x64xf32, #tpu.memory_space<vmem>>, vector<32x64xf32>
    %c0_11 = arith.constant 0 : index
    %c0_12 = arith.constant 0 : index
    %17 = vector.load %arg7[%c0_11, %c0_12] : memref<32x64xf32, #tpu.memory_space<vmem>>, vector<32x64xf32>
    %18 = math.absf %17 : vector<32x64xf32>
    %c1 = arith.constant 1 : index
    %19 = memref.load %arg1[%c1] : memref<4xf32, #tpu.memory_space<smem>>
    %20 = vector.broadcast %19 : f32 to vector<32x64xf32>
    %21 = arith.cmpf oge, %18, %20 : vector<32x64xf32>
    %22 = arith.extui %21 : vector<32x64xi1> to vector<32x64xi32>
    %23 = arith.sitofp %22 : vector<32x64xi32> to vector<32x64xf32>
    %24 = arith.mulf %16, %23 : vector<32x64xf32>
    %cst_13 = arith.constant dense<0.000000e+00> : vector<512x64xf32>
    %25 = tpu.matmul %15, %24, %cst_13 {dimension_numbers = #tpu.dot_dimension_numbers<[1], [0], [0], [1], [0, 0, 1, 1], [], []>} : vector<512x32xf32>, vector<32x64xf32>, vector<512x64xf32> -> vector<512x64xf32>
    %c0_14 = arith.constant 0 : index
    %c0_15 = arith.constant 0 : index
    %26 = vector.load %arg8[%c0_14, %c0_15] : memref<1x64xf32, #tpu.memory_space<vmem>>, vector<1x64xf32>
    %27 = vector.broadcast %26 : vector<1x64xf32> to vector<512x64xf32>
    %28 = arith.addf %25, %27 : vector<512x64xf32>
    %cst_16 = arith.constant 0.000000e+00 : f32
    %29 = vector.broadcast %cst_16 : f32 to vector<512x64xf32>
    %30 = arith.maximumf %28, %29 : vector<512x64xf32>
    %c0_17 = arith.constant 0 : index
    %c0_18 = arith.constant 0 : index
    %31 = vector.load %arg9[%c0_17, %c0_18] : memref<64x64xf32, #tpu.memory_space<vmem>>, vector<64x64xf32>
    %c0_19 = arith.constant 0 : index
    %c0_20 = arith.constant 0 : index
    %32 = vector.load %arg10[%c0_19, %c0_20] : memref<64x64xf32, #tpu.memory_space<vmem>>, vector<64x64xf32>
    %33 = math.absf %32 : vector<64x64xf32>
    %c2 = arith.constant 2 : index
    %34 = memref.load %arg1[%c2] : memref<4xf32, #tpu.memory_space<smem>>
    %35 = vector.broadcast %34 : f32 to vector<64x64xf32>
    %36 = arith.cmpf oge, %33, %35 : vector<64x64xf32>
    %37 = arith.extui %36 : vector<64x64xi1> to vector<64x64xi32>
    %38 = arith.sitofp %37 : vector<64x64xi32> to vector<64x64xf32>
    %39 = arith.mulf %31, %38 : vector<64x64xf32>
    %cst_21 = arith.constant dense<0.000000e+00> : vector<512x64xf32>
    %40 = tpu.matmul %30, %39, %cst_21 {dimension_numbers = #tpu.dot_dimension_numbers<[1], [0], [0], [1], [0, 0, 1, 1], [], []>} : vector<512x64xf32>, vector<64x64xf32>, vector<512x64xf32> -> vector<512x64xf32>
    %c0_22 = arith.constant 0 : index
    %c0_23 = arith.constant 0 : index
    %41 = vector.load %arg11[%c0_22, %c0_23] : memref<1x64xf32, #tpu.memory_space<vmem>>, vector<1x64xf32>
    %42 = vector.broadcast %41 : vector<1x64xf32> to vector<512x64xf32>
    %43 = arith.addf %40, %42 : vector<512x64xf32>
    %cst_24 = arith.constant 0.000000e+00 : f32
    %44 = vector.broadcast %cst_24 : f32 to vector<512x64xf32>
    %45 = arith.maximumf %43, %44 : vector<512x64xf32>
    %c0_25 = arith.constant 0 : index
    %c0_26 = arith.constant 0 : index
    %46 = vector.load %arg12[%c0_25, %c0_26] : memref<64x128xf32, #tpu.memory_space<vmem>>, vector<64x128xf32>
    %c0_27 = arith.constant 0 : index
    %c0_28 = arith.constant 0 : index
    %47 = vector.load %arg13[%c0_27, %c0_28] : memref<64x128xf32, #tpu.memory_space<vmem>>, vector<64x128xf32>
    %48 = math.absf %47 : vector<64x128xf32>
    %c3 = arith.constant 3 : index
    %49 = memref.load %arg1[%c3] : memref<4xf32, #tpu.memory_space<smem>>
    %50 = vector.broadcast %49 : f32 to vector<64x128xf32>
    %51 = arith.cmpf oge, %48, %50 : vector<64x128xf32>
    %52 = arith.extui %51 : vector<64x128xi1> to vector<64x128xi32>
    %53 = arith.sitofp %52 : vector<64x128xi32> to vector<64x128xf32>
    %54 = arith.mulf %46, %53 : vector<64x128xf32>
    %cst_29 = arith.constant dense<0.000000e+00> : vector<512x128xf32>
    %55 = tpu.matmul %45, %54, %cst_29 {dimension_numbers = #tpu.dot_dimension_numbers<[1], [0], [0], [1], [0, 0, 1, 1], [], []>} : vector<512x64xf32>, vector<64x128xf32>, vector<512x128xf32> -> vector<512x128xf32>
    %c0_30 = arith.constant 0 : index
    %c0_31 = arith.constant 0 : index
    %56 = vector.load %arg14[%c0_30, %c0_31] : memref<1x128xf32, #tpu.memory_space<vmem>>, vector<1x128xf32>
    %57 = vector.broadcast %56 : vector<1x128xf32> to vector<512x128xf32>
    %58 = arith.addf %55, %57 : vector<512x128xf32>
    %cst_32 = arith.constant 0.000000e+00 : f32
    %59 = vector.broadcast %cst_32 : f32 to vector<512x128xf32>
    %60 = arith.subf %59, %58 : vector<512x128xf32>
    %61 = math.exp %60 : vector<512x128xf32>
    %cst_33 = arith.constant 1.000000e+00 : f32
    %62 = vector.broadcast %cst_33 : f32 to vector<512x128xf32>
    %63 = arith.addf %62, %61 : vector<512x128xf32>
    %cst_34 = arith.constant 1.000000e+00 : f32
    %64 = vector.broadcast %cst_34 : f32 to vector<512x128xf32>
    %65 = arith.divf %64, %63 : vector<512x128xf32>
    %c0_35 = arith.constant 0 : index
    %c0_36 = arith.constant 0 : index
    %66 = vector.load %arg15[%c0_35, %c0_36] : memref<512x128xf32, #tpu.memory_space<vmem>>, vector<512x128xf32>
    tpu.vector_store %arg15[%c0_35, %c0_36], %65 {strides = array<i32>} : memref<512x128xf32, #tpu.memory_space<vmem>>, vector<512x128xf32>,
    return
  }
  func.func @transform_0(%arg0: i32) -> i32 {
    %c0_i32 = arith.constant 0 : i32
    %c0_i32_0 = arith.constant 0 : i32
    return %c0_i32 : i32
  }
  func.func @transform_1(%arg0: i32) -> (i32, i32) {
    %c0_i32 = arith.constant 0 : i32
    %c0_i32_0 = arith.constant 0 : i32
    return %arg0, %c0_i32 : i32, i32
  }
  func.func @transform_2(%arg0: i32) -> (i32, i32) {
    %c0_i32 = arith.constant 0 : i32
    %c0_i32_0 = arith.constant 0 : i32
    %c0_i32_1 = arith.constant 0 : i32
    return %c0_i32, %c0_i32_0 : i32, i32
  }
  func.func @transform_3(%arg0: i32) -> (i32, i32) {
    %c0_i32 = arith.constant 0 : i32
    %c0_i32_0 = arith.constant 0 : i32
    %c0_i32_1 = arith.constant 0 : i32
    return %c0_i32, %c0_i32_0 : i32, i32
  }
  func.func @transform_4(%arg0: i32) -> (i32, i32) {
    %c0_i32 = arith.constant 0 : i32
    %c0_i32_0 = arith.constant 0 : i32
    %c0_i32_1 = arith.constant 0 : i32
    return %c0_i32, %c0_i32_0 : i32, i32
  }
  func.func @transform_5(%arg0: i32) -> (i32, i32) {
    %c0_i32 = arith.constant 0 : i32
    %c0_i32_0 = arith.constant 0 : i32
    %c0_i32_1 = arith.constant 0 : i32
    return %c0_i32, %c0_i32_0 : i32, i32
  }
  func.func @transform_6(%arg0: i32) -> (i32, i32) {
    %c0_i32 = arith.constant 0 : i32
    %c0_i32_0 = arith.constant 0 : i32
    %c0_i32_1 = arith.constant 0 : i32
    return %c0_i32, %c0_i32_0 : i32, i32
  }
  func.func @transform_7(%arg0: i32) -> (i32, i32) {
    %c0_i32 = arith.constant 0 : i32
    %c0_i32_0 = arith.constant 0 : i32
    %c0_i32_1 = arith.constant 0 : i32
    return %c0_i32, %c0_i32_0 : i32, i32
  }
  func.func @transform_8(%arg0: i32) -> (i32, i32) {
    %c0_i32 = arith.constant 0 : i32
    %c0_i32_0 = arith.constant 0 : i32
    %c0_i32_1 = arith.constant 0 : i32
    return %c0_i32, %c0_i32_0 : i32, i32
  }
  func.func @transform_9(%arg0: i32) -> (i32, i32) {
    %c0_i32 = arith.constant 0 : i32
    %c0_i32_0 = arith.constant 0 : i32
    %c0_i32_1 = arith.constant 0 : i32
    return %c0_i32, %c0_i32_0 : i32, i32
  }
  func.func @transform_10(%arg0: i32) -> (i32, i32) {
    %c0_i32 = arith.constant 0 : i32
    %c0_i32_0 = arith.constant 0 : i32
    %c0_i32_1 = arith.constant 0 : i32
    return %c0_i32, %c0_i32_0 : i32, i32
  }
  func.func @transform_11(%arg0: i32) -> (i32, i32) {
    %c0_i32 = arith.constant 0 : i32
    %c0_i32_0 = arith.constant 0 : i32
    %c0_i32_1 = arith.constant 0 : i32
    return %c0_i32, %c0_i32_0 : i32, i32
  }
  func.func @transform_12(%arg0: i32) -> (i32, i32) {
    %c0_i32 = arith.constant 0 : i32
    %c0_i32_0 = arith.constant 0 : i32
    %c0_i32_1 = arith.constant 0 : i32
    return %c0_i32, %c0_i32_0 : i32, i32
  }
  func.func @transform_13(%arg0: i32) -> (i32, i32) {
    %c0_i32 = arith.constant 0 : i32
    %c0_i32_0 = arith.constant 0 : i32
    %c0_i32_1 = arith.constant 0 : i32
    return %c0_i32, %c0_i32_0 : i32, i32
  }
  func.func @transform_14(%arg0: i32) -> (i32, i32) {
    %c0_i32 = arith.constant 0 : i32
    %c0_i32_0 = arith.constant 0 : i32
    return %arg0, %c0_i32 : i32, i32
  }
}

</mosaic_0001>

<llo_original>
// kernel: tpu_custom_call.1
$region0: #{tpu_custom_call.1}
  #allocation0 [shape = 'u32[]', space=smem, size = 0x4, offset = 0x4, fixed_abs, tag = 'smem constant byte address 0x4 - core index']
  #allocation1 [shape = 'u32[144,128]{1,0:T(1,128)}', space=vmem, size = 0x12000, scoped, tag = 'internal scratch']
  %s0 = inlined_call_operand.vmem [shape: f32[4], index: 0, kind: input, shape index: {}]
  %s1 = inlined_call_operand.vmem [shape: f32[1024,16], index: 1, kind: input, shape index: {}]
  %s2 = inlined_call_operand.vmem [shape: f32[16,32], index: 2, kind: input, shape index: {}]
  %s3 = inlined_call_operand.vmem [shape: f32[16,32], index: 3, kind: input, shape index: {}]
  %s4 = inlined_call_operand.vmem [shape: f32[1,32], index: 4, kind: input, shape index: {}]
  %s5 = inlined_call_operand.vmem [shape: f32[32,64], index: 5, kind: input, shape index: {}]
  %s6 = inlined_call_operand.vmem [shape: f32[32,64], index: 6, kind: input, shape index: {}]
  %s7 = inlined_call_operand.vmem [shape: f32[1,64], index: 7, kind: input, shape index: {}]
  %s8 = inlined_call_operand.vmem [shape: f32[64,64], index: 8, kind: input, shape index: {}]
  %s9 = inlined_call_operand.vmem [shape: f32[64,64], index: 9, kind: input, shape index: {}]
  %s10 = inlined_call_operand.vmem [shape: f32[1,64], index: 10, kind: input, shape index: {}]
  %s11 = inlined_call_operand.vmem [shape: f32[64,128], index: 11, kind: input, shape index: {}]
  %s12 = inlined_call_operand.vmem [shape: f32[64,128], index: 12, kind: input, shape index: {}]
  %s13 = inlined_call_operand.vmem [shape: f32[1,128], index: 13, kind: input, shape index: {}]
  %s14 = inlined_call_operand.hbm [shape: f32[1024,128], index: 14, kind: output, shape index: {}]
  %s15 = sld [smem:[#allocation0]]
  $region93: #{tpu_custom_call.1} parent=0
    _
  %s17 = ssub.s32 1, %s15
  %s18 = scalar_select 0, %s17, %s15
  $region1: #{tpu_custom_call.1} parent=0
    #allocation2 [shape = 'u8[512]{0}', space=smem, size = 0x200, scoped, tag = 'input window, operand 0, single buffered']
    #allocation3 [shape = 's32[2]{0}', space=sflag, size = 0x8, scoped, tag = 'scoped memory for tpu_custom_call.1']
    #allocation4 [shape = 's32[2]{0}', space=sflag, size = 0x8, scoped, tag = 'scoped memory for tpu_custom_call.1']
    #allocation5 [shape = 'u8[524288]{0}', space=vmem, size = 0x80000, scoped, tag = 'output window, operand 0']
    %19 = vsyncpa [#allocation4], 0
    %20 = vsyncpa [#allocation3], 0
    %s21 = scalar_lea.sflag [#allocation3], 1
    %22 = vsyncpa %s21, 0
    loop: start=0, step=1, limit=4
    $region2: #{tpu_custom_call.1} parent=1 // loop_pre_header
      _
    $region3: #{tpu_custom_call.1} parent=1 // loop_header
      %s24 = sphi 0, %s28
      %p25 = scmp.ge.s32.totalorder %s24, 4
      %s32 = sphi 0, %s32
      %s34 = sphi 0, %s32
      %s35 = sphi 0, %s34
      %s49 = sphi 0, %s35
      %s55 = sphi 0, %s57
      %s58 = sphi 0, %s55
      %s59 = sphi 0, %s58
      %s75 = sphi 0, %s59
      %s79 = sphi 0, %s79
      %s81 = sphi 0, %s79
      %s82 = sphi 0, %s81
      %s96 = sphi 0, %s82
      %s100 = sphi 0, %s100
      %s102 = sphi 0, %s100
      %s103 = sphi 0, %s102
      %s117 = sphi 0, %s103
      %s121 = sphi 0, %s121
      %s123 = sphi 0, %s121
      %s124 = sphi 0, %s123
      %s138 = sphi 0, %s124
      %s142 = sphi 0, %s142
      %s144 = sphi 0, %s142
      %s145 = sphi 0, %s144
      %s159 = sphi 0, %s145
      %s163 = sphi 0, %s163
      %s165 = sphi 0, %s163
      %s166 = sphi 0, %s165
      %s180 = sphi 0, %s166
      %s184 = sphi 0, %s184
      %s186 = sphi 0, %s184
      %s187 = sphi 0, %s186
      %s201 = sphi 0, %s187
      %s205 = sphi 0, %s205
      %s207 = sphi 0, %s205
      %s208 = sphi 0, %s207
      %s222 = sphi 0, %s208
      %s226 = sphi 0, %s226
      %s228 = sphi 0, %s226
      %s229 = sphi 0, %s228
      %s243 = sphi 0, %s229
      %s247 = sphi 0, %s247
      %s249 = sphi 0, %s247
      %s250 = sphi 0, %s249
      %s264 = sphi 0, %s250
      %s268 = sphi 0, %s268
      %s270 = sphi 0, %s268
      %s271 = sphi 0, %s270
      %s285 = sphi 0, %s271
      %s289 = sphi 0, %s289
      %s291 = sphi 0, %s289
      %s292 = sphi 0, %s291
      %s306 = sphi 0, %s292
      %s310 = sphi 0, %s310
      %s312 = sphi 0, %s310
      %s313 = sphi 0, %s312
      %s327 = sphi 0, %s313
      %s333 = sphi 0, %s335
      %s336 = sphi 0, %s333
      %s337 = sphi 0, %s336
      %s353 = sphi 0, %s337
    $region4: #{tpu_custom_call.1} parent=1 // loop_header_branch
      %27 = sbr.rel (%p25) target = $region8
    $region5: #{tpu_custom_call.1} parent=1 // loop_body
      %s29 = ssub.s32 %s24, 1
      %s30 = ssub.s32 %s24, 2
      %s31 = sadd.s32 %s24, 1
      %s33 = sadd.s32 %s32, 1
      %p36 = scmp.eq.s32.totalorder %s24, 1
      %p37 = scmp.ne.s32.totalorder %s32, %s34
      %p38 = scmp.eq.s32.totalorder %s24, 0
      %p39 = por %p37, %p38
      %p40 = scmp.ne.s32.totalorder %s32, %s34
      %p41 = scmp.eq.s32.totalorder %s29, 1
      %p42 = por %p40, %p41
      %p43 = scmp.ne.s32.totalorder %s34, %s35
      %p44 = scmp.eq.s32.totalorder %s29, 0
      %p45 = por %p43, %p44
      %p46 = scmp.ne.s32.totalorder %s34, %s35
      %p47 = scmp.eq.s32.totalorder %s30, 1
      %p48 = por %p46, %p47
      %p50 = scmp.ne.s32.totalorder %s35, %s49
      %p51 = scmp.eq.s32.totalorder %s30, 0
      %p52 = por %p50, %p51
      %s53 = ssub.s32 %s24, %s31
      %p54 = scmp.eq.s32.totalorder %s53, 0
      %s56 = sadd.s32 %s55, 1
      %s57 = scalar_select %p54, %s55, %s56
      %p60 = pneg %p54
      %p61 = scmp.eq.s32.totalorder %s24, 1
      %p62 = por %p60, %p61
      %p63 = scmp.ne.s32.totalorder %s55, %s58
      %p64 = scmp.eq.s32.totalorder %s24, 0
      %p65 = por %p63, %p64
      %p66 = scmp.ne.s32.totalorder %s55, %s58
      %p67 = scmp.eq.s32.totalorder %s29, 1
      %p68 = por %p66, %p67
      %p69 = scmp.ne.s32.totalorder %s58, %s59
      %p70 = scmp.eq.s32.totalorder %s29, 0
      %p71 = por %p69, %p70
      %p72 = scmp.ne.s32.totalorder %s58, %s59
      %p73 = scmp.eq.s32.totalorder %s30, 1
      %p74 = por %p72, %p73
      %p76 = scmp.ne.s32.totalorder %s59, %s75
      %p77 = scmp.eq.s32.totalorder %s30, 0
      %p78 = por %p76, %p77
      %s80 = sadd.s32 %s79, 1
      %p83 = scmp.eq.s32.totalorder %s24, 1
      %p84 = scmp.ne.s32.totalorder %s79, %s81
      %p85 = scmp.eq.s32.totalorder %s24, 0
      %p86 = por %p84, %p85
      %p87 = scmp.ne.s32.totalorder %s79, %s81
      %p88 = scmp.eq.s32.totalorder %s29, 1
      %p89 = por %p87, %p88
      %p90 = scmp.ne.s32.totalorder %s81, %s82
      %p91 = scmp.eq.s32.totalorder %s29, 0
      %p92 = por %p90, %p91
      %p93 = scmp.ne.s32.totalorder %s81, %s82
      %p94 = scmp.eq.s32.totalorder %s30, 1
      %p95 = por %p93, %p94
      %p97 = scmp.ne.s32.totalorder %s82, %s96
      %p98 = scmp.eq.s32.totalorder %s30, 0
      %p99 = por %p97, %p98
      %s101 = sadd.s32 %s100, 1
      %p104 = scmp.eq.s32.totalorder %s24, 1
      %p105 = scmp.ne.s32.totalorder %s100, %s102
      %p106 = scmp.eq.s32.totalorder %s24, 0
      %p107 = por %p105, %p106
      %p108 = scmp.ne.s32.totalorder %s100, %s102
      %p109 = scmp.eq.s32.totalorder %s29, 1
      %p110 = por %p108, %p109
      %p111 = scmp.ne.s32.totalorder %s102, %s103
      %p112 = scmp.eq.s32.totalorder %s29, 0
      %p113 = por %p111, %p112
      %p114 = scmp.ne.s32.totalorder %s102, %s103
      %p115 = scmp.eq.s32.totalorder %s30, 1
      %p116 = por %p114, %p115
      %p118 = scmp.ne.s32.totalorder %s103, %s117
      %p119 = scmp.eq.s32.totalorder %s30, 0
      %p120 = por %p118, %p119
      %s122 = sadd.s32 %s121, 1
      %p125 = scmp.eq.s32.totalorder %s24, 1
      %p126 = scmp.ne.s32.totalorder %s121, %s123
      %p127 = scmp.eq.s32.totalorder %s24, 0
      %p128 = por %p126, %p127
      %p129 = scmp.ne.s32.totalorder %s121, %s123
      %p130 = scmp.eq.s32.totalorder %s29, 1
      %p131 = por %p129, %p130
      %p132 = scmp.ne.s32.totalorder %s123, %s124
      %p133 = scmp.eq.s32.totalorder %s29, 0
      %p134 = por %p132, %p133
      %p135 = scmp.ne.s32.totalorder %s123, %s124
      %p136 = scmp.eq.s32.totalorder %s30, 1
      %p137 = por %p135, %p136
      %p139 = scmp.ne.s32.totalorder %s124, %s138
      %p140 = scmp.eq.s32.totalorder %s30, 0
      %p141 = por %p139, %p140
      %s143 = sadd.s32 %s142, 1
      %p146 = scmp.eq.s32.totalorder %s24, 1
      %p147 = scmp.ne.s32.totalorder %s142, %s144
      %p148 = scmp.eq.s32.totalorder %s24, 0
      %p149 = por %p147, %p148
      %p150 = scmp.ne.s32.totalorder %s142, %s144
      %p151 = scmp.eq.s32.totalorder %s29, 1
      %p152 = por %p150, %p151
      %p153 = scmp.ne.s32.totalorder %s144, %s145
      %p154 = scmp.eq.s32.totalorder %s29, 0
      %p155 = por %p153, %p154
      %p156 = scmp.ne.s32.totalorder %s144, %s145
      %p157 = scmp.eq.s32.totalorder %s30, 1
      %p158 = por %p156, %p157
      %p160 = scmp.ne.s32.totalorder %s145, %s159
      %p161 = scmp.eq.s32.totalorder %s30, 0
      %p162 = por %p160, %p161
      %s164 = sadd.s32 %s163, 1
      %p167 = scmp.eq.s32.totalorder %s24, 1
      %p168 = scmp.ne.s32.totalorder %s163, %s165
      %p169 = scmp.eq.s32.totalorder %s24, 0
      %p170 = por %p168, %p169
      %p171 = scmp.ne.s32.totalorder %s163, %s165
      %p172 = scmp.eq.s32.totalorder %s29, 1
      %p173 = por %p171, %p172
      %p174 = scmp.ne.s32.totalorder %s165, %s166
      %p175 = scmp.eq.s32.totalorder %s29, 0
      %p176 = por %p174, %p175
      %p177 = scmp.ne.s32.totalorder %s165, %s166
      %p178 = scmp.eq.s32.totalorder %s30, 1
      %p179 = por %p177, %p178
      %p181 = scmp.ne.s32.totalorder %s166, %s180
      %p182 = scmp.eq.s32.totalorder %s30, 0
      %p183 = por %p181, %p182
      %s185 = sadd.s32 %s184, 1
      %p188 = scmp.eq.s32.totalorder %s24, 1
      %p189 = scmp.ne.s32.totalorder %s184, %s186
      %p190 = scmp.eq.s32.totalorder %s24, 0
      %p191 = por %p189, %p190
      %p192 = scmp.ne.s32.totalorder %s184, %s186
      %p193 = scmp.eq.s32.totalorder %s29, 1
      %p194 = por %p192, %p193
      %p195 = scmp.ne.s32.totalorder %s186, %s187
      %p196 = scmp.eq.s32.totalorder %s29, 0
      %p197 = por %p195, %p196
      %p198 = scmp.ne.s32.totalorder %s186, %s187
      %p199 = scmp.eq.s32.totalorder %s30, 1
      %p200 = por %p198, %p199
      %p202 = scmp.ne.s32.totalorder %s187, %s201
      %p203 = scmp.eq.s32.totalorder %s30, 0
      %p204 = por %p202, %p203
      %s206 = sadd.s32 %s205, 1
      %p209 = scmp.eq.s32.totalorder %s24, 1
      %p210 = scmp.ne.s32.totalorder %s205, %s207
      %p211 = scmp.eq.s32.totalorder %s24, 0
      %p212 = por %p210, %p211
      %p213 = scmp.ne.s32.totalorder %s205, %s207
      %p214 = scmp.eq.s32.totalorder %s29, 1
      %p215 = por %p213, %p214
      %p216 = scmp.ne.s32.totalorder %s207, %s208
      %p217 = scmp.eq.s32.totalorder %s29, 0
      %p218 = por %p216, %p217
      %p219 = scmp.ne.s32.totalorder %s207, %s208
      %p220 = scmp.eq.s32.totalorder %s30, 1
      %p221 = por %p219, %p220
      %p223 = scmp.ne.s32.totalorder %s208, %s222
      %p224 = scmp.eq.s32.totalorder %s30, 0
      %p225 = por %p223, %p224
      %s227 = sadd.s32 %s226, 1
      %p230 = scmp.eq.s32.totalorder %s24, 1
      %p231 = scmp.ne.s32.totalorder %s226, %s228
      %p232 = scmp.eq.s32.totalorder %s24, 0
      %p233 = por %p231, %p232
      %p234 = scmp.ne.s32.totalorder %s226, %s228
      %p235 = scmp.eq.s32.totalorder %s29, 1
      %p236 = por %p234, %p235
      %p237 = scmp.ne.s32.totalorder %s228, %s229
      %p238 = scmp.eq.s32.totalorder %s29, 0
      %p239 = por %p237, %p238
      %p240 = scmp.ne.s32.totalorder %s228, %s229
      %p241 = scmp.eq.s32.totalorder %s30, 1
      %p242 = por %p240, %p241
      %p244 = scmp.ne.s32.totalorder %s229, %s243
      %p245 = scmp.eq.s32.totalorder %s30, 0
      %p246 = por %p244, %p245
      %s248 = sadd.s32 %s247, 1
      %p251 = scmp.eq.s32.totalorder %s24, 1
      %p252 = scmp.ne.s32.totalorder %s247, %s249
      %p253 = scmp.eq.s32.totalorder %s24, 0
      %p254 = por %p252, %p253
      %p255 = scmp.ne.s32.totalorder %s247, %s249
      %p256 = scmp.eq.s32.totalorder %s29, 1
      %p257 = por %p255, %p256
      %p258 = scmp.ne.s32.totalorder %s249, %s250
      %p259 = scmp.eq.s32.totalorder %s29, 0
      %p260 = por %p258, %p259
      %p261 = scmp.ne.s32.totalorder %s249, %s250
      %p262 = scmp.eq.s32.totalorder %s30, 1
      %p263 = por %p261, %p262
      %p265 = scmp.ne.s32.totalorder %s250, %s264
      %p266 = scmp.eq.s32.totalorder %s30, 0
      %p267 = por %p265, %p266
      %s269 = sadd.s32 %s268, 1
      %p272 = scmp.eq.s32.totalorder %s24, 1
      %p273 = scmp.ne.s32.totalorder %s268, %s270
      %p274 = scmp.eq.s32.totalorder %s24, 0
      %p275 = por %p273, %p274
      %p276 = scmp.ne.s32.totalorder %s268, %s270
      %p277 = scmp.eq.s32.totalorder %s29, 1
      %p278 = por %p276, %p277
      %p279 = scmp.ne.s32.totalorder %s270, %s271
      %p280 = scmp.eq.s32.totalorder %s29, 0
      %p281 = por %p279, %p280
      %p282 = scmp.ne.s32.totalorder %s270, %s271
      %p283 = scmp.eq.s32.totalorder %s30, 1
      %p284 = por %p282, %p283
      %p286 = scmp.ne.s32.totalorder %s271, %s285
      %p287 = scmp.eq.s32.totalorder %s30, 0
      %p288 = por %p286, %p287
      %s290 = sadd.s32 %s289, 1
      %p293 = scmp.eq.s32.totalorder %s24, 1
      %p294 = scmp.ne.s32.totalorder %s289, %s291
      %p295 = scmp.eq.s32.totalorder %s24, 0
      %p296 = por %p294, %p295
      %p297 = scmp.ne.s32.totalorder %s289, %s291
      %p298 = scmp.eq.s32.totalorder %s29, 1
      %p299 = por %p297, %p298
      %p300 = scmp.ne.s32.totalorder %s291, %s292
      %p301 = scmp.eq.s32.totalorder %s29, 0
      %p302 = por %p300, %p301
      %p303 = scmp.ne.s32.totalorder %s291, %s292
      %p304 = scmp.eq.s32.totalorder %s30, 1
      %p305 = por %p303, %p304
      %p307 = scmp.ne.s32.totalorder %s292, %s306
      %p308 = scmp.eq.s32.totalorder %s30, 0
      %p309 = por %p307, %p308
      %s311 = sadd.s32 %s310, 1
      %p314 = scmp.eq.s32.totalorder %s24, 1
      %p315 = scmp.ne.s32.totalorder %s310, %s312
      %p316 = scmp.eq.s32.totalorder %s24, 0
      %p317 = por %p315, %p316
      %p318 = scmp.ne.s32.totalorder %s310, %s312
      %p319 = scmp.eq.s32.totalorder %s29, 1
      %p320 = por %p318, %p319
      %p321 = scmp.ne.s32.totalorder %s312, %s313
      %p322 = scmp.eq.s32.totalorder %s29, 0
      %p323 = por %p321, %p322
      %p324 = scmp.ne.s32.totalorder %s312, %s313
      %p325 = scmp.eq.s32.totalorder %s30, 1
      %p326 = por %p324, %p325
      %p328 = scmp.ne.s32.totalorder %s313, %s327
      %p329 = scmp.eq.s32.totalorder %s30, 0
      %p330 = por %p328, %p329
      %s331 = ssub.s32 %s24, %s31
      %p332 = scmp.eq.s32.totalorder %s331, 0
      %s334 = sadd.s32 %s333, 1
      %s335 = scalar_select %p332, %s333, %s334
      %p338 = pneg %p332
      %p339 = scmp.eq.s32.totalorder %s24, 1
      %p340 = por %p338, %p339
      %p341 = scmp.ne.s32.totalorder %s333, %s336
      %p342 = scmp.eq.s32.totalorder %s24, 0
      %p343 = por %p341, %p342
      %p344 = scmp.ne.s32.totalorder %s333, %s336
      %p345 = scmp.eq.s32.totalorder %s29, 1
      %p346 = por %p344, %p345
      %p347 = scmp.ne.s32.totalorder %s336, %s337
      %p348 = scmp.eq.s32.totalorder %s29, 0
      %p349 = por %p347, %p348
      %p350 = scmp.ne.s32.totalorder %s336, %s337
      %p351 = scmp.eq.s32.totalorder %s30, 1
      %p352 = por %p350, %p351
      %p354 = scmp.ne.s32.totalorder %s337, %s353
      %p355 = scmp.eq.s32.totalorder %s30, 0
      %p356 = por %p354, %p355
      %p357 = scmp.le.s32.totalorder 1, %s24
      %p358 = scmp.lt.s32.totalorder %s24, 3
      %p359 = pnand %p357, %p358
      %p360 = pneg %p359
      // Predicated region
      $region9: #{tpu_custom_call.1} parent=5 // pred_check
        _
      $region10: #{tpu_custom_call.1} parent=5 // pred_check_branch
        %362 = sbr.rel (%p359) target = $region12
      $region11: #{tpu_custom_call.1} parent=5 // pred_region
        %s363 = ssub.s32 %s24, 1
        // Predicated region
        $region13: #{tpu_custom_call.1} parent=11 // pred_check
          %p364 = pneg %p45
        $region14: #{tpu_custom_call.1} parent=11 // pred_check_branch
          %366 = sbr.rel (%p364) target = $region16
        $region15: #{tpu_custom_call.1} parent=11 // pred_region
          %s368 = ssub.s32 16, 16
          %369 = vsyncadd [#allocation4], %s368
          %s371 = sshll.u32 %s0, 4
          %s372 = int_to_ptr.vmem [resolvable:$true] %s371
          %374 = dma.vmem_to_smem %s372, 16, [#allocation2], [#allocation4]
        $region16: #{tpu_custom_call.1} parent=11 // pred_fallthru
          _
        // Predicated region
        $region17: #{tpu_custom_call.1} parent=11 // pred_check
          %p375 = pneg %p92
        $region18: #{tpu_custom_call.1} parent=11 // pred_check_branch
          %377 = sbr.rel (%p375) target = $region20
        $region19: #{tpu_custom_call.1} parent=11 // pred_region
          _
        $region20: #{tpu_custom_call.1} parent=11 // pred_fallthru
          _
        // Predicated region
        $region21: #{tpu_custom_call.1} parent=11 // pred_check
          %p378 = pneg %p113
        $region22: #{tpu_custom_call.1} parent=11 // pred_check_branch
          %380 = sbr.rel (%p378) target = $region24
        $region23: #{tpu_custom_call.1} parent=11 // pred_region
          _
        $region24: #{tpu_custom_call.1} parent=11 // pred_fallthru
          _
        // Predicated region
        $region25: #{tpu_custom_call.1} parent=11 // pred_check
          %p381 = pneg %p134
        $region26: #{tpu_custom_call.1} parent=11 // pred_check_branch
          %383 = sbr.rel (%p381) target = $region28
        $region27: #{tpu_custom_call.1} parent=11 // pred_region
          _
        $region28: #{tpu_custom_call.1} parent=11 // pred_fallthru
          _
        // Predicated region
        $region29: #{tpu_custom_call.1} parent=11 // pred_check
          %p384 = pneg %p155
        $region30: #{tpu_custom_call.1} parent=11 // pred_check_branch
          %386 = sbr.rel (%p384) target = $region32
        $region31: #{tpu_custom_call.1} parent=11 // pred_region
          _
        $region32: #{tpu_custom_call.1} parent=11 // pred_fallthru
          _
        // Predicated region
        $region33: #{tpu_custom_call.1} parent=11 // pred_check
          %p387 = pneg %p176
        $region34: #{tpu_custom_call.1} parent=11 // pred_check_branch
          %389 = sbr.rel (%p387) target = $region36
        $region35: #{tpu_custom_call.1} parent=11 // pred_region
          _
        $region36: #{tpu_custom_call.1} parent=11 // pred_fallthru
          _
        // Predicated region
        $region37: #{tpu_custom_call.1} parent=11 // pred_check
          %p390 = pneg %p197
        $region38: #{tpu_custom_call.1} parent=11 // pred_check_branch
          %392 = sbr.rel (%p390) target = $region40
        $region39: #{tpu_custom_call.1} parent=11 // pred_region
          _
        $region40: #{tpu_custom_call.1} parent=11 // pred_fallthru
          _
        // Predicated region
        $region41: #{tpu_custom_call.1} parent=11 // pred_check
          %p393 = pneg %p218
        $region42: #{tpu_custom_call.1} parent=11 // pred_check_branch
          %395 = sbr.rel (%p393) target = $region44
        $region43: #{tpu_custom_call.1} parent=11 // pred_region
          _
        $region44: #{tpu_custom_call.1} parent=11 // pred_fallthru
          _
        // Predicated region
        $region45: #{tpu_custom_call.1} parent=11 // pred_check
          %p396 = pneg %p239
        $region46: #{tpu_custom_call.1} parent=11 // pred_check_branch
          %398 = sbr.rel (%p396) target = $region48
        $region47: #{tpu_custom_call.1} parent=11 // pred_region
          _
        $region48: #{tpu_custom_call.1} parent=11 // pred_fallthru
          _
        // Predicated region
        $region49: #{tpu_custom_call.1} parent=11 // pred_check
          %p399 = pneg %p260
        $region50: #{tpu_custom_call.1} parent=11 // pred_check_branch
          %401 = sbr.rel (%p399) target = $region52
        $region51: #{tpu_custom_call.1} parent=11 // pred_region
          _
        $region52: #{tpu_custom_call.1} parent=11 // pred_fallthru
          _
        // Predicated region
        $region53: #{tpu_custom_call.1} parent=11 // pred_check
          %p402 = pneg %p281
        $region54: #{tpu_custom_call.1} parent=11 // pred_check_branch
          %404 = sbr.rel (%p402) target = $region56
        $region55: #{tpu_custom_call.1} parent=11 // pred_region
          _
        $region56: #{tpu_custom_call.1} parent=11 // pred_fallthru
          _
        // Predicated region
        $region57: #{tpu_custom_call.1} parent=11 // pred_check
          %p405 = pneg %p302
        $region58: #{tpu_custom_call.1} parent=11 // pred_check_branch
          %407 = sbr.rel (%p405) target = $region60
        $region59: #{tpu_custom_call.1} parent=11 // pred_region
          _
        $region60: #{tpu_custom_call.1} parent=11 // pred_fallthru
          _
        // Predicated region
        $region61: #{tpu_custom_call.1} parent=11 // pred_check
          %p408 = pneg %p323
        $region62: #{tpu_custom_call.1} parent=11 // pred_check_branch
          %410 = sbr.rel (%p408) target = $region64
        $region63: #{tpu_custom_call.1} parent=11 // pred_region
          _
        $region64: #{tpu_custom_call.1} parent=11 // pred_fallthru
          _
      $region12: #{tpu_custom_call.1} parent=5 // pred_fallthru
        _
      %p411 = scmp.lt.s32.totalorder %s24, 2
      // Predicated region
      $region65: #{tpu_custom_call.1} parent=5 // pred_check
        %p412 = pneg %p411
      $region66: #{tpu_custom_call.1} parent=5 // pred_check_branch
        %414 = sbr.rel (%p412) target = $region68
      $region67: #{tpu_custom_call.1} parent=5 // pred_region
        // Predicated region
        $region69: #{tpu_custom_call.1} parent=67 // pred_check
          %p415 = pneg %p65
        $region70: #{tpu_custom_call.1} parent=67 // pred_check_branch
          %417 = sbr.rel (%p415) target = $region72
        $region71: #{tpu_custom_call.1} parent=67 // pred_region
          %s418 = smul.u32 64, %s24
          %p419 = scmp.lt.s32.totalorder %s418, 127
          %s420 = scalar_select %p419, %s418, 127
          %s421 = smul.addr %s420, 8
          %s422 = scalar_lea.vmem %s1, %s421
          %s423 = smul.u32 64, %s24
        $region72: #{tpu_custom_call.1} parent=67 // pred_fallthru
          _
      $region68: #{tpu_custom_call.1} parent=5 // pred_fallthru
        _
      %p424 = scmp.le.s32.totalorder 1, %s24
      %p425 = scmp.lt.s32.totalorder %s24, 3
      %p426 = pnand %p424, %p425
      %p427 = pneg %p426
      // Predicated region
      $region73: #{tpu_custom_call.1} parent=5 // pred_check
        _
      $region74: #{tpu_custom_call.1} parent=5 // pred_check_branch
        %429 = sbr.rel (%p426) target = $region76
      $region75: #{tpu_custom_call.1} parent=5 // pred_region
        %s430 = ssub.s32 %s24, 1
        // Predicated region
        $region77: #{tpu_custom_call.1} parent=75 // pred_check
          %p431 = pneg %p45
        $region78: #{tpu_custom_call.1} parent=75 // pred_check_branch
          %433 = sbr.rel (%p431) target = $region80
        $region79: #{tpu_custom_call.1} parent=75 // pred_region
          %434 = dma.done [#allocation4], 16
        $region80: #{tpu_custom_call.1} parent=75 // pred_fallthru
          _
        %435 = sfence
        %p436 = pneg %p45
        %p437 = pneg %p42
        %s438 = smul.u32 64, %s29
        %p439 = scmp.lt.s32.totalorder %s438, 127
        %s440 = scalar_select %p439, %s438, 127
        %s441 = smul.addr %s440, 8
        %s442 = scalar_lea.vmem %s1, %s441
        %p443 = pneg %p71
        %p444 = pneg %p68
        %p445 = pneg %p92
        %p446 = pneg %p89
        %p447 = pneg %p113
        %p448 = pneg %p110
        %p449 = pneg %p134
        %p450 = pneg %p131
        %p451 = pneg %p155
        %p452 = pneg %p152
        %p453 = pneg %p176
        %p454 = pneg %p173
        %p455 = pneg %p197
        %p456 = pneg %p194
        %p457 = pneg %p218
        %p458 = pneg %p215
        %p459 = pneg %p239
        %p460 = pneg %p236
        %p461 = pneg %p260
        %p462 = pneg %p257
        %p463 = pneg %p281
        %p464 = pneg %p278
        %p465 = pneg %p302
        %p466 = pneg %p299
        %p467 = pneg %p323
        %p468 = pneg %p320
        %p469 = pneg %p349
        %p470 = pneg %p346
        %s471 = sand.u32 %s336, 1
        %s472 = scalar_lea.sflag [#allocation3], %s471
        %s473 = sand.u32 %s336, 1
        %s474 = smul.addr %s473, 512
        %s475 = scalar_lea.vmem [#allocation5], %s474
        %s476 = smul.u32 64, %s29
        %p477 = scmp.lt.s32.totalorder %s476, 127
        %s478 = scalar_select %p477, %s476, 127
        %s479 = smul.addr %s478, 8
        %s480 = scalar_lea.vmem %s1, %s479
        %s481 = smul.u32 64, %s29
        %s482 = smul.u32 64, %s29
        %v483 = vld [vmem:[%s480] sm:$0xff]
        %v484 = vld [vmem:[%s480 + $0x8] sm:$0xff]
        %v485 = vld [vmem:[%s480 + $0x10] sm:$0xff]
        %v486 = vld [vmem:[%s480 + $0x18] sm:$0xff]
        %v487 = vld [vmem:[%s480 + $0x20] sm:$0xff]
        %v488 = vld [vmem:[%s480 + $0x28] sm:$0xff]
        %v489 = vld [vmem:[%s480 + $0x30] sm:$0xff]
        %v490 = vld [vmem:[%s480 + $0x38] sm:$0xff]
        %v491 = vld [vmem:[%s480 + $0x40] sm:$0xff]
        %v492 = vld [vmem:[%s480 + $0x48] sm:$0xff]
        %v493 = vld [vmem:[%s480 + $0x50] sm:$0xff]
        %v494 = vld [vmem:[%s480 + $0x58] sm:$0xff]
        %v495 = vld [vmem:[%s480 + $0x60] sm:$0xff]
        %v496 = vld [vmem:[%s480 + $0x68] sm:$0xff]
        %v497 = vld [vmem:[%s480 + $0x70] sm:$0xff]
        %v498 = vld [vmem:[%s480 + $0x78] sm:$0xff]
        %v499 = vld [vmem:[%s480 + $0x80] sm:$0xff]
        %v500 = vld [vmem:[%s480 + $0x88] sm:$0xff]
        %v501 = vld [vmem:[%s480 + $0x90] sm:$0xff]
        %v502 = vld [vmem:[%s480 + $0x98] sm:$0xff]
        %v503 = vld [vmem:[%s480 + $0xa0] sm:$0xff]
        %v504 = vld [vmem:[%s480 + $0xa8] sm:$0xff]
        %v505 = vld [vmem:[%s480 + $0xb0] sm:$0xff]
        %v506 = vld [vmem:[%s480 + $0xb8] sm:$0xff]
        %v507 = vld [vmem:[%s480 + $0xc0] sm:$0xff]
        %v508 = vld [vmem:[%s480 + $0xc8] sm:$0xff]
        %v509 = vld [vmem:[%s480 + $0xd0] sm:$0xff]
        %v510 = vld [vmem:[%s480 + $0xd8] sm:$0xff]
        %v511 = vld [vmem:[%s480 + $0xe0] sm:$0xff]
        %v512 = vld [vmem:[%s480 + $0xe8] sm:$0xff]
        %v513 = vld [vmem:[%s480 + $0xf0] sm:$0xff]
        %v514 = vld [vmem:[%s480 + $0xf8] sm:$0xff]
        %v515 = vld [vmem:[%s480 + $0x100] sm:$0xff]
        %v516 = vld [vmem:[%s480 + $0x108] sm:$0xff]
        %v517 = vld [vmem:[%s480 + $0x110] sm:$0xff]
        %v518 = vld [vmem:[%s480 + $0x118] sm:$0xff]
        %v519 = vld [vmem:[%s480 + $0x120] sm:$0xff]
        %v520 = vld [vmem:[%s480 + $0x128] sm:$0xff]
        %v521 = vld [vmem:[%s480 + $0x130] sm:$0xff]
        %v522 = vld [vmem:[%s480 + $0x138] sm:$0xff]
        %v523 = vld [vmem:[%s480 + $0x140] sm:$0xff]
        %v524 = vld [vmem:[%s480 + $0x148] sm:$0xff]
        %v525 = vld [vmem:[%s480 + $0x150] sm:$0xff]
        %v526 = vld [vmem:[%s480 + $0x158] sm:$0xff]
        %v527 = vld [vmem:[%s480 + $0x160] sm:$0xff]
        %v528 = vld [vmem:[%s480 + $0x168] sm:$0xff]
        %v529 = vld [vmem:[%s480 + $0x170] sm:$0xff]
        %v530 = vld [vmem:[%s480 + $0x178] sm:$0xff]
        %v531 = vld [vmem:[%s480 + $0x180] sm:$0xff]
        %v532 = vld [vmem:[%s480 + $0x188] sm:$0xff]
        %v533 = vld [vmem:[%s480 + $0x190] sm:$0xff]
        %v534 = vld [vmem:[%s480 + $0x198] sm:$0xff]
        %v535 = vld [vmem:[%s480 + $0x1a0] sm:$0xff]
        %v536 = vld [vmem:[%s480 + $0x1a8] sm:$0xff]
        %v537 = vld [vmem:[%s480 + $0x1b0] sm:$0xff]
        %v538 = vld [vmem:[%s480 + $0x1b8] sm:$0xff]
        %v539 = vld [vmem:[%s480 + $0x1c0] sm:$0xff]
        %v540 = vld [vmem:[%s480 + $0x1c8] sm:$0xff]
        %v541 = vld [vmem:[%s480 + $0x1d0] sm:$0xff]
        %v542 = vld [vmem:[%s480 + $0x1d8] sm:$0xff]
        %v543 = vld [vmem:[%s480 + $0x1e0] sm:$0xff]
        %v544 = vld [vmem:[%s480 + $0x1e8] sm:$0xff]
        %v545 = vld [vmem:[%s480 + $0x1f0] sm:$0xff]
        %v546 = vld [vmem:[%s480 + $0x1f8] sm:$0xff]
        %v547 = vld [vmem:[%s2] sm:$0xff]
        %v548 = vld [vmem:[%s2 + $0x8] sm:$0xff]
        %v549 = vld [vmem:[%s3] sm:$0xff]
        %v550 = vld [vmem:[%s3 + $0x8] sm:$0xff]
        %v551 = vand.u32 2147483647, %v549
        %v552 = vand.u32 2147483647, %v550
        %s553 = sld [smem:[#allocation2]]
        %v554 = vstv %s553
        %vm555 = vcmp.ge.f32.partialorder %v551, %v554
        %vm556 = vcmp.ge.f32.partialorder %v552, %v554
        %v557 = vsel %vm555, 1, 0
        %v558 = vsel %vm556, 1, 0
        %v559 = vcvt.s32.f32 %v557
        %v560 = vcvt.s32.f32 %v558
        %v561 = vmul.f32 %v547, %v559
        %v562 = vmul.f32 %v548, %v560
        %v563 = vld [vmem:[%s4] sm:$0x1]
        %v565 = vlaneseq
        %v566 = vshrl.u32 %v565, 7
        %v567 = vsub.s32 0, %v566
        %v568 = vrot.slane %v563, %v567
        %vm570 = vcmask 130048
        %v572 = vsel %vm570, %v483, 0
        %v575 = vsel %vm570, %v484, 0
        %v578 = vsel %vm570, %v485, 0
        %v581 = vsel %vm570, %v486, 0
        %v584 = vsel %vm570, %v487, 0
        %v587 = vsel %vm570, %v488, 0
        %v590 = vsel %vm570, %v489, 0
        %v593 = vsel %vm570, %v490, 0
        %v596 = vsel %vm570, %v491, 0
        %v599 = vsel %vm570, %v492, 0
        %v602 = vsel %vm570, %v493, 0
        %v605 = vsel %vm570, %v494, 0
        %v608 = vsel %vm570, %v495, 0
        %v611 = vsel %vm570, %v496, 0
        %v614 = vsel %vm570, %v497, 0
        %v617 = vsel %vm570, %v498, 0
        %v620 = vsel %vm570, %v499, 0
        %v623 = vsel %vm570, %v500, 0
        %v626 = vsel %vm570, %v501, 0
        %v629 = vsel %vm570, %v502, 0
        %v632 = vsel %vm570, %v503, 0
        %v635 = vsel %vm570, %v504, 0
        %v638 = vsel %vm570, %v505, 0
        %v641 = vsel %vm570, %v506, 0
        %v644 = vsel %vm570, %v507, 0
        %v647 = vsel %vm570, %v508, 0
        %v650 = vsel %vm570, %v509, 0
        %v653 = vsel %vm570, %v510, 0
        %v656 = vsel %vm570, %v511, 0
        %v659 = vsel %vm570, %v512, 0
        %v662 = vsel %vm570, %v513, 0
        %v665 = vsel %vm570, %v514, 0
        %v668 = vsel %vm570, %v515, 0
        %v671 = vsel %vm570, %v516, 0
        %v674 = vsel %vm570, %v517, 0
        %v677 = vsel %vm570, %v518, 0
        %v680 = vsel %vm570, %v519, 0
        %v683 = vsel %vm570, %v520, 0
        %v686 = vsel %vm570, %v521, 0
        %v689 = vsel %vm570, %v522, 0
        %v692 = vsel %vm570, %v523, 0
        %v695 = vsel %vm570, %v524, 0
        %v698 = vsel %vm570, %v525, 0
        %v701 = vsel %vm570, %v526, 0
        %v704 = vsel %vm570, %v527, 0
        %v707 = vsel %vm570, %v528, 0
        %v710 = vsel %vm570, %v529, 0
        %v713 = vsel %vm570, %v530, 0
        %v716 = vsel %vm570, %v531, 0
        %v719 = vsel %vm570, %v532, 0
        %v722 = vsel %vm570, %v533, 0
        %v725 = vsel %vm570, %v534, 0
        %v728 = vsel %vm570, %v535, 0
        %v731 = vsel %vm570, %v536, 0
        %v734 = vsel %vm570, %v537, 0
        %v737 = vsel %vm570, %v538, 0
        %v740 = vsel %vm570, %v539, 0
        %v743 = vsel %vm570, %v540, 0
        %v746 = vsel %vm570, %v541, 0
        %v749 = vsel %vm570, %v542, 0
        %v752 = vsel %vm570, %v543, 0
        %v755 = vsel %vm570, %v544, 0
        %v758 = vsel %vm570, %v545, 0
        %v761 = vsel %vm570, %v546, 0
        %763 = vmatprep.subr.mxu0 0.0
        %764 = vmatpush1.msra.mxu0 %v561
        %765 = vmatprep.subr.mxu0 0.0
        %766 = vmatpush1.msra.mxu0 %v562
        %767 = vmatprep.subr.mxu0 0.0
        %768 = vmatpush1.msra.mxu0 0.0
        %769 = vmatprep.subr.mxu0 0.0
        %770 = vmatpush1.msra.mxu0 0.0
        %771 = vmatprep.subr.mxu0 0.0
        %772 = vmatpush1.msra.mxu0 0.0
        %773 = vmatprep.subr.mxu0 0.0
        %774 = vmatpush1.msra.mxu0 0.0
        %775 = vmatprep.subr.mxu0 0.0
        %776 = vmatpush1.msra.mxu0 0.0
        %777 = vmatprep.subr.mxu0 0.0
        %778 = vmatpush1.msra.mxu0 0.0
        %779 = vmatprep.subr.mxu0 0.0
        %780 = vmatpush1.msra.mxu0 0.0
        %781 = vmatprep.subr.mxu0 0.0
        %782 = vmatpush1.msra.mxu0 0.0
        %783 = vmatprep.subr.mxu0 0.0
        %784 = vmatpush1.msra.mxu0 0.0
        %785 = vmatprep.subr.mxu0 0.0
        %786 = vmatpush1.msra.mxu0 0.0
        %787 = vmatprep.subr.mxu0 0.0
        %788 = vmatpush1.msra.mxu0 0.0
        %789 = vmatprep.subr.mxu0 0.0
        %790 = vmatpush1.msra.mxu0 0.0
        %791 = vmatprep.subr.mxu0 0.0
        %792 = vmatpush1.msra.mxu0 0.0
        %793 = vmatprep.subr.mxu0 0.0
        %794 = vmatpush1.msra.mxu0 0.0
        %795 = vmatprep.subr.mxu0 0.0
        %796 = vmatpush1.msra.mxu0 0.0
        %797 = vmatprep.subr.mxu0 0.0
        %798 = vmatpush1.msra.mxu0 0.0
        %799 = vmatprep.subr.mxu0 0.0
        %800 = vmatpush1.msra.mxu0 0.0
        %801 = vmatprep.subr.mxu0 0.0
        %802 = vmatpush1.msra.mxu0 0.0
        %803 = vmatprep.subr.mxu0 0.0
        %804 = vmatpush1.msra.mxu0 0.0
        %805 = vmatprep.subr.mxu0 0.0
        %806 = vmatpush1.msra.mxu0 0.0
        %807 = vmatprep.subr.mxu0 0.0
        %808 = vmatpush1.msra.mxu0 0.0
        %809 = vmatprep.subr.mxu0 0.0
        %810 = vmatpush1.msra.mxu0 0.0
        %811 = vmatprep.subr.mxu0 0.0
        %812 = vmatpush1.msra.mxu0 0.0
        %813 = vmatprep.subr.mxu0 0.0
        %814 = vmatpush1.msra.mxu0 0.0
        %815 = vmatprep.subr.mxu0 0.0
        %816 = vmatpush1.msra.mxu0 0.0
        %817 = vmatprep.subr.mxu0 0.0
        %818 = vmatpush1.msra.mxu0 0.0
        %819 = vmatprep.subr.mxu0 0.0
        %820 = vmatpush1.msra.mxu0 0.0
        %821 = vmatprep.subr.mxu0 0.0
        %822 = vmatpush1.msra.mxu0 0.0
        %823 = vmatprep.subr.mxu0 0.0
        %824 = vmatpush1.msra.mxu0 0.0
        %825 = vmatprep.subr.mxu0 0.0
        %826 = vmatpush1.msra.mxu0 0.0
        %827 = vmatprep.mubr.f32.mxu0 0.0
        %828 = vmatmul.mubr.f32.gmra.mrb[0].mxu0 %v572
        %v829 = vpop.f32.mrb[0].mxu0
        %v830 = vadd.f32 %v568, %v829
        %v831 = vpop.f32.mrb[0].mxu0
        %832 = vmatprep.mubr.f32.mxu0 0.0
        %833 = vmatmul.mubr.f32.gmra.mrb[0].mxu0 %v575
        %v834 = vpop.f32.mrb[0].mxu0
        %v835 = vadd.f32 %v568, %v834
        %v836 = vpop.f32.mrb[0].mxu0
        %837 = vmatprep.mubr.f32.mxu0 0.0
        %838 = vmatmul.mubr.f32.gmra.mrb[0].mxu0 %v578
        %v839 = vpop.f32.mrb[0].mxu0
        %v840 = vadd.f32 %v568, %v839
        %v841 = vpop.f32.mrb[0].mxu0
        %842 = vmatprep.mubr.f32.mxu0 0.0
        %843 = vmatmul.mubr.f32.gmra.mrb[0].mxu0 %v581
        %v844 = vpop.f32.mrb[0].mxu0
        %v845 = vadd.f32 %v568, %v844
        %v846 = vpop.f32.mrb[0].mxu0
        %847 = vmatprep.mubr.f32.mxu0 0.0
        %848 = vmatmul.mubr.f32.gmra.mrb[0].mxu0 %v584
        %v849 = vpop.f32.mrb[0].mxu0
        %v850 = vadd.f32 %v568, %v849
        %v851 = vpop.f32.mrb[0].mxu0
        %852 = vmatprep.mubr.f32.mxu0 0.0
        %853 = vmatmul.mubr.f32.gmra.mrb[0].mxu0 %v587
        %v854 = vpop.f32.mrb[0].mxu0
        %v855 = vadd.f32 %v568, %v854
        %v856 = vpop.f32.mrb[0].mxu0
        %857 = vmatprep.mubr.f32.mxu0 0.0
        %858 = vmatmul.mubr.f32.gmra.mrb[0].mxu0 %v590
        %v859 = vpop.f32.mrb[0].mxu0
        %v860 = vadd.f32 %v568, %v859
        %v861 = vpop.f32.mrb[0].mxu0
        %862 = vmatprep.mubr.f32.mxu0 0.0
        %863 = vmatmul.mubr.f32.gmra.mrb[0].mxu0 %v593
        %v864 = vpop.f32.mrb[0].mxu0
        %v865 = vadd.f32 %v568, %v864
        %v866 = vpop.f32.mrb[0].mxu0
        %867 = vmatprep.mubr.f32.mxu0 0.0
        %868 = vmatmul.mubr.f32.gmra.mrb[0].mxu0 %v596
        %v869 = vpop.f32.mrb[0].mxu0
        %v870 = vadd.f32 %v568, %v869
        %v871 = vpop.f32.mrb[0].mxu0
        %872 = vmatprep.mubr.f32.mxu0 0.0
        %873 = vmatmul.mubr.f32.gmra.mrb[0].mxu0 %v599
        %v874 = vpop.f32.mrb[0].mxu0
        %v875 = vadd.f32 %v568, %v874
        %v876 = vpop.f32.mrb[0].mxu0
        %877 = vmatprep.mubr.f32.mxu0 0.0
        %878 = vmatmul.mubr.f32.gmra.mrb[0].mxu0 %v602
        %v879 = vpop.f32.mrb[0].mxu0
        %v880 = vadd.f32 %v568, %v879
        %v881 = vpop.f32.mrb[0].mxu0
        %882 = vmatprep.mubr.f32.mxu0 0.0
        %883 = vmatmul.mubr.f32.gmra.mrb[0].mxu0 %v605
        %v884 = vpop.f32.mrb[0].mxu0
        %v885 = vadd.f32 %v568, %v884
        %v886 = vpop.f32.mrb[0].mxu0
        %887 = vmatprep.mubr.f32.mxu0 0.0
        %888 = vmatmul.mubr.f32.gmra.mrb[0].mxu0 %v608
        %v889 = vpop.f32.mrb[0].mxu0
        %v890 = vadd.f32 %v568, %v889
        %v891 = vpop.f32.mrb[0].mxu0
        %892 = vmatprep.mubr.f32.mxu0 0.0
        %893 = vmatmul.mubr.f32.gmra.mrb[0].mxu0 %v611
        %v894 = vpop.f32.mrb[0].mxu0
        %v895 = vadd.f32 %v568, %v894
        %v896 = vpop.f32.mrb[0].mxu0
        %897 = vmatprep.mubr.f32.mxu0 0.0
        %898 = vmatmul.mubr.f32.gmra.mrb[0].mxu0 %v614
        %v899 = vpop.f32.mrb[0].mxu0
        %v900 = vadd.f32 %v568, %v899
        %v901 = vpop.f32.mrb[0].mxu0
        %902 = vmatprep.mubr.f32.mxu0 0.0
        %903 = vmatmul.mubr.f32.gmra.mrb[0].mxu0 %v617
        %v904 = vpop.f32.mrb[0].mxu0
        %v905 = vadd.f32 %v568, %v904
        %v906 = vpop.f32.mrb[0].mxu0
        %907 = vmatprep.mubr.f32.mxu0 0.0
        %908 = vmatmul.mubr.f32.gmra.mrb[0].mxu0 %v620
        %v909 = vpop.f32.mrb[0].mxu0
        %v910 = vadd.f32 %v568, %v909
        %v911 = vpop.f32.mrb[0].mxu0
        %912 = vmatprep.mubr.f32.mxu0 0.0
        %913 = vmatmul.mubr.f32.gmra.mrb[0].mxu0 %v623
        %v914 = vpop.f32.mrb[0].mxu0
        %v915 = vadd.f32 %v568, %v914
        %v916 = vpop.f32.mrb[0].mxu0
        %917 = vmatprep.mubr.f32.mxu0 0.0
        %918 = vmatmul.mubr.f32.gmra.mrb[0].mxu0 %v626
        %v919 = vpop.f32.mrb[0].mxu0
        %v920 = vadd.f32 %v568, %v919
        %v921 = vpop.f32.mrb[0].mxu0
        %922 = vmatprep.mubr.f32.mxu0 0.0
        %923 = vmatmul.mubr.f32.gmra.mrb[0].mxu0 %v629
        %v924 = vpop.f32.mrb[0].mxu0
        %v925 = vadd.f32 %v568, %v924
        %v926 = vpop.f32.mrb[0].mxu0
        %927 = vmatprep.mubr.f32.mxu0 0.0
        %928 = vmatmul.mubr.f32.gmra.mrb[0].mxu0 %v632
        %v929 = vpop.f32.mrb[0].mxu0
        %v930 = vadd.f32 %v568, %v929
        %v931 = vpop.f32.mrb[0].mxu0
        %932 = vmatprep.mubr.f32.mxu0 0.0
        %933 = vmatmul.mubr.f32.gmra.mrb[0].mxu0 %v635
        %v934 = vpop.f32.mrb[0].mxu0
        %v935 = vadd.f32 %v568, %v934
        %v936 = vpop.f32.mrb[0].mxu0
        %937 = vmatprep.mubr.f32.mxu0 0.0
        %938 = vmatmul.mubr.f32.gmra.mrb[0].mxu0 %v638
        %v939 = vpop.f32.mrb[0].mxu0
        %v940 = vadd.f32 %v568, %v939
        %v941 = vpop.f32.mrb[0].mxu0
        %942 = vmatprep.mubr.f32.mxu0 0.0
        %943 = vmatmul.mubr.f32.gmra.mrb[0].mxu0 %v641
        %v944 = vpop.f32.mrb[0].mxu0
        %v945 = vadd.f32 %v568, %v944
        %v946 = vpop.f32.mrb[0].mxu0
        %947 = vmatprep.mubr.f32.mxu0 0.0
        %948 = vmatmul.mubr.f32.gmra.mrb[0].mxu0 %v644
        %v949 = vpop.f32.mrb[0].mxu0
        %v950 = vadd.f32 %v568, %v949
        %v951 = vpop.f32.mrb[0].mxu0
        %952 = vmatprep.mubr.f32.mxu0 0.0
        %953 = vmatmul.mubr.f32.gmra.mrb[0].mxu0 %v647
        %v954 = vpop.f32.mrb[0].mxu0
        %v955 = vadd.f32 %v568, %v954
        %v956 = vpop.f32.mrb[0].mxu0
        %957 = vmatprep.mubr.f32.mxu0 0.0
        %958 = vmatmul.mubr.f32.gmra.mrb[0].mxu0 %v650
        %v959 = vpop.f32.mrb[0].mxu0
        %v960 = vadd.f32 %v568, %v959
        %v961 = vpop.f32.mrb[0].mxu0
        %962 = vmatprep.mubr.f32.mxu0 0.0
        %963 = vmatmul.mubr.f32.gmra.mrb[0].mxu0 %v653
        %v964 = vpop.f32.mrb[0].mxu0
        %v965 = vadd.f32 %v568, %v964
        %v966 = vpop.f32.mrb[0].mxu0
        %967 = vmatprep.mubr.f32.mxu0 0.0
        %968 = vmatmul.mubr.f32.gmra.mrb[0].mxu0 %v656
        %v969 = vpop.f32.mrb[0].mxu0
        %v970 = vadd.f32 %v568, %v969
        %v971 = vpop.f32.mrb[0].mxu0
        %972 = vmatprep.mubr.f32.mxu0 0.0
        %973 = vmatmul.mubr.f32.gmra.mrb[0].mxu0 %v659
        %v974 = vpop.f32.mrb[0].mxu0
        %v975 = vadd.f32 %v568, %v974
        %v976 = vpop.f32.mrb[0].mxu0
        %977 = vmatprep.mubr.f32.mxu0 0.0
        %978 = vmatmul.mubr.f32.gmra.mrb[0].mxu0 %v662
        %v979 = vpop.f32.mrb[0].mxu0
        %v980 = vadd.f32 %v568, %v979
        %v981 = vpop.f32.mrb[0].mxu0
        %982 = vmatprep.mubr.f32.mxu0 0.0
        %983 = vmatmul.mubr.f32.gmra.mrb[0].mxu0 %v665
        %v984 = vpop.f32.mrb[0].mxu0
        %v985 = vadd.f32 %v568, %v984
        %v986 = vpop.f32.mrb[0].mxu0
        %987 = vmatprep.mubr.f32.mxu0 0.0
        %988 = vmatmul.mubr.f32.gmra.mrb[0].mxu0 %v668
        %v989 = vpop.f32.mrb[0].mxu0
        %v990 = vadd.f32 %v568, %v989
        %v991 = vpop.f32.mrb[0].mxu0
        %992 = vmatprep.mubr.f32.mxu0 0.0
        %993 = vmatmul.mubr.f32.gmra.mrb[0].mxu0 %v671
        %v994 = vpop.f32.mrb[0].mxu0
        %v995 = vadd.f32 %v568, %v994
        %v996 = vpop.f32.mrb[0].mxu0
        %997 = vmatprep.mubr.f32.mxu0 0.0
        %998 = vmatmul.mubr.f32.gmra.mrb[0].mxu0 %v674
        %v999 = vpop.f32.mrb[0].mxu0
        %v1000 = vadd.f32 %v568, %v999
        %v1001 = vpop.f32.mrb[0].mxu0
        %1002 = vmatprep.mubr.f32.mxu0 0.0
        %1003 = vmatmul.mubr.f32.gmra.mrb[0].mxu0 %v677
        %v1004 = vpop.f32.mrb[0].mxu0
        %v1005 = vadd.f32 %v568, %v1004
        %v1006 = vpop.f32.mrb[0].mxu0
        %1007 = vmatprep.mubr.f32.mxu0 0.0
        %1008 = vmatmul.mubr.f32.gmra.mrb[0].mxu0 %v680
        %v1009 = vpop.f32.mrb[0].mxu0
        %v1010 = vadd.f32 %v568, %v1009
        %v1011 = vpop.f32.mrb[0].mxu0
        %1012 = vmatprep.mubr.f32.mxu0 0.0
        %1013 = vmatmul.mubr.f32.gmra.mrb[0].mxu0 %v683
        %v1014 = vpop.f32.mrb[0].mxu0
        %v1015 = vadd.f32 %v568, %v1014
        %v1016 = vpop.f32.mrb[0].mxu0
        %1017 = vmatprep.mubr.f32.mxu0 0.0
        %1018 = vmatmul.mubr.f32.gmra.mrb[0].mxu0 %v686
        %v1019 = vpop.f32.mrb[0].mxu0
        %v1020 = vadd.f32 %v568, %v1019
        %v1021 = vpop.f32.mrb[0].mxu0
        %1022 = vmatprep.mubr.f32.mxu0 0.0
        %1023 = vmatmul.mubr.f32.gmra.mrb[0].mxu0 %v689
        %v1024 = vpop.f32.mrb[0].mxu0
        %v1025 = vadd.f32 %v568, %v1024
        %v1026 = vpop.f32.mrb[0].mxu0
        %1027 = vmatprep.mubr.f32.mxu0 0.0
        %1028 = vmatmul.mubr.f32.gmra.mrb[0].mxu0 %v692
        %v1029 = vpop.f32.mrb[0].mxu0
        %v1030 = vadd.f32 %v568, %v1029
        %v1031 = vpop.f32.mrb[0].mxu0
        %1032 = vmatprep.mubr.f32.mxu0 0.0
        %1033 = vmatmul.mubr.f32.gmra.mrb[0].mxu0 %v695
        %v1034 = vpop.f32.mrb[0].mxu0
        %v1035 = vadd.f32 %v568, %v1034
        %v1036 = vpop.f32.mrb[0].mxu0
        %1037 = vmatprep.mubr.f32.mxu0 0.0
        %1038 = vmatmul.mubr.f32.gmra.mrb[0].mxu0 %v698
        %v1039 = vpop.f32.mrb[0].mxu0
        %v1040 = vadd.f32 %v568, %v1039
        %v1041 = vpop.f32.mrb[0].mxu0
        %1042 = vmatprep.mubr.f32.mxu0 0.0
        %1043 = vmatmul.mubr.f32.gmra.mrb[0].mxu0 %v701
        %v1044 = vpop.f32.mrb[0].mxu0
        %v1045 = vadd.f32 %v568, %v1044
        %v1046 = vpop.f32.mrb[0].mxu0
        %1047 = vmatprep.mubr.f32.mxu0 0.0
        %1048 = vmatmul.mubr.f32.gmra.mrb[0].mxu0 %v704
        %v1049 = vpop.f32.mrb[0].mxu0
        %v1050 = vadd.f32 %v568, %v1049
        %v1051 = vpop.f32.mrb[0].mxu0
        %1052 = vmatprep.mubr.f32.mxu0 0.0
        %1053 = vmatmul.mubr.f32.gmra.mrb[0].mxu0 %v707
        %v1054 = vpop.f32.mrb[0].mxu0
        %v1055 = vadd.f32 %v568, %v1054
        %v1056 = vpop.f32.mrb[0].mxu0
        %1057 = vmatprep.mubr.f32.mxu0 0.0
        %1058 = vmatmul.mubr.f32.gmra.mrb[0].mxu0 %v710
        %v1059 = vpop.f32.mrb[0].mxu0
        %v1060 = vadd.f32 %v568, %v1059
        %v1061 = vpop.f32.mrb[0].mxu0
        %1062 = vmatprep.mubr.f32.mxu0 0.0
        %1063 = vmatmul.mubr.f32.gmra.mrb[0].mxu0 %v713
        %v1064 = vpop.f32.mrb[0].mxu0
        %v1065 = vadd.f32 %v568, %v1064
        %v1066 = vpop.f32.mrb[0].mxu0
        %1067 = vmatprep.mubr.f32.mxu0 0.0
        %1068 = vmatmul.mubr.f32.gmra.mrb[0].mxu0 %v716
        %v1069 = vpop.f32.mrb[0].mxu0
        %v1070 = vadd.f32 %v568, %v1069
        %v1071 = vpop.f32.mrb[0].mxu0
        %1072 = vmatprep.mubr.f32.mxu0 0.0
        %1073 = vmatmul.mubr.f32.gmra.mrb[0].mxu0 %v719
        %v1074 = vpop.f32.mrb[0].mxu0
        %v1075 = vadd.f32 %v568, %v1074
        %v1076 = vpop.f32.mrb[0].mxu0
        %1077 = vmatprep.mubr.f32.mxu0 0.0
        %1078 = vmatmul.mubr.f32.gmra.mrb[0].mxu0 %v722
        %v1079 = vpop.f32.mrb[0].mxu0
        %v1080 = vadd.f32 %v568, %v1079
        %v1081 = vpop.f32.mrb[0].mxu0
        %1082 = vmatprep.mubr.f32.mxu0 0.0
        %1083 = vmatmul.mubr.f32.gmra.mrb[0].mxu0 %v725
        %v1084 = vpop.f32.mrb[0].mxu0
        %v1085 = vadd.f32 %v568, %v1084
        %v1086 = vpop.f32.mrb[0].mxu0
        %1087 = vmatprep.mubr.f32.mxu0 0.0
        %1088 = vmatmul.mubr.f32.gmra.mrb[0].mxu0 %v728
        %v1089 = vpop.f32.mrb[0].mxu0
        %v1090 = vadd.f32 %v568, %v1089
        %v1091 = vpop.f32.mrb[0].mxu0
        %1092 = vmatprep.mubr.f32.mxu0 0.0
        %1093 = vmatmul.mubr.f32.gmra.mrb[0].mxu0 %v731
        %v1094 = vpop.f32.mrb[0].mxu0
        %v1095 = vadd.f32 %v568, %v1094
        %v1096 = vpop.f32.mrb[0].mxu0
        %1097 = vmatprep.mubr.f32.mxu0 0.0
        %1098 = vmatmul.mubr.f32.gmra.mrb[0].mxu0 %v734
        %v1099 = vpop.f32.mrb[0].mxu0
        %v1100 = vadd.f32 %v568, %v1099
        %v1101 = vpop.f32.mrb[0].mxu0
        %1102 = vmatprep.mubr.f32.mxu0 0.0
        %1103 = vmatmul.mubr.f32.gmra.mrb[0].mxu0 %v737
        %v1104 = vpop.f32.mrb[0].mxu0
        %v1105 = vadd.f32 %v568, %v1104
        %v1106 = vpop.f32.mrb[0].mxu0
        %1107 = vmatprep.mubr.f32.mxu0 0.0
        %1108 = vmatmul.mubr.f32.gmra.mrb[0].mxu0 %v740
        %v1109 = vpop.f32.mrb[0].mxu0
        %v1110 = vadd.f32 %v568, %v1109
        %v1111 = vpop.f32.mrb[0].mxu0
        %1112 = vmatprep.mubr.f32.mxu0 0.0
        %1113 = vmatmul.mubr.f32.gmra.mrb[0].mxu0 %v743
        %v1114 = vpop.f32.mrb[0].mxu0
        %v1115 = vadd.f32 %v568, %v1114
        %v1116 = vpop.f32.mrb[0].mxu0
        %1117 = vmatprep.mubr.f32.mxu0 0.0
        %1118 = vmatmul.mubr.f32.gmra.mrb[0].mxu0 %v746
        %v1119 = vpop.f32.mrb[0].mxu0
        %v1120 = vadd.f32 %v568, %v1119
        %v1121 = vpop.f32.mrb[0].mxu0
        %1122 = vmatprep.mubr.f32.mxu0 0.0
        %1123 = vmatmul.mubr.f32.gmra.mrb[0].mxu0 %v749
        %v1124 = vpop.f32.mrb[0].mxu0
        %v1125 = vadd.f32 %v568, %v1124
        %v1126 = vpop.f32.mrb[0].mxu0
        %1127 = vmatprep.mubr.f32.mxu0 0.0
        %1128 = vmatmul.mubr.f32.gmra.mrb[0].mxu0 %v752
        %v1129 = vpop.f32.mrb[0].mxu0
        %v1130 = vadd.f32 %v568, %v1129
        %v1131 = vpop.f32.mrb[0].mxu0
        %1132 = vmatprep.mubr.f32.mxu0 0.0
        %1133 = vmatmul.mubr.f32.gmra.mrb[0].mxu0 %v755
        %v1134 = vpop.f32.mrb[0].mxu0
        %v1135 = vadd.f32 %v568, %v1134
        %v1136 = vpop.f32.mrb[0].mxu0
        %1137 = vmatprep.mubr.f32.mxu0 0.0
        %1138 = vmatmul.mubr.f32.gmra.mrb[0].mxu0 %v758
        %v1139 = vpop.f32.mrb[0].mxu0
        %v1140 = vadd.f32 %v568, %v1139
        %v1141 = vpop.f32.mrb[0].mxu0
        %1142 = vmatprep.mubr.f32.mxu0 0.0
        %1143 = vmatmul.mubr.f32.gmra.mrb[0].mxu0 %v761
        %v1144 = vpop.f32.mrb[0].mxu0
        %v1145 = vadd.f32 %v568, %v1144
        %v1146 = vpop.f32.mrb[0].mxu0
        %1147 = vdwg.mxu0
        %v1148 = vmax.f32 %v830, 0.0
        %v1149 = vmax.f32 %v835, 0.0
        %v1150 = vmax.f32 %v840, 0.0
        %v1151 = vmax.f32 %v845, 0.0
        %v1152 = vmax.f32 %v850, 0.0
        %v1153 = vmax.f32 %v855, 0.0
        %v1154 = vmax.f32 %v860, 0.0
        %v1155 = vmax.f32 %v865, 0.0
        %v1156 = vmax.f32 %v870, 0.0
        %v1157 = vmax.f32 %v875, 0.0
        %v1158 = vmax.f32 %v880, 0.0
        %v1159 = vmax.f32 %v885, 0.0
        %v1160 = vmax.f32 %v890, 0.0
        %v1161 = vmax.f32 %v895, 0.0
        %v1162 = vmax.f32 %v900, 0.0
        %v1163 = vmax.f32 %v905, 0.0
        %v1164 = vmax.f32 %v910, 0.0
        %v1165 = vmax.f32 %v915, 0.0
        %v1166 = vmax.f32 %v920, 0.0
        %v1167 = vmax.f32 %v925, 0.0
        %v1168 = vmax.f32 %v930, 0.0
        %v1169 = vmax.f32 %v935, 0.0
        %v1170 = vmax.f32 %v940, 0.0
        %v1171 = vmax.f32 %v945, 0.0
        %v1172 = vmax.f32 %v950, 0.0
        %v1173 = vmax.f32 %v955, 0.0
        %v1174 = vmax.f32 %v960, 0.0
        %v1175 = vmax.f32 %v965, 0.0
        %v1176 = vmax.f32 %v970, 0.0
        %v1177 = vmax.f32 %v975, 0.0
        %v1178 = vmax.f32 %v980, 0.0
        %v1179 = vmax.f32 %v985, 0.0
        %v1180 = vmax.f32 %v990, 0.0
        %v1181 = vmax.f32 %v995, 0.0
        %v1182 = vmax.f32 %v1000, 0.0
        %v1183 = vmax.f32 %v1005, 0.0
        %v1184 = vmax.f32 %v1010, 0.0
        %v1185 = vmax.f32 %v1015, 0.0
        %v1186 = vmax.f32 %v1020, 0.0
        %v1187 = vmax.f32 %v1025, 0.0
        %v1188 = vmax.f32 %v1030, 0.0
        %v1189 = vmax.f32 %v1035, 0.0
        %v1190 = vmax.f32 %v1040, 0.0
        %v1191 = vmax.f32 %v1045, 0.0
        %v1192 = vmax.f32 %v1050, 0.0
        %v1193 = vmax.f32 %v1055, 0.0
        %v1194 = vmax.f32 %v1060, 0.0
        %v1195 = vmax.f32 %v1065, 0.0
        %v1196 = vmax.f32 %v1070, 0.0
        %v1197 = vmax.f32 %v1075, 0.0
        %v1198 = vmax.f32 %v1080, 0.0
        %v1199 = vmax.f32 %v1085, 0.0
        %v1200 = vmax.f32 %v1090, 0.0
        %v1201 = vmax.f32 %v1095, 0.0
        %v1202 = vmax.f32 %v1100, 0.0
        %v1203 = vmax.f32 %v1105, 0.0
        %v1204 = vmax.f32 %v1110, 0.0
        %v1205 = vmax.f32 %v1115, 0.0
        %v1206 = vmax.f32 %v1120, 0.0
        %v1207 = vmax.f32 %v1125, 0.0
        %v1208 = vmax.f32 %v1130, 0.0
        %v1209 = vmax.f32 %v1135, 0.0
        %v1210 = vmax.f32 %v1140, 0.0
        %v1211 = vmax.f32 %v1145, 0.0
        %v1212 = vld [vmem:[%s5] sm:$0xff]
        %v1213 = vld [vmem:[%s5 + $0x8] sm:$0xff]
        %v1214 = vld [vmem:[%s5 + $0x10] sm:$0xff]
        %v1215 = vld [vmem:[%s5 + $0x18] sm:$0xff]
        %v1216 = vld [vmem:[%s6] sm:$0xff]
        %v1217 = vld [vmem:[%s6 + $0x8] sm:$0xff]
        %v1218 = vld [vmem:[%s6 + $0x10] sm:$0xff]
        %v1219 = vld [vmem:[%s6 + $0x18] sm:$0xff]
        %v1220 = vand.u32 2147483647, %v1216
        %v1221 = vand.u32 2147483647, %v1217
        %v1222 = vand.u32 2147483647, %v1218
        %v1223 = vand.u32 2147483647, %v1219
        %s1224 = sld [smem:[#allocation2 + $0x1]]
        %v1225 = vstv %s1224
        %vm1226 = vcmp.ge.f32.partialorder %v1220, %v1225
        %vm1227 = vcmp.ge.f32.partialorder %v1221, %v1225
        %vm1228 = vcmp.ge.f32.partialorder %v1222, %v1225
        %vm1229 = vcmp.ge.f32.partialorder %v1223, %v1225
        %v1230 = vsel %vm1226, 1, 0
        %v1231 = vsel %vm1227, 1, 0
        %v1232 = vsel %vm1228, 1, 0
        %v1233 = vsel %vm1229, 1, 0
        %v1234 = vcvt.s32.f32 %v1230
        %v1235 = vcvt.s32.f32 %v1231
        %v1236 = vcvt.s32.f32 %v1232
        %v1237 = vcvt.s32.f32 %v1233
        %v1238 = vmul.f32 %v1212, %v1234
        %v1239 = vmul.f32 %v1213, %v1235
        %v1240 = vmul.f32 %v1214, %v1236
        %v1241 = vmul.f32 %v1215, %v1237
        %v1242 = vld [vmem:[%s7] sm:$0x1]
        %v1244 = vlaneseq
        %v1245 = vshrl.u32 %v1244, 7
        %v1246 = vsub.s32 0, %v1245
        %v1247 = vrot.slane %v1242, %v1246
        %vm1249 = vcmask 261120
        %v1251 = vsel %vm1249, %v1148, 0
        %v1254 = vsel %vm1249, %v1149, 0
        %v1257 = vsel %vm1249, %v1150, 0
        %v1260 = vsel %vm1249, %v1151, 0
        %v1263 = vsel %vm1249, %v1152, 0
        %v1266 = vsel %vm1249, %v1153, 0
        %v1269 = vsel %vm1249, %v1154, 0
        %v1272 = vsel %vm1249, %v1155, 0
        %v1275 = vsel %vm1249, %v1156, 0
        %v1278 = vsel %vm1249, %v1157, 0
        %v1281 = vsel %vm1249, %v1158, 0
        %v1284 = vsel %vm1249, %v1159, 0
        %v1287 = vsel %vm1249, %v1160, 0
        %v1290 = vsel %vm1249, %v1161, 0
        %v1293 = vsel %vm1249, %v1162, 0
        %v1296 = vsel %vm1249, %v1163, 0
        %v1299 = vsel %vm1249, %v1164, 0
        %v1302 = vsel %vm1249, %v1165, 0
        %v1305 = vsel %vm1249, %v1166, 0
        %v1308 = vsel %vm1249, %v1167, 0
        %v1311 = vsel %vm1249, %v1168, 0
        %v1314 = vsel %vm1249, %v1169, 0
        %v1317 = vsel %vm1249, %v1170, 0
        %v1320 = vsel %vm1249, %v1171, 0
        %v1323 = vsel %vm1249, %v1172, 0
        %v1326 = vsel %vm1249, %v1173, 0
        %v1329 = vsel %vm1249, %v1174, 0
        %v1332 = vsel %vm1249, %v1175, 0
        %v1335 = vsel %vm1249, %v1176, 0
        %v1338 = vsel %vm1249, %v1177, 0
        %v1341 = vsel %vm1249, %v1178, 0
        %v1344 = vsel %vm1249, %v1179, 0
        %v1347 = vsel %vm1249, %v1180, 0
        %v1350 = vsel %vm1249, %v1181, 0
        %v1353 = vsel %vm1249, %v1182, 0
        %v1356 = vsel %vm1249, %v1183, 0
        %v1359 = vsel %vm1249, %v1184, 0
        %v1362 = vsel %vm1249, %v1185, 0
        %v1365 = vsel %vm1249, %v1186, 0
        %v1368 = vsel %vm1249, %v1187, 0
        %v1371 = vsel %vm1249, %v1188, 0
        %v1374 = vsel %vm1249, %v1189, 0
        %v1377 = vsel %vm1249, %v1190, 0
        %v1380 = vsel %vm1249, %v1191, 0
        %v1383 = vsel %vm1249, %v1192, 0
        %v1386 = vsel %vm1249, %v1193, 0
        %v1389 = vsel %vm1249, %v1194, 0
        %v1392 = vsel %vm1249, %v1195, 0
        %v1395 = vsel %vm1249, %v1196, 0
        %v1398 = vsel %vm1249, %v1197, 0
        %v1401 = vsel %vm1249, %v1198, 0
        %v1404 = vsel %vm1249, %v1199, 0
        %v1407 = vsel %vm1249, %v1200, 0
        %v1410 = vsel %vm1249, %v1201, 0
        %v1413 = vsel %vm1249, %v1202, 0
        %v1416 = vsel %vm1249, %v1203, 0
        %v1419 = vsel %vm1249, %v1204, 0
        %v1422 = vsel %vm1249, %v1205, 0
        %v1425 = vsel %vm1249, %v1206, 0
        %v1428 = vsel %vm1249, %v1207, 0
        %v1431 = vsel %vm1249, %v1208, 0
        %v1434 = vsel %vm1249, %v1209, 0
        %v1437 = vsel %vm1249, %v1210, 0
        %v1440 = vsel %vm1249, %v1211, 0
        %1442 = vmatprep.subr.mxu0 0.0
        %1443 = vmatpush1.msra.mxu0 %v1238
        %1444 = vmatprep.subr.mxu0 0.0
        %1445 = vmatpush1.msra.mxu0 %v1239
        %1446 = vmatprep.subr.mxu0 0.0
        %1447 = vmatpush1.msra.mxu0 %v1240
        %1448 = vmatprep.subr.mxu0 0.0
        %1449 = vmatpush1.msra.mxu0 %v1241
        %1450 = vmatprep.subr.mxu0 0.0
        %1451 = vmatpush1.msra.mxu0 0.0
        %1452 = vmatprep.subr.mxu0 0.0
        %1453 = vmatpush1.msra.mxu0 0.0
        %1454 = vmatprep.subr.mxu0 0.0
        %1455 = vmatpush1.msra.mxu0 0.0
        %1456 = vmatprep.subr.mxu0 0.0
        %1457 = vmatpush1.msra.mxu0 0.0
        %1458 = vmatprep.subr.mxu0 0.0
        %1459 = vmatpush1.msra.mxu0 0.0
        %1460 = vmatprep.subr.mxu0 0.0
        %1461 = vmatpush1.msra.mxu0 0.0
        %1462 = vmatprep.subr.mxu0 0.0
        %1463 = vmatpush1.msra.mxu0 0.0
        %1464 = vmatprep.subr.mxu0 0.0
        %1465 = vmatpush1.msra.mxu0 0.0
        %1466 = vmatprep.subr.mxu0 0.0
        %1467 = vmatpush1.msra.mxu0 0.0
        %1468 = vmatprep.subr.mxu0 0.0
        %1469 = vmatpush1.msra.mxu0 0.0
        %1470 = vmatprep.subr.mxu0 0.0
        %1471 = vmatpush1.msra.mxu0 0.0
        %1472 = vmatprep.subr.mxu0 0.0
        %1473 = vmatpush1.msra.mxu0 0.0
        %1474 = vmatprep.subr.mxu0 0.0
        %1475 = vmatpush1.msra.mxu0 0.0
        %1476 = vmatprep.subr.mxu0 0.0
        %1477 = vmatpush1.msra.mxu0 0.0
        %1478 = vmatprep.subr.mxu0 0.0
        %1479 = vmatpush1.msra.mxu0 0.0
        %1480 = vmatprep.subr.mxu0 0.0
        %1481 = vmatpush1.msra.mxu0 0.0
        %1482 = vmatprep.subr.mxu0 0.0
        %1483 = vmatpush1.msra.mxu0 0.0
        %1484 = vmatprep.subr.mxu0 0.0
        %1485 = vmatpush1.msra.mxu0 0.0
        %1486 = vmatprep.subr.mxu0 0.0
        %1487 = vmatpush1.msra.mxu0 0.0
        %1488 = vmatprep.subr.mxu0 0.0
        %1489 = vmatpush1.msra.mxu0 0.0
        %1490 = vmatprep.subr.mxu0 0.0
        %1491 = vmatpush1.msra.mxu0 0.0
        %1492 = vmatprep.subr.mxu0 0.0
        %1493 = vmatpush1.msra.mxu0 0.0
        %1494 = vmatprep.subr.mxu0 0.0
        %1495 = vmatpush1.msra.mxu0 0.0
        %1496 = vmatprep.subr.mxu0 0.0
        %1497 = vmatpush1.msra.mxu0 0.0
        %1498 = vmatprep.subr.mxu0 0.0
        %1499 = vmatpush1.msra.mxu0 0.0
        %1500 = vmatprep.subr.mxu0 0.0
        %1501 = vmatpush1.msra.mxu0 0.0
        %1502 = vmatprep.subr.mxu0 0.0
        %1503 = vmatpush1.msra.mxu0 0.0
        %1504 = vmatprep.subr.mxu0 0.0
        %1505 = vmatpush1.msra.mxu0 0.0
        %1506 = vmatprep.mubr.f32.mxu0 0.0
        %1507 = vmatmul.mubr.f32.gmra.mrb[0].mxu0 %v1251
        %v1508 = vpop.f32.mrb[0].mxu0
        %v1509 = vadd.f32 %v1247, %v1508
        %v1510 = vpop.f32.mrb[0].mxu0
        %1511 = vmatprep.mubr.f32.mxu0 0.0
        %1512 = vmatmul.mubr.f32.gmra.mrb[0].mxu0 %v1254
        %v1513 = vpop.f32.mrb[0].mxu0
        %v1514 = vadd.f32 %v1247, %v1513
        %v1515 = vpop.f32.mrb[0].mxu0
        %1516 = vmatprep.mubr.f32.mxu0 0.0
        %1517 = vmatmul.mubr.f32.gmra.mrb[0].mxu0 %v1257
        %v1518 = vpop.f32.mrb[0].mxu0
        %v1519 = vadd.f32 %v1247, %v1518
        %v1520 = vpop.f32.mrb[0].mxu0
        %1521 = vmatprep.mubr.f32.mxu0 0.0
        %1522 = vmatmul.mubr.f32.gmra.mrb[0].mxu0 %v1260
        %v1523 = vpop.f32.mrb[0].mxu0
        %v1524 = vadd.f32 %v1247, %v1523
        %v1525 = vpop.f32.mrb[0].mxu0
        %1526 = vmatprep.mubr.f32.mxu0 0.0
        %1527 = vmatmul.mubr.f32.gmra.mrb[0].mxu0 %v1263
        %v1528 = vpop.f32.mrb[0].mxu0
        %v1529 = vadd.f32 %v1247, %v1528
        %v1530 = vpop.f32.mrb[0].mxu0
        %1531 = vmatprep.mubr.f32.mxu0 0.0
        %1532 = vmatmul.mubr.f32.gmra.mrb[0].mxu0 %v1266
        %v1533 = vpop.f32.mrb[0].mxu0
        %v1534 = vadd.f32 %v1247, %v1533
        %v1535 = vpop.f32.mrb[0].mxu0
        %1536 = vmatprep.mubr.f32.mxu0 0.0
        %1537 = vmatmul.mubr.f32.gmra.mrb[0].mxu0 %v1269
        %v1538 = vpop.f32.mrb[0].mxu0
        %v1539 = vadd.f32 %v1247, %v1538
        %v1540 = vpop.f32.mrb[0].mxu0
        %1541 = vmatprep.mubr.f32.mxu0 0.0
        %1542 = vmatmul.mubr.f32.gmra.mrb[0].mxu0 %v1272
        %v1543 = vpop.f32.mrb[0].mxu0
        %v1544 = vadd.f32 %v1247, %v1543
        %v1545 = vpop.f32.mrb[0].mxu0
        %1546 = vmatprep.mubr.f32.mxu0 0.0
        %1547 = vmatmul.mubr.f32.gmra.mrb[0].mxu0 %v1275
        %v1548 = vpop.f32.mrb[0].mxu0
        %v1549 = vadd.f32 %v1247, %v1548
        %v1550 = vpop.f32.mrb[0].mxu0
        %1551 = vmatprep.mubr.f32.mxu0 0.0
        %1552 = vmatmul.mubr.f32.gmra.mrb[0].mxu0 %v1278
        %v1553 = vpop.f32.mrb[0].mxu0
        %v1554 = vadd.f32 %v1247, %v1553
        %v1555 = vpop.f32.mrb[0].mxu0
        %1556 = vmatprep.mubr.f32.mxu0 0.0
        %1557 = vmatmul.mubr.f32.gmra.mrb[0].mxu0 %v1281
        %v1558 = vpop.f32.mrb[0].mxu0
        %v1559 = vadd.f32 %v1247, %v1558
        %v1560 = vpop.f32.mrb[0].mxu0
        %1561 = vmatprep.mubr.f32.mxu0 0.0
        %1562 = vmatmul.mubr.f32.gmra.mrb[0].mxu0 %v1284
        %v1563 = vpop.f32.mrb[0].mxu0
        %v1564 = vadd.f32 %v1247, %v1563
        %v1565 = vpop.f32.mrb[0].mxu0
        %1566 = vmatprep.mubr.f32.mxu0 0.0
        %1567 = vmatmul.mubr.f32.gmra.mrb[0].mxu0 %v1287
        %v1568 = vpop.f32.mrb[0].mxu0
        %v1569 = vadd.f32 %v1247, %v1568
        %v1570 = vpop.f32.mrb[0].mxu0
        %1571 = vmatprep.mubr.f32.mxu0 0.0
        %1572 = vmatmul.mubr.f32.gmra.mrb[0].mxu0 %v1290
        %v1573 = vpop.f32.mrb[0].mxu0
        %v1574 = vadd.f32 %v1247, %v1573
        %v1575 = vpop.f32.mrb[0].mxu0
        %1576 = vmatprep.mubr.f32.mxu0 0.0
        %1577 = vmatmul.mubr.f32.gmra.mrb[0].mxu0 %v1293
        %v1578 = vpop.f32.mrb[0].mxu0
        %v1579 = vadd.f32 %v1247, %v1578
        %v1580 = vpop.f32.mrb[0].mxu0
        %1581 = vmatprep.mubr.f32.mxu0 0.0
        %1582 = vmatmul.mubr.f32.gmra.mrb[0].mxu0 %v1296
        %v1583 = vpop.f32.mrb[0].mxu0
        %v1584 = vadd.f32 %v1247, %v1583
        %v1585 = vpop.f32.mrb[0].mxu0
        %1586 = vmatprep.mubr.f32.mxu0 0.0
        %1587 = vmatmul.mubr.f32.gmra.mrb[0].mxu0 %v1299
        %v1588 = vpop.f32.mrb[0].mxu0
        %v1589 = vadd.f32 %v1247, %v1588
        %v1590 = vpop.f32.mrb[0].mxu0
        %1591 = vmatprep.mubr.f32.mxu0 0.0
        %1592 = vmatmul.mubr.f32.gmra.mrb[0].mxu0 %v1302
        %v1593 = vpop.f32.mrb[0].mxu0
        %v1594 = vadd.f32 %v1247, %v1593
        %v1595 = vpop.f32.mrb[0].mxu0
        %1596 = vmatprep.mubr.f32.mxu0 0.0
        %1597 = vmatmul.mubr.f32.gmra.mrb[0].mxu0 %v1305
        %v1598 = vpop.f32.mrb[0].mxu0
        %v1599 = vadd.f32 %v1247, %v1598
        %v1600 = vpop.f32.mrb[0].mxu0
        %1601 = vmatprep.mubr.f32.mxu0 0.0
        %1602 = vmatmul.mubr.f32.gmra.mrb[0].mxu0 %v1308
        %v1603 = vpop.f32.mrb[0].mxu0
        %v1604 = vadd.f32 %v1247, %v1603
        %v1605 = vpop.f32.mrb[0].mxu0
        %1606 = vmatprep.mubr.f32.mxu0 0.0
        %1607 = vmatmul.mubr.f32.gmra.mrb[0].mxu0 %v1311
        %v1608 = vpop.f32.mrb[0].mxu0
        %v1609 = vadd.f32 %v1247, %v1608
        %v1610 = vpop.f32.mrb[0].mxu0
        %1611 = vmatprep.mubr.f32.mxu0 0.0
        %1612 = vmatmul.mubr.f32.gmra.mrb[0].mxu0 %v1314
        %v1613 = vpop.f32.mrb[0].mxu0
        %v1614 = vadd.f32 %v1247, %v1613
        %v1615 = vpop.f32.mrb[0].mxu0
        %1616 = vmatprep.mubr.f32.mxu0 0.0
        %1617 = vmatmul.mubr.f32.gmra.mrb[0].mxu0 %v1317
        %v1618 = vpop.f32.mrb[0].mxu0
        %v1619 = vadd.f32 %v1247, %v1618
        %v1620 = vpop.f32.mrb[0].mxu0
        %1621 = vmatprep.mubr.f32.mxu0 0.0
        %1622 = vmatmul.mubr.f32.gmra.mrb[0].mxu0 %v1320
        %v1623 = vpop.f32.mrb[0].mxu0
        %v1624 = vadd.f32 %v1247, %v1623
        %v1625 = vpop.f32.mrb[0].mxu0
        %1626 = vmatprep.mubr.f32.mxu0 0.0
        %1627 = vmatmul.mubr.f32.gmra.mrb[0].mxu0 %v1323
        %v1628 = vpop.f32.mrb[0].mxu0
        %v1629 = vadd.f32 %v1247, %v1628
        %v1630 = vpop.f32.mrb[0].mxu0
        %1631 = vmatprep.mubr.f32.mxu0 0.0
        %1632 = vmatmul.mubr.f32.gmra.mrb[0].mxu0 %v1326
        %v1633 = vpop.f32.mrb[0].mxu0
        %v1634 = vadd.f32 %v1247, %v1633
        %v1635 = vpop.f32.mrb[0].mxu0
        %1636 = vmatprep.mubr.f32.mxu0 0.0
        %1637 = vmatmul.mubr.f32.gmra.mrb[0].mxu0 %v1329
        %v1638 = vpop.f32.mrb[0].mxu0
        %v1639 = vadd.f32 %v1247, %v1638
        %v1640 = vpop.f32.mrb[0].mxu0
        %1641 = vmatprep.mubr.f32.mxu0 0.0
        %1642 = vmatmul.mubr.f32.gmra.mrb[0].mxu0 %v1332
        %v1643 = vpop.f32.mrb[0].mxu0
        %v1644 = vadd.f32 %v1247, %v1643
        %v1645 = vpop.f32.mrb[0].mxu0
        %1646 = vmatprep.mubr.f32.mxu0 0.0
        %1647 = vmatmul.mubr.f32.gmra.mrb[0].mxu0 %v1335
        %v1648 = vpop.f32.mrb[0].mxu0
        %v1649 = vadd.f32 %v1247, %v1648
        %v1650 = vpop.f32.mrb[0].mxu0
        %1651 = vmatprep.mubr.f32.mxu0 0.0
        %1652 = vmatmul.mubr.f32.gmra.mrb[0].mxu0 %v1338
        %v1653 = vpop.f32.mrb[0].mxu0
        %v1654 = vadd.f32 %v1247, %v1653
        %v1655 = vpop.f32.mrb[0].mxu0
        %1656 = vmatprep.mubr.f32.mxu0 0.0
        %1657 = vmatmul.mubr.f32.gmra.mrb[0].mxu0 %v1341
        %v1658 = vpop.f32.mrb[0].mxu0
        %v1659 = vadd.f32 %v1247, %v1658
        %v1660 = vpop.f32.mrb[0].mxu0
        %1661 = vmatprep.mubr.f32.mxu0 0.0
        %1662 = vmatmul.mubr.f32.gmra.mrb[0].mxu0 %v1344
        %v1663 = vpop.f32.mrb[0].mxu0
        %v1664 = vadd.f32 %v1247, %v1663
        %v1665 = vpop.f32.mrb[0].mxu0
        %1666 = vmatprep.mubr.f32.mxu0 0.0
        %1667 = vmatmul.mubr.f32.gmra.mrb[0].mxu0 %v1347
        %v1668 = vpop.f32.mrb[0].mxu0
        %v1669 = vadd.f32 %v1247, %v1668
        %v1670 = vpop.f32.mrb[0].mxu0
        %1671 = vmatprep.mubr.f32.mxu0 0.0
        %1672 = vmatmul.mubr.f32.gmra.mrb[0].mxu0 %v1350
        %v1673 = vpop.f32.mrb[0].mxu0
        %v1674 = vadd.f32 %v1247, %v1673
        %v1675 = vpop.f32.mrb[0].mxu0
        %1676 = vmatprep.mubr.f32.mxu0 0.0
        %1677 = vmatmul.mubr.f32.gmra.mrb[0].mxu0 %v1353
        %v1678 = vpop.f32.mrb[0].mxu0
        %v1679 = vadd.f32 %v1247, %v1678
        %v1680 = vpop.f32.mrb[0].mxu0
        %1681 = vmatprep.mubr.f32.mxu0 0.0
        %1682 = vmatmul.mubr.f32.gmra.mrb[0].mxu0 %v1356
        %v1683 = vpop.f32.mrb[0].mxu0
        %v1684 = vadd.f32 %v1247, %v1683
        %v1685 = vpop.f32.mrb[0].mxu0
        %1686 = vmatprep.mubr.f32.mxu0 0.0
        %1687 = vmatmul.mubr.f32.gmra.mrb[0].mxu0 %v1359
        %v1688 = vpop.f32.mrb[0].mxu0
        %v1689 = vadd.f32 %v1247, %v1688
        %v1690 = vpop.f32.mrb[0].mxu0
        %1691 = vmatprep.mubr.f32.mxu0 0.0
        %1692 = vmatmul.mubr.f32.gmra.mrb[0].mxu0 %v1362
        %v1693 = vpop.f32.mrb[0].mxu0
        %v1694 = vadd.f32 %v1247, %v1693
        %v1695 = vpop.f32.mrb[0].mxu0
        %1696 = vmatprep.mubr.f32.mxu0 0.0
        %1697 = vmatmul.mubr.f32.gmra.mrb[0].mxu0 %v1365
        %v1698 = vpop.f32.mrb[0].mxu0
        %v1699 = vadd.f32 %v1247, %v1698
        %v1700 = vpop.f32.mrb[0].mxu0
        %1701 = vmatprep.mubr.f32.mxu0 0.0
        %1702 = vmatmul.mubr.f32.gmra.mrb[0].mxu0 %v1368
        %v1703 = vpop.f32.mrb[0].mxu0
        %v1704 = vadd.f32 %v1247, %v1703
        %v1705 = vpop.f32.mrb[0].mxu0
        %1706 = vmatprep.mubr.f32.mxu0 0.0
        %1707 = vmatmul.mubr.f32.gmra.mrb[0].mxu0 %v1371
        %v1708 = vpop.f32.mrb[0].mxu0
        %v1709 = vadd.f32 %v1247, %v1708
        %v1710 = vpop.f32.mrb[0].mxu0
        %1711 = vmatprep.mubr.f32.mxu0 0.0
        %1712 = vmatmul.mubr.f32.gmra.mrb[0].mxu0 %v1374
        %v1713 = vpop.f32.mrb[0].mxu0
        %v1714 = vadd.f32 %v1247, %v1713
        %v1715 = vpop.f32.mrb[0].mxu0
        %1716 = vmatprep.mubr.f32.mxu0 0.0
        %1717 = vmatmul.mubr.f32.gmra.mrb[0].mxu0 %v1377
        %v1718 = vpop.f32.mrb[0].mxu0
        %v1719 = vadd.f32 %v1247, %v1718
        %v1720 = vpop.f32.mrb[0].mxu0
        %1721 = vmatprep.mubr.f32.mxu0 0.0
        %1722 = vmatmul.mubr.f32.gmra.mrb[0].mxu0 %v1380
        %v1723 = vpop.f32.mrb[0].mxu0
        %v1724 = vadd.f32 %v1247, %v1723
        %v1725 = vpop.f32.mrb[0].mxu0
        %1726 = vmatprep.mubr.f32.mxu0 0.0
        %1727 = vmatmul.mubr.f32.gmra.mrb[0].mxu0 %v1383
        %v1728 = vpop.f32.mrb[0].mxu0
        %v1729 = vadd.f32 %v1247, %v1728
        %v1730 = vpop.f32.mrb[0].mxu0
        %1731 = vmatprep.mubr.f32.mxu0 0.0
        %1732 = vmatmul.mubr.f32.gmra.mrb[0].mxu0 %v1386
        %v1733 = vpop.f32.mrb[0].mxu0
        %v1734 = vadd.f32 %v1247, %v1733
        %v1735 = vpop.f32.mrb[0].mxu0
        %1736 = vmatprep.mubr.f32.mxu0 0.0
        %1737 = vmatmul.mubr.f32.gmra.mrb[0].mxu0 %v1389
        %v1738 = vpop.f32.mrb[0].mxu0
        %v1739 = vadd.f32 %v1247, %v1738
        %v1740 = vpop.f32.mrb[0].mxu0
        %1741 = vmatprep.mubr.f32.mxu0 0.0
        %1742 = vmatmul.mubr.f32.gmra.mrb[0].mxu0 %v1392
        %v1743 = vpop.f32.mrb[0].mxu0
        %v1744 = vadd.f32 %v1247, %v1743
        %v1745 = vpop.f32.mrb[0].mxu0
        %1746 = vmatprep.mubr.f32.mxu0 0.0
        %1747 = vmatmul.mubr.f32.gmra.mrb[0].mxu0 %v1395
        %v1748 = vpop.f32.mrb[0].mxu0
        %v1749 = vadd.f32 %v1247, %v1748
        %v1750 = vpop.f32.mrb[0].mxu0
        %1751 = vmatprep.mubr.f32.mxu0 0.0
        %1752 = vmatmul.mubr.f32.gmra.mrb[0].mxu0 %v1398
        %v1753 = vpop.f32.mrb[0].mxu0
        %v1754 = vadd.f32 %v1247, %v1753
        %v1755 = vpop.f32.mrb[0].mxu0
        %1756 = vmatprep.mubr.f32.mxu0 0.0
        %1757 = vmatmul.mubr.f32.gmra.mrb[0].mxu0 %v1401
        %v1758 = vpop.f32.mrb[0].mxu0
        %v1759 = vadd.f32 %v1247, %v1758
        %v1760 = vpop.f32.mrb[0].mxu0
        %1761 = vmatprep.mubr.f32.mxu0 0.0
        %1762 = vmatmul.mubr.f32.gmra.mrb[0].mxu0 %v1404
        %v1763 = vpop.f32.mrb[0].mxu0
        %v1764 = vadd.f32 %v1247, %v1763
        %v1765 = vpop.f32.mrb[0].mxu0
        %1766 = vmatprep.mubr.f32.mxu0 0.0
        %1767 = vmatmul.mubr.f32.gmra.mrb[0].mxu0 %v1407
        %v1768 = vpop.f32.mrb[0].mxu0
        %v1769 = vadd.f32 %v1247, %v1768
        %v1770 = vpop.f32.mrb[0].mxu0
        %1771 = vmatprep.mubr.f32.mxu0 0.0
        %1772 = vmatmul.mubr.f32.gmra.mrb[0].mxu0 %v1410
        %v1773 = vpop.f32.mrb[0].mxu0
        %v1774 = vadd.f32 %v1247, %v1773
        %v1775 = vpop.f32.mrb[0].mxu0
        %1776 = vmatprep.mubr.f32.mxu0 0.0
        %1777 = vmatmul.mubr.f32.gmra.mrb[0].mxu0 %v1413
        %v1778 = vpop.f32.mrb[0].mxu0
        %v1779 = vadd.f32 %v1247, %v1778
        %v1780 = vpop.f32.mrb[0].mxu0
        %1781 = vmatprep.mubr.f32.mxu0 0.0
        %1782 = vmatmul.mubr.f32.gmra.mrb[0].mxu0 %v1416
        %v1783 = vpop.f32.mrb[0].mxu0
        %v1784 = vadd.f32 %v1247, %v1783
        %v1785 = vpop.f32.mrb[0].mxu0
        %1786 = vmatprep.mubr.f32.mxu0 0.0
        %1787 = vmatmul.mubr.f32.gmra.mrb[0].mxu0 %v1419
        %v1788 = vpop.f32.mrb[0].mxu0
        %v1789 = vadd.f32 %v1247, %v1788
        %v1790 = vpop.f32.mrb[0].mxu0
        %1791 = vmatprep.mubr.f32.mxu0 0.0
        %1792 = vmatmul.mubr.f32.gmra.mrb[0].mxu0 %v1422
        %v1793 = vpop.f32.mrb[0].mxu0
        %v1794 = vadd.f32 %v1247, %v1793
        %v1795 = vpop.f32.mrb[0].mxu0
        %1796 = vmatprep.mubr.f32.mxu0 0.0
        %1797 = vmatmul.mubr.f32.gmra.mrb[0].mxu0 %v1425
        %v1798 = vpop.f32.mrb[0].mxu0
        %v1799 = vadd.f32 %v1247, %v1798
        %v1800 = vpop.f32.mrb[0].mxu0
        %1801 = vmatprep.mubr.f32.mxu0 0.0
        %1802 = vmatmul.mubr.f32.gmra.mrb[0].mxu0 %v1428
        %v1803 = vpop.f32.mrb[0].mxu0
        %v1804 = vadd.f32 %v1247, %v1803
        %v1805 = vpop.f32.mrb[0].mxu0
        %1806 = vmatprep.mubr.f32.mxu0 0.0
        %1807 = vmatmul.mubr.f32.gmra.mrb[0].mxu0 %v1431
        %v1808 = vpop.f32.mrb[0].mxu0
        %v1809 = vadd.f32 %v1247, %v1808
        %v1810 = vpop.f32.mrb[0].mxu0
        %1811 = vmatprep.mubr.f32.mxu0 0.0
        %1812 = vmatmul.mubr.f32.gmra.mrb[0].mxu0 %v1434
        %v1813 = vpop.f32.mrb[0].mxu0
        %v1814 = vadd.f32 %v1247, %v1813
        %v1815 = vpop.f32.mrb[0].mxu0
        %1816 = vmatprep.mubr.f32.mxu0 0.0
        %1817 = vmatmul.mubr.f32.gmra.mrb[0].mxu0 %v1437
        %v1818 = vpop.f32.mrb[0].mxu0
        %v1819 = vadd.f32 %v1247, %v1818
        %v1820 = vpop.f32.mrb[0].mxu0
        %1821 = vmatprep.mubr.f32.mxu0 0.0
        %1822 = vmatmul.mubr.f32.gmra.mrb[0].mxu0 %v1440
        %v1823 = vpop.f32.mrb[0].mxu0
        %v1824 = vadd.f32 %v1247, %v1823
        %v1825 = vpop.f32.mrb[0].mxu0
        %1826 = vdwg.mxu0
        %v1827 = vmax.f32 %v1509, 0.0
        %v1828 = vmax.f32 %v1514, 0.0
        %v1829 = vmax.f32 %v1519, 0.0
        %v1830 = vmax.f32 %v1524, 0.0
        %v1831 = vmax.f32 %v1529, 0.0
        %v1832 = vmax.f32 %v1534, 0.0
        %v1833 = vmax.f32 %v1539, 0.0
        %v1834 = vmax.f32 %v1544, 0.0
        %v1835 = vmax.f32 %v1549, 0.0
        %v1836 = vmax.f32 %v1554, 0.0
        %v1837 = vmax.f32 %v1559, 0.0
        %v1838 = vmax.f32 %v1564, 0.0
        %v1839 = vmax.f32 %v1569, 0.0
        %v1840 = vmax.f32 %v1574, 0.0
        %v1841 = vmax.f32 %v1579, 0.0
        %v1842 = vmax.f32 %v1584, 0.0
        %v1843 = vmax.f32 %v1589, 0.0
        %v1844 = vmax.f32 %v1594, 0.0
        %v1845 = vmax.f32 %v1599, 0.0
        %v1846 = vmax.f32 %v1604, 0.0
        %v1847 = vmax.f32 %v1609, 0.0
        %v1848 = vmax.f32 %v1614, 0.0
        %v1849 = vmax.f32 %v1619, 0.0
        %v1850 = vmax.f32 %v1624, 0.0
        %v1851 = vmax.f32 %v1629, 0.0
        %v1852 = vmax.f32 %v1634, 0.0
        %v1853 = vmax.f32 %v1639, 0.0
        %v1854 = vmax.f32 %v1644, 0.0
        %v1855 = vmax.f32 %v1649, 0.0
        %v1856 = vmax.f32 %v1654, 0.0
        %v1857 = vmax.f32 %v1659, 0.0
        %v1858 = vmax.f32 %v1664, 0.0
        %v1859 = vmax.f32 %v1669, 0.0
        %v1860 = vmax.f32 %v1674, 0.0
        %v1861 = vmax.f32 %v1679, 0.0
        %v1862 = vmax.f32 %v1684, 0.0
        %v1863 = vmax.f32 %v1689, 0.0
        %v1864 = vmax.f32 %v1694, 0.0
        %v1865 = vmax.f32 %v1699, 0.0
        %v1866 = vmax.f32 %v1704, 0.0
        %v1867 = vmax.f32 %v1709, 0.0
        %v1868 = vmax.f32 %v1714, 0.0
        %v1869 = vmax.f32 %v1719, 0.0
        %v1870 = vmax.f32 %v1724, 0.0
        %v1871 = vmax.f32 %v1729, 0.0
        %v1872 = vmax.f32 %v1734, 0.0
        %v1873 = vmax.f32 %v1739, 0.0
        %v1874 = vmax.f32 %v1744, 0.0
        %v1875 = vmax.f32 %v1749, 0.0
        %v1876 = vmax.f32 %v1754, 0.0
        %v1877 = vmax.f32 %v1759, 0.0
        %v1878 = vmax.f32 %v1764, 0.0
        %v1879 = vmax.f32 %v1769, 0.0
        %v1880 = vmax.f32 %v1774, 0.0
        %v1881 = vmax.f32 %v1779, 0.0
        %v1882 = vmax.f32 %v1784, 0.0
        %v1883 = vmax.f32 %v1789, 0.0
        %v1884 = vmax.f32 %v1794, 0.0
        %v1885 = vmax.f32 %v1799, 0.0
        %v1886 = vmax.f32 %v1804, 0.0
        %v1887 = vmax.f32 %v1809, 0.0
        %v1888 = vmax.f32 %v1814, 0.0
        %v1889 = vmax.f32 %v1819, 0.0
        %v1890 = vmax.f32 %v1824, 0.0
        %v1891 = vld [vmem:[%s8] sm:$0xff]
        %v1892 = vld [vmem:[%s8 + $0x8] sm:$0xff]
        %v1893 = vld [vmem:[%s8 + $0x10] sm:$0xff]
        %v1894 = vld [vmem:[%s8 + $0x18] sm:$0xff]
        %v1895 = vld [vmem:[%s8 + $0x20] sm:$0xff]
        %v1896 = vld [vmem:[%s8 + $0x28] sm:$0xff]
        %v1897 = vld [vmem:[%s8 + $0x30] sm:$0xff]
        %v1898 = vld [vmem:[%s8 + $0x38] sm:$0xff]
        %v1899 = vld [vmem:[%s9] sm:$0xff]
        %v1900 = vld [vmem:[%s9 + $0x8] sm:$0xff]
        %v1901 = vld [vmem:[%s9 + $0x10] sm:$0xff]
        %v1902 = vld [vmem:[%s9 + $0x18] sm:$0xff]
        %v1903 = vld [vmem:[%s9 + $0x20] sm:$0xff]
        %v1904 = vld [vmem:[%s9 + $0x28] sm:$0xff]
        %v1905 = vld [vmem:[%s9 + $0x30] sm:$0xff]
        %v1906 = vld [vmem:[%s9 + $0x38] sm:$0xff]
        %v1907 = vand.u32 2147483647, %v1899
        %v1908 = vand.u32 2147483647, %v1900
        %v1909 = vand.u32 2147483647, %v1901
        %v1910 = vand.u32 2147483647, %v1902
        %v1911 = vand.u32 2147483647, %v1903
        %v1912 = vand.u32 2147483647, %v1904
        %v1913 = vand.u32 2147483647, %v1905
        %v1914 = vand.u32 2147483647, %v1906
        %s1915 = sld [smem:[#allocation2 + $0x2]]
        %v1916 = vstv %s1915
        %vm1917 = vcmp.ge.f32.partialorder %v1907, %v1916
        %vm1918 = vcmp.ge.f32.partialorder %v1908, %v1916
        %vm1919 = vcmp.ge.f32.partialorder %v1909, %v1916
        %vm1920 = vcmp.ge.f32.partialorder %v1910, %v1916
        %vm1921 = vcmp.ge.f32.partialorder %v1911, %v1916
        %vm1922 = vcmp.ge.f32.partialorder %v1912, %v1916
        %vm1923 = vcmp.ge.f32.partialorder %v1913, %v1916
        %vm1924 = vcmp.ge.f32.partialorder %v1914, %v1916
        %v1925 = vsel %vm1917, 1, 0
        %v1926 = vsel %vm1918, 1, 0
        %v1927 = vsel %vm1919, 1, 0
        %v1928 = vsel %vm1920, 1, 0
        %v1929 = vsel %vm1921, 1, 0
        %v1930 = vsel %vm1922, 1, 0
        %v1931 = vsel %vm1923, 1, 0
        %v1932 = vsel %vm1924, 1, 0
        %v1933 = vcvt.s32.f32 %v1925
        %v1934 = vcvt.s32.f32 %v1926
        %v1935 = vcvt.s32.f32 %v1927
        %v1936 = vcvt.s32.f32 %v1928
        %v1937 = vcvt.s32.f32 %v1929
        %v1938 = vcvt.s32.f32 %v1930
        %v1939 = vcvt.s32.f32 %v1931
        %v1940 = vcvt.s32.f32 %v1932
        %v1941 = vmul.f32 %v1891, %v1933
        %v1942 = vmul.f32 %v1892, %v1934
        %v1943 = vmul.f32 %v1893, %v1935
        %v1944 = vmul.f32 %v1894, %v1936
        %v1945 = vmul.f32 %v1895, %v1937
        %v1946 = vmul.f32 %v1896, %v1938
        %v1947 = vmul.f32 %v1897, %v1939
        %v1948 = vmul.f32 %v1898, %v1940
        %v1949 = vld [vmem:[%s10] sm:$0x1]
        %v1951 = vlaneseq
        %v1952 = vshrl.u32 %v1951, 7
        %v1953 = vsub.s32 0, %v1952
        %v1954 = vrot.slane %v1949, %v1953
        %vm1956 = vcmask 523264
        %v1958 = vsel %vm1956, %v1827, 0
        %v1961 = vsel %vm1956, %v1828, 0
        %v1964 = vsel %vm1956, %v1829, 0
        %v1967 = vsel %vm1956, %v1830, 0
        %v1970 = vsel %vm1956, %v1831, 0
        %v1973 = vsel %vm1956, %v1832, 0
        %v1976 = vsel %vm1956, %v1833, 0
        %v1979 = vsel %vm1956, %v1834, 0
        %v1982 = vsel %vm1956, %v1835, 0
        %v1985 = vsel %vm1956, %v1836, 0
        %v1988 = vsel %vm1956, %v1837, 0
        %v1991 = vsel %vm1956, %v1838, 0
        %v1994 = vsel %vm1956, %v1839, 0
        %v1997 = vsel %vm1956, %v1840, 0
        %v2000 = vsel %vm1956, %v1841, 0
        %v2003 = vsel %vm1956, %v1842, 0
        %v2006 = vsel %vm1956, %v1843, 0
        %v2009 = vsel %vm1956, %v1844, 0
        %v2012 = vsel %vm1956, %v1845, 0
        %v2015 = vsel %vm1956, %v1846, 0
        %v2018 = vsel %vm1956, %v1847, 0
        %v2021 = vsel %vm1956, %v1848, 0
        %v2024 = vsel %vm1956, %v1849, 0
        %v2027 = vsel %vm1956, %v1850, 0
        %v2030 = vsel %vm1956, %v1851, 0
        %v2033 = vsel %vm1956, %v1852, 0
        %v2036 = vsel %vm1956, %v1853, 0
        %v2039 = vsel %vm1956, %v1854, 0
        %v2042 = vsel %vm1956, %v1855, 0
        %v2045 = vsel %vm1956, %v1856, 0
        %v2048 = vsel %vm1956, %v1857, 0
        %v2051 = vsel %vm1956, %v1858, 0
        %v2054 = vsel %vm1956, %v1859, 0
        %v2057 = vsel %vm1956, %v1860, 0
        %v2060 = vsel %vm1956, %v1861, 0
        %v2063 = vsel %vm1956, %v1862, 0
        %v2066 = vsel %vm1956, %v1863, 0
        %v2069 = vsel %vm1956, %v1864, 0
        %v2072 = vsel %vm1956, %v1865, 0
        %v2075 = vsel %vm1956, %v1866, 0
        %v2078 = vsel %vm1956, %v1867, 0
        %v2081 = vsel %vm1956, %v1868, 0
        %v2084 = vsel %vm1956, %v1869, 0
        %v2087 = vsel %vm1956, %v1870, 0
        %v2090 = vsel %vm1956, %v1871, 0
        %v2093 = vsel %vm1956, %v1872, 0
        %v2096 = vsel %vm1956, %v1873, 0
        %v2099 = vsel %vm1956, %v1874, 0
        %v2102 = vsel %vm1956, %v1875, 0
        %v2105 = vsel %vm1956, %v1876, 0
        %v2108 = vsel %vm1956, %v1877, 0
        %v2111 = vsel %vm1956, %v1878, 0
        %v2114 = vsel %vm1956, %v1879, 0
        %v2117 = vsel %vm1956, %v1880, 0
        %v2120 = vsel %vm1956, %v1881, 0
        %v2123 = vsel %vm1956, %v1882, 0
        %v2126 = vsel %vm1956, %v1883, 0
        %v2129 = vsel %vm1956, %v1884, 0
        %v2132 = vsel %vm1956, %v1885, 0
        %v2135 = vsel %vm1956, %v1886, 0
        %v2138 = vsel %vm1956, %v1887, 0
        %v2141 = vsel %vm1956, %v1888, 0
        %v2144 = vsel %vm1956, %v1889, 0
        %v2147 = vsel %vm1956, %v1890, 0
        %2149 = vmatprep.subr.mxu0 0.0
        %2150 = vmatpush1.msra.mxu0 %v1941
        %2151 = vmatprep.subr.mxu0 0.0
        %2152 = vmatpush1.msra.mxu0 %v1942
        %2153 = vmatprep.subr.mxu0 0.0
        %2154 = vmatpush1.msra.mxu0 %v1943
        %2155 = vmatprep.subr.mxu0 0.0
        %2156 = vmatpush1.msra.mxu0 %v1944
        %2157 = vmatprep.subr.mxu0 0.0
        %2158 = vmatpush1.msra.mxu0 %v1945
        %2159 = vmatprep.subr.mxu0 0.0
        %2160 = vmatpush1.msra.mxu0 %v1946
        %2161 = vmatprep.subr.mxu0 0.0
        %2162 = vmatpush1.msra.mxu0 %v1947
        %2163 = vmatprep.subr.mxu0 0.0
        %2164 = vmatpush1.msra.mxu0 %v1948
        %2165 = vmatprep.subr.mxu0 0.0
        %2166 = vmatpush1.msra.mxu0 0.0
        %2167 = vmatprep.subr.mxu0 0.0
        %2168 = vmatpush1.msra.mxu0 0.0
        %2169 = vmatprep.subr.mxu0 0.0
        %2170 = vmatpush1.msra.mxu0 0.0
        %2171 = vmatprep.subr.mxu0 0.0
        %2172 = vmatpush1.msra.mxu0 0.0
        %2173 = vmatprep.subr.mxu0 0.0
        %2174 = vmatpush1.msra.mxu0 0.0
        %2175 = vmatprep.subr.mxu0 0.0
        %2176 = vmatpush1.msra.mxu0 0.0
        %2177 = vmatprep.subr.mxu0 0.0
        %2178 = vmatpush1.msra.mxu0 0.0
        %2179 = vmatprep.subr.mxu0 0.0
        %2180 = vmatpush1.msra.mxu0 0.0
        %2181 = vmatprep.subr.mxu0 0.0
        %2182 = vmatpush1.msra.mxu0 0.0
        %2183 = vmatprep.subr.mxu0 0.0
        %2184 = vmatpush1.msra.mxu0 0.0
        %2185 = vmatprep.subr.mxu0 0.0
        %2186 = vmatpush1.msra.mxu0 0.0
        %2187 = vmatprep.subr.mxu0 0.0
        %2188 = vmatpush1.msra.mxu0 0.0
        %2189 = vmatprep.subr.mxu0 0.0
        %2190 = vmatpush1.msra.mxu0 0.0
        %2191 = vmatprep.subr.mxu0 0.0
        %2192 = vmatpush1.msra.mxu0 0.0
        %2193 = vmatprep.subr.mxu0 0.0
        %2194 = vmatpush1.msra.mxu0 0.0
        %2195 = vmatprep.subr.mxu0 0.0
        %2196 = vmatpush1.msra.mxu0 0.0
        %2197 = vmatprep.subr.mxu0 0.0
        %2198 = vmatpush1.msra.mxu0 0.0
        %2199 = vmatprep.subr.mxu0 0.0
        %2200 = vmatpush1.msra.mxu0 0.0
        %2201 = vmatprep.subr.mxu0 0.0
        %2202 = vmatpush1.msra.mxu0 0.0
        %2203 = vmatprep.subr.mxu0 0.0
        %2204 = vmatpush1.msra.mxu0 0.0
        %2205 = vmatprep.subr.mxu0 0.0
        %2206 = vmatpush1.msra.mxu0 0.0
        %2207 = vmatprep.subr.mxu0 0.0
        %2208 = vmatpush1.msra.mxu0 0.0
        %2209 = vmatprep.subr.mxu0 0.0
        %2210 = vmatpush1.msra.mxu0 0.0
        %2211 = vmatprep.subr.mxu0 0.0
        %2212 = vmatpush1.msra.mxu0 0.0
        %2213 = vmatprep.mubr.f32.mxu0 0.0
        %2214 = vmatmul.mubr.f32.gmra.mrb[0].mxu0 %v1958
        %v2215 = vpop.f32.mrb[0].mxu0
        %v2216 = vadd.f32 %v1954, %v2215
        %v2217 = vpop.f32.mrb[0].mxu0
        %2218 = vmatprep.mubr.f32.mxu0 0.0
        %2219 = vmatmul.mubr.f32.gmra.mrb[0].mxu0 %v1961
        %v2220 = vpop.f32.mrb[0].mxu0
        %v2221 = vadd.f32 %v1954, %v2220
        %v2222 = vpop.f32.mrb[0].mxu0
        %2223 = vmatprep.mubr.f32.mxu0 0.0
        %2224 = vmatmul.mubr.f32.gmra.mrb[0].mxu0 %v1964
        %v2225 = vpop.f32.mrb[0].mxu0
        %v2226 = vadd.f32 %v1954, %v2225
        %v2227 = vpop.f32.mrb[0].mxu0
        %2228 = vmatprep.mubr.f32.mxu0 0.0
        %2229 = vmatmul.mubr.f32.gmra.mrb[0].mxu0 %v1967
        %v2230 = vpop.f32.mrb[0].mxu0
        %v2231 = vadd.f32 %v1954, %v2230
        %v2232 = vpop.f32.mrb[0].mxu0
        %2233 = vmatprep.mubr.f32.mxu0 0.0
        %2234 = vmatmul.mubr.f32.gmra.mrb[0].mxu0 %v1970
        %v2235 = vpop.f32.mrb[0].mxu0
        %v2236 = vadd.f32 %v1954, %v2235
        %v2237 = vpop.f32.mrb[0].mxu0
        %2238 = vmatprep.mubr.f32.mxu0 0.0
        %2239 = vmatmul.mubr.f32.gmra.mrb[0].mxu0 %v1973
        %v2240 = vpop.f32.mrb[0].mxu0
        %v2241 = vadd.f32 %v1954, %v2240
        %v2242 = vpop.f32.mrb[0].mxu0
        %2243 = vmatprep.mubr.f32.mxu0 0.0
        %2244 = vmatmul.mubr.f32.gmra.mrb[0].mxu0 %v1976
        %v2245 = vpop.f32.mrb[0].mxu0
        %v2246 = vadd.f32 %v1954, %v2245
        %v2247 = vpop.f32.mrb[0].mxu0
        %2248 = vmatprep.mubr.f32.mxu0 0.0
        %2249 = vmatmul.mubr.f32.gmra.mrb[0].mxu0 %v1979
        %v2250 = vpop.f32.mrb[0].mxu0
        %v2251 = vadd.f32 %v1954, %v2250
        %v2252 = vpop.f32.mrb[0].mxu0
        %2253 = vmatprep.mubr.f32.mxu0 0.0
        %2254 = vmatmul.mubr.f32.gmra.mrb[0].mxu0 %v1982
        %v2255 = vpop.f32.mrb[0].mxu0
        %v2256 = vadd.f32 %v1954, %v2255
        %v2257 = vpop.f32.mrb[0].mxu0
        %2258 = vmatprep.mubr.f32.mxu0 0.0
        %2259 = vmatmul.mubr.f32.gmra.mrb[0].mxu0 %v1985
        %v2260 = vpop.f32.mrb[0].mxu0
        %v2261 = vadd.f32 %v1954, %v2260
        %v2262 = vpop.f32.mrb[0].mxu0
        %2263 = vmatprep.mubr.f32.mxu0 0.0
        %2264 = vmatmul.mubr.f32.gmra.mrb[0].mxu0 %v1988
        %v2265 = vpop.f32.mrb[0].mxu0
        %v2266 = vadd.f32 %v1954, %v2265
        %v2267 = vpop.f32.mrb[0].mxu0
        %2268 = vmatprep.mubr.f32.mxu0 0.0
        %2269 = vmatmul.mubr.f32.gmra.mrb[0].mxu0 %v1991
        %v2270 = vpop.f32.mrb[0].mxu0
        %v2271 = vadd.f32 %v1954, %v2270
        %v2272 = vpop.f32.mrb[0].mxu0
        %2273 = vmatprep.mubr.f32.mxu0 0.0
        %2274 = vmatmul.mubr.f32.gmra.mrb[0].mxu0 %v1994
        %v2275 = vpop.f32.mrb[0].mxu0
        %v2276 = vadd.f32 %v1954, %v2275
        %v2277 = vpop.f32.mrb[0].mxu0
        %2278 = vmatprep.mubr.f32.mxu0 0.0
        %2279 = vmatmul.mubr.f32.gmra.mrb[0].mxu0 %v1997
        %v2280 = vpop.f32.mrb[0].mxu0
        %v2281 = vadd.f32 %v1954, %v2280
        %v2282 = vpop.f32.mrb[0].mxu0
        %2283 = vmatprep.mubr.f32.mxu0 0.0
        %2284 = vmatmul.mubr.f32.gmra.mrb[0].mxu0 %v2000
        %v2285 = vpop.f32.mrb[0].mxu0
        %v2286 = vadd.f32 %v1954, %v2285
        %v2287 = vpop.f32.mrb[0].mxu0
        %2288 = vmatprep.mubr.f32.mxu0 0.0
        %2289 = vmatmul.mubr.f32.gmra.mrb[0].mxu0 %v2003
        %v2290 = vpop.f32.mrb[0].mxu0
        %v2291 = vadd.f32 %v1954, %v2290
        %v2292 = vpop.f32.mrb[0].mxu0
        %2293 = vmatprep.mubr.f32.mxu0 0.0
        %2294 = vmatmul.mubr.f32.gmra.mrb[0].mxu0 %v2006
        %v2295 = vpop.f32.mrb[0].mxu0
        %v2296 = vadd.f32 %v1954, %v2295
        %v2297 = vpop.f32.mrb[0].mxu0
        %2298 = vmatprep.mubr.f32.mxu0 0.0
        %2299 = vmatmul.mubr.f32.gmra.mrb[0].mxu0 %v2009
        %v2300 = vpop.f32.mrb[0].mxu0
        %v2301 = vadd.f32 %v1954, %v2300
        %v2302 = vpop.f32.mrb[0].mxu0
        %2303 = vmatprep.mubr.f32.mxu0 0.0
        %2304 = vmatmul.mubr.f32.gmra.mrb[0].mxu0 %v2012
        %v2305 = vpop.f32.mrb[0].mxu0
        %v2306 = vadd.f32 %v1954, %v2305
        %v2307 = vpop.f32.mrb[0].mxu0
        %2308 = vmatprep.mubr.f32.mxu0 0.0
        %2309 = vmatmul.mubr.f32.gmra.mrb[0].mxu0 %v2015
        %v2310 = vpop.f32.mrb[0].mxu0
        %v2311 = vadd.f32 %v1954, %v2310
        %v2312 = vpop.f32.mrb[0].mxu0
        %2313 = vmatprep.mubr.f32.mxu0 0.0
        %2314 = vmatmul.mubr.f32.gmra.mrb[0].mxu0 %v2018
        %v2315 = vpop.f32.mrb[0].mxu0
        %v2316 = vadd.f32 %v1954, %v2315
        %v2317 = vpop.f32.mrb[0].mxu0
        %2318 = vmatprep.mubr.f32.mxu0 0.0
        %2319 = vmatmul.mubr.f32.gmra.mrb[0].mxu0 %v2021
        %v2320 = vpop.f32.mrb[0].mxu0
        %v2321 = vadd.f32 %v1954, %v2320
        %v2322 = vpop.f32.mrb[0].mxu0
        %2323 = vmatprep.mubr.f32.mxu0 0.0
        %2324 = vmatmul.mubr.f32.gmra.mrb[0].mxu0 %v2024
        %v2325 = vpop.f32.mrb[0].mxu0
        %v2326 = vadd.f32 %v1954, %v2325
        %v2327 = vpop.f32.mrb[0].mxu0
        %2328 = vmatprep.mubr.f32.mxu0 0.0
        %2329 = vmatmul.mubr.f32.gmra.mrb[0].mxu0 %v2027
        %v2330 = vpop.f32.mrb[0].mxu0
        %v2331 = vadd.f32 %v1954, %v2330
        %v2332 = vpop.f32.mrb[0].mxu0
        %2333 = vmatprep.mubr.f32.mxu0 0.0
        %2334 = vmatmul.mubr.f32.gmra.mrb[0].mxu0 %v2030
        %v2335 = vpop.f32.mrb[0].mxu0
        %v2336 = vadd.f32 %v1954, %v2335
        %v2337 = vpop.f32.mrb[0].mxu0
        %2338 = vmatprep.mubr.f32.mxu0 0.0
        %2339 = vmatmul.mubr.f32.gmra.mrb[0].mxu0 %v2033
        %v2340 = vpop.f32.mrb[0].mxu0
        %v2341 = vadd.f32 %v1954, %v2340
        %v2342 = vpop.f32.mrb[0].mxu0
        %2343 = vmatprep.mubr.f32.mxu0 0.0
        %2344 = vmatmul.mubr.f32.gmra.mrb[0].mxu0 %v2036
        %v2345 = vpop.f32.mrb[0].mxu0
        %v2346 = vadd.f32 %v1954, %v2345
        %v2347 = vpop.f32.mrb[0].mxu0
        %2348 = vmatprep.mubr.f32.mxu0 0.0
        %2349 = vmatmul.mubr.f32.gmra.mrb[0].mxu0 %v2039
        %v2350 = vpop.f32.mrb[0].mxu0
        %v2351 = vadd.f32 %v1954, %v2350
        %v2352 = vpop.f32.mrb[0].mxu0
        %2353 = vmatprep.mubr.f32.mxu0 0.0
        %2354 = vmatmul.mubr.f32.gmra.mrb[0].mxu0 %v2042
        %v2355 = vpop.f32.mrb[0].mxu0
        %v2356 = vadd.f32 %v1954, %v2355
        %v2357 = vpop.f32.mrb[0].mxu0
        %2358 = vmatprep.mubr.f32.mxu0 0.0
        %2359 = vmatmul.mubr.f32.gmra.mrb[0].mxu0 %v2045
        %v2360 = vpop.f32.mrb[0].mxu0
        %v2361 = vadd.f32 %v1954, %v2360
        %v2362 = vpop.f32.mrb[0].mxu0
        %2363 = vmatprep.mubr.f32.mxu0 0.0
        %2364 = vmatmul.mubr.f32.gmra.mrb[0].mxu0 %v2048
        %v2365 = vpop.f32.mrb[0].mxu0
        %v2366 = vadd.f32 %v1954, %v2365
        %v2367 = vpop.f32.mrb[0].mxu0
        %2368 = vmatprep.mubr.f32.mxu0 0.0
        %2369 = vmatmul.mubr.f32.gmra.mrb[0].mxu0 %v2051
        %v2370 = vpop.f32.mrb[0].mxu0
        %v2371 = vadd.f32 %v1954, %v2370
        %v2372 = vpop.f32.mrb[0].mxu0
        %2373 = vmatprep.mubr.f32.mxu0 0.0
        %2374 = vmatmul.mubr.f32.gmra.mrb[0].mxu0 %v2054
        %v2375 = vpop.f32.mrb[0].mxu0
        %v2376 = vadd.f32 %v1954, %v2375
        %v2377 = vpop.f32.mrb[0].mxu0
        %2378 = vmatprep.mubr.f32.mxu0 0.0
        %2379 = vmatmul.mubr.f32.gmra.mrb[0].mxu0 %v2057
        %v2380 = vpop.f32.mrb[0].mxu0
        %v2381 = vadd.f32 %v1954, %v2380
        %v2382 = vpop.f32.mrb[0].mxu0
        %2383 = vmatprep.mubr.f32.mxu0 0.0
        %2384 = vmatmul.mubr.f32.gmra.mrb[0].mxu0 %v2060
        %v2385 = vpop.f32.mrb[0].mxu0
        %v2386 = vadd.f32 %v1954, %v2385
        %v2387 = vpop.f32.mrb[0].mxu0
        %2388 = vmatprep.mubr.f32.mxu0 0.0
        %2389 = vmatmul.mubr.f32.gmra.mrb[0].mxu0 %v2063
        %v2390 = vpop.f32.mrb[0].mxu0
        %v2391 = vadd.f32 %v1954, %v2390
        %v2392 = vpop.f32.mrb[0].mxu0
        %2393 = vmatprep.mubr.f32.mxu0 0.0
        %2394 = vmatmul.mubr.f32.gmra.mrb[0].mxu0 %v2066
        %v2395 = vpop.f32.mrb[0].mxu0
        %v2396 = vadd.f32 %v1954, %v2395
        %v2397 = vpop.f32.mrb[0].mxu0
        %2398 = vmatprep.mubr.f32.mxu0 0.0
        %2399 = vmatmul.mubr.f32.gmra.mrb[0].mxu0 %v2069
        %v2400 = vpop.f32.mrb[0].mxu0
        %v2401 = vadd.f32 %v1954, %v2400
        %v2402 = vpop.f32.mrb[0].mxu0
        %2403 = vmatprep.mubr.f32.mxu0 0.0
        %2404 = vmatmul.mubr.f32.gmra.mrb[0].mxu0 %v2072
        %v2405 = vpop.f32.mrb[0].mxu0
        %v2406 = vadd.f32 %v1954, %v2405
        %v2407 = vpop.f32.mrb[0].mxu0
        %2408 = vmatprep.mubr.f32.mxu0 0.0
        %2409 = vmatmul.mubr.f32.gmra.mrb[0].mxu0 %v2075
        %v2410 = vpop.f32.mrb[0].mxu0
        %v2411 = vadd.f32 %v1954, %v2410
        %v2412 = vpop.f32.mrb[0].mxu0
        %2413 = vmatprep.mubr.f32.mxu0 0.0
        %2414 = vmatmul.mubr.f32.gmra.mrb[0].mxu0 %v2078
        %v2415 = vpop.f32.mrb[0].mxu0
        %v2416 = vadd.f32 %v1954, %v2415
        %v2417 = vpop.f32.mrb[0].mxu0
        %2418 = vmatprep.mubr.f32.mxu0 0.0
        %2419 = vmatmul.mubr.f32.gmra.mrb[0].mxu0 %v2081
        %v2420 = vpop.f32.mrb[0].mxu0
        %v2421 = vadd.f32 %v1954, %v2420
        %v2422 = vpop.f32.mrb[0].mxu0
        %2423 = vmatprep.mubr.f32.mxu0 0.0
        %2424 = vmatmul.mubr.f32.gmra.mrb[0].mxu0 %v2084
        %v2425 = vpop.f32.mrb[0].mxu0
        %v2426 = vadd.f32 %v1954, %v2425
        %v2427 = vpop.f32.mrb[0].mxu0
        %2428 = vmatprep.mubr.f32.mxu0 0.0
        %2429 = vmatmul.mubr.f32.gmra.mrb[0].mxu0 %v2087
        %v2430 = vpop.f32.mrb[0].mxu0
        %v2431 = vadd.f32 %v1954, %v2430
        %v2432 = vpop.f32.mrb[0].mxu0
        %2433 = vmatprep.mubr.f32.mxu0 0.0
        %2434 = vmatmul.mubr.f32.gmra.mrb[0].mxu0 %v2090
        %v2435 = vpop.f32.mrb[0].mxu0
        %v2436 = vadd.f32 %v1954, %v2435
        %v2437 = vpop.f32.mrb[0].mxu0
        %2438 = vmatprep.mubr.f32.mxu0 0.0
        %2439 = vmatmul.mubr.f32.gmra.mrb[0].mxu0 %v2093
        %v2440 = vpop.f32.mrb[0].mxu0
        %v2441 = vadd.f32 %v1954, %v2440
        %v2442 = vpop.f32.mrb[0].mxu0
        %2443 = vmatprep.mubr.f32.mxu0 0.0
        %2444 = vmatmul.mubr.f32.gmra.mrb[0].mxu0 %v2096
        %v2445 = vpop.f32.mrb[0].mxu0
        %v2446 = vadd.f32 %v1954, %v2445
        %v2447 = vpop.f32.mrb[0].mxu0
        %2448 = vmatprep.mubr.f32.mxu0 0.0
        %2449 = vmatmul.mubr.f32.gmra.mrb[0].mxu0 %v2099
        %v2450 = vpop.f32.mrb[0].mxu0
        %v2451 = vadd.f32 %v1954, %v2450
        %v2452 = vpop.f32.mrb[0].mxu0
        %2453 = vmatprep.mubr.f32.mxu0 0.0
        %2454 = vmatmul.mubr.f32.gmra.mrb[0].mxu0 %v2102
        %v2455 = vpop.f32.mrb[0].mxu0
        %v2456 = vadd.f32 %v1954, %v2455
        %v2457 = vpop.f32.mrb[0].mxu0
        %2458 = vmatprep.mubr.f32.mxu0 0.0
        %2459 = vmatmul.mubr.f32.gmra.mrb[0].mxu0 %v2105
        %v2460 = vpop.f32.mrb[0].mxu0
        %v2461 = vadd.f32 %v1954, %v2460
        %v2462 = vpop.f32.mrb[0].mxu0
        %2463 = vmatprep.mubr.f32.mxu0 0.0
        %2464 = vmatmul.mubr.f32.gmra.mrb[0].mxu0 %v2108
        %v2465 = vpop.f32.mrb[0].mxu0
        %v2466 = vadd.f32 %v1954, %v2465
        %v2467 = vpop.f32.mrb[0].mxu0
        %2468 = vmatprep.mubr.f32.mxu0 0.0
        %2469 = vmatmul.mubr.f32.gmra.mrb[0].mxu0 %v2111
        %v2470 = vpop.f32.mrb[0].mxu0
        %v2471 = vadd.f32 %v1954, %v2470
        %v2472 = vpop.f32.mrb[0].mxu0
        %2473 = vmatprep.mubr.f32.mxu0 0.0
        %2474 = vmatmul.mubr.f32.gmra.mrb[0].mxu0 %v2114
        %v2475 = vpop.f32.mrb[0].mxu0
        %v2476 = vadd.f32 %v1954, %v2475
        %v2477 = vpop.f32.mrb[0].mxu0
        %2478 = vmatprep.mubr.f32.mxu0 0.0
        %2479 = vmatmul.mubr.f32.gmra.mrb[0].mxu0 %v2117
        %v2480 = vpop.f32.mrb[0].mxu0
        %v2481 = vadd.f32 %v1954, %v2480
        %v2482 = vpop.f32.mrb[0].mxu0
        %2483 = vmatprep.mubr.f32.mxu0 0.0
        %2484 = vmatmul.mubr.f32.gmra.mrb[0].mxu0 %v2120
        %v2485 = vpop.f32.mrb[0].mxu0
        %v2486 = vadd.f32 %v1954, %v2485
        %v2487 = vpop.f32.mrb[0].mxu0
        %2488 = vmatprep.mubr.f32.mxu0 0.0
        %2489 = vmatmul.mubr.f32.gmra.mrb[0].mxu0 %v2123
        %v2490 = vpop.f32.mrb[0].mxu0
        %v2491 = vadd.f32 %v1954, %v2490
        %v2492 = vpop.f32.mrb[0].mxu0
        %2493 = vmatprep.mubr.f32.mxu0 0.0
        %2494 = vmatmul.mubr.f32.gmra.mrb[0].mxu0 %v2126
        %v2495 = vpop.f32.mrb[0].mxu0
        %v2496 = vadd.f32 %v1954, %v2495
        %v2497 = vpop.f32.mrb[0].mxu0
        %2498 = vmatprep.mubr.f32.mxu0 0.0
        %2499 = vmatmul.mubr.f32.gmra.mrb[0].mxu0 %v2129
        %v2500 = vpop.f32.mrb[0].mxu0
        %v2501 = vadd.f32 %v1954, %v2500
        %v2502 = vpop.f32.mrb[0].mxu0
        %2503 = vmatprep.mubr.f32.mxu0 0.0
        %2504 = vmatmul.mubr.f32.gmra.mrb[0].mxu0 %v2132
        %v2505 = vpop.f32.mrb[0].mxu0
        %v2506 = vadd.f32 %v1954, %v2505
        %v2507 = vpop.f32.mrb[0].mxu0
        %2508 = vmatprep.mubr.f32.mxu0 0.0
        %2509 = vmatmul.mubr.f32.gmra.mrb[0].mxu0 %v2135
        %v2510 = vpop.f32.mrb[0].mxu0
        %v2511 = vadd.f32 %v1954, %v2510
        %v2512 = vpop.f32.mrb[0].mxu0
        %2513 = vmatprep.mubr.f32.mxu0 0.0
        %2514 = vmatmul.mubr.f32.gmra.mrb[0].mxu0 %v2138
        %v2515 = vpop.f32.mrb[0].mxu0
        %v2516 = vadd.f32 %v1954, %v2515
        %v2517 = vpop.f32.mrb[0].mxu0
        %2518 = vmatprep.mubr.f32.mxu0 0.0
        %2519 = vmatmul.mubr.f32.gmra.mrb[0].mxu0 %v2141
        %v2520 = vpop.f32.mrb[0].mxu0
        %v2521 = vadd.f32 %v1954, %v2520
        %v2522 = vpop.f32.mrb[0].mxu0
        %2523 = vmatprep.mubr.f32.mxu0 0.0
        %2524 = vmatmul.mubr.f32.gmra.mrb[0].mxu0 %v2144
        %v2525 = vpop.f32.mrb[0].mxu0
        %v2526 = vadd.f32 %v1954, %v2525
        %v2527 = vpop.f32.mrb[0].mxu0
        %2528 = vmatprep.mubr.f32.mxu0 0.0
        %2529 = vmatmul.mubr.f32.gmra.mrb[0].mxu0 %v2147
        %v2530 = vpop.f32.mrb[0].mxu0
        %v2531 = vadd.f32 %v1954, %v2530
        %v2532 = vpop.f32.mrb[0].mxu0
        %2533 = vdwg.mxu0
        %v2534 = vmax.f32 %v2216, 0.0
        %v2535 = vmax.f32 %v2221, 0.0
        %v2536 = vmax.f32 %v2226, 0.0
        %v2537 = vmax.f32 %v2231, 0.0
        %v2538 = vmax.f32 %v2236, 0.0
        %v2539 = vmax.f32 %v2241, 0.0
        %v2540 = vmax.f32 %v2246, 0.0
        %v2541 = vmax.f32 %v2251, 0.0
        %v2542 = vmax.f32 %v2256, 0.0
        %v2543 = vmax.f32 %v2261, 0.0
        %v2544 = vmax.f32 %v2266, 0.0
        %v2545 = vmax.f32 %v2271, 0.0
        %v2546 = vmax.f32 %v2276, 0.0
        %v2547 = vmax.f32 %v2281, 0.0
        %v2548 = vmax.f32 %v2286, 0.0
        %v2549 = vmax.f32 %v2291, 0.0
        %v2550 = vmax.f32 %v2296, 0.0
        %v2551 = vmax.f32 %v2301, 0.0
        %v2552 = vmax.f32 %v2306, 0.0
        %v2553 = vmax.f32 %v2311, 0.0
        %v2554 = vmax.f32 %v2316, 0.0
        %v2555 = vmax.f32 %v2321, 0.0
        %v2556 = vmax.f32 %v2326, 0.0
        %v2557 = vmax.f32 %v2331, 0.0
        %v2558 = vmax.f32 %v2336, 0.0
        %v2559 = vmax.f32 %v2341, 0.0
        %v2560 = vmax.f32 %v2346, 0.0
        %v2561 = vmax.f32 %v2351, 0.0
        %v2562 = vmax.f32 %v2356, 0.0
        %v2563 = vmax.f32 %v2361, 0.0
        %v2564 = vmax.f32 %v2366, 0.0
        %v2565 = vmax.f32 %v2371, 0.0
        %v2566 = vmax.f32 %v2376, 0.0
        %v2567 = vmax.f32 %v2381, 0.0
        %v2568 = vmax.f32 %v2386, 0.0
        %v2569 = vmax.f32 %v2391, 0.0
        %v2570 = vmax.f32 %v2396, 0.0
        %v2571 = vmax.f32 %v2401, 0.0
        %v2572 = vmax.f32 %v2406, 0.0
        %v2573 = vmax.f32 %v2411, 0.0
        %v2574 = vmax.f32 %v2416, 0.0
        %v2575 = vmax.f32 %v2421, 0.0
        %v2576 = vmax.f32 %v2426, 0.0
        %v2577 = vmax.f32 %v2431, 0.0
        %v2578 = vmax.f32 %v2436, 0.0
        %v2579 = vmax.f32 %v2441, 0.0
        %v2580 = vmax.f32 %v2446, 0.0
        %v2581 = vmax.f32 %v2451, 0.0
        %v2582 = vmax.f32 %v2456, 0.0
        %v2583 = vmax.f32 %v2461, 0.0
        %v2584 = vmax.f32 %v2466, 0.0
        %v2585 = vmax.f32 %v2471, 0.0
        %v2586 = vmax.f32 %v2476, 0.0
        %v2587 = vmax.f32 %v2481, 0.0
        %v2588 = vmax.f32 %v2486, 0.0
        %v2589 = vmax.f32 %v2491, 0.0
        %v2590 = vmax.f32 %v2496, 0.0
        %v2591 = vmax.f32 %v2501, 0.0
        %v2592 = vmax.f32 %v2506, 0.0
        %v2593 = vmax.f32 %v2511, 0.0
        %v2594 = vmax.f32 %v2516, 0.0
        %v2595 = vmax.f32 %v2521, 0.0
        %v2596 = vmax.f32 %v2526, 0.0
        %v2597 = vmax.f32 %v2531, 0.0
        %v2598 = vld [vmem:[%s11] sm:$0xff]
        %v2599 = vld [vmem:[%s11 + $0x8] sm:$0xff]
        %v2600 = vld [vmem:[%s11 + $0x10] sm:$0xff]
        %v2601 = vld [vmem:[%s11 + $0x18] sm:$0xff]
        %v2602 = vld [vmem:[%s11 + $0x20] sm:$0xff]
        %v2603 = vld [vmem:[%s11 + $0x28] sm:$0xff]
        %v2604 = vld [vmem:[%s11 + $0x30] sm:$0xff]
        %v2605 = vld [vmem:[%s11 + $0x38] sm:$0xff]
        %v2606 = vld [vmem:[%s12] sm:$0xff]
        %v2607 = vld [vmem:[%s12 + $0x8] sm:$0xff]
        %v2608 = vld [vmem:[%s12 + $0x10] sm:$0xff]
        %v2609 = vld [vmem:[%s12 + $0x18] sm:$0xff]
        %v2610 = vld [vmem:[%s12 + $0x20] sm:$0xff]
        %v2611 = vld [vmem:[%s12 + $0x28] sm:$0xff]
        %v2612 = vld [vmem:[%s12 + $0x30] sm:$0xff]
        %v2613 = vld [vmem:[%s12 + $0x38] sm:$0xff]
        %v2614 = vand.u32 2147483647, %v2606
        %v2615 = vand.u32 2147483647, %v2607
        %v2616 = vand.u32 2147483647, %v2608
        %v2617 = vand.u32 2147483647, %v2609
        %v2618 = vand.u32 2147483647, %v2610
        %v2619 = vand.u32 2147483647, %v2611
        %v2620 = vand.u32 2147483647, %v2612
        %v2621 = vand.u32 2147483647, %v2613
        %s2622 = sld [smem:[#allocation2 + $0x3]]
        %v2623 = vstv %s2622
        %vm2624 = vcmp.ge.f32.partialorder %v2614, %v2623
        %vm2625 = vcmp.ge.f32.partialorder %v2615, %v2623
        %vm2626 = vcmp.ge.f32.partialorder %v2616, %v2623
        %vm2627 = vcmp.ge.f32.partialorder %v2617, %v2623
        %vm2628 = vcmp.ge.f32.partialorder %v2618, %v2623
        %vm2629 = vcmp.ge.f32.partialorder %v2619, %v2623
        %vm2630 = vcmp.ge.f32.partialorder %v2620, %v2623
        %vm2631 = vcmp.ge.f32.partialorder %v2621, %v2623
        %v2632 = vsel %vm2624, 1, 0
        %v2633 = vsel %vm2625, 1, 0
        %v2634 = vsel %vm2626, 1, 0
        %v2635 = vsel %vm2627, 1, 0
        %v2636 = vsel %vm2628, 1, 0
        %v2637 = vsel %vm2629, 1, 0
        %v2638 = vsel %vm2630, 1, 0
        %v2639 = vsel %vm2631, 1, 0
        %v2640 = vcvt.s32.f32 %v2632
        %v2641 = vcvt.s32.f32 %v2633
        %v2642 = vcvt.s32.f32 %v2634
        %v2643 = vcvt.s32.f32 %v2635
        %v2644 = vcvt.s32.f32 %v2636
        %v2645 = vcvt.s32.f32 %v2637
        %v2646 = vcvt.s32.f32 %v2638
        %v2647 = vcvt.s32.f32 %v2639
        %v2648 = vmul.f32 %v2598, %v2640
        %v2649 = vmul.f32 %v2599, %v2641
        %v2650 = vmul.f32 %v2600, %v2642
        %v2651 = vmul.f32 %v2601, %v2643
        %v2652 = vmul.f32 %v2602, %v2644
        %v2653 = vmul.f32 %v2603, %v2645
        %v2654 = vmul.f32 %v2604, %v2646
        %v2655 = vmul.f32 %v2605, %v2647
        %v2656 = vld [vmem:[%s13] sm:$0x1]
        %v2658 = vlaneseq
        %v2659 = vshrl.u32 %v2658, 7
        %v2660 = vsub.s32 0, %v2659
        %v2661 = vrot.slane %v2656, %v2660
        %v2664 = vsel %vm1956, %v2534, 0
        %v2667 = vsel %vm1956, %v2535, 0
        %v2670 = vsel %vm1956, %v2536, 0
        %v2673 = vsel %vm1956, %v2537, 0
        %v2676 = vsel %vm1956, %v2538, 0
        %v2679 = vsel %vm1956, %v2539, 0
        %v2682 = vsel %vm1956, %v2540, 0
        %v2685 = vsel %vm1956, %v2541, 0
        %v2688 = vsel %vm1956, %v2542, 0
        %v2691 = vsel %vm1956, %v2543, 0
        %v2694 = vsel %vm1956, %v2544, 0
        %v2697 = vsel %vm1956, %v2545, 0
        %v2700 = vsel %vm1956, %v2546, 0
        %v2703 = vsel %vm1956, %v2547, 0
        %v2706 = vsel %vm1956, %v2548, 0
        %v2709 = vsel %vm1956, %v2549, 0
        %v2712 = vsel %vm1956, %v2550, 0
        %v2715 = vsel %vm1956, %v2551, 0
        %v2718 = vsel %vm1956, %v2552, 0
        %v2721 = vsel %vm1956, %v2553, 0
        %v2724 = vsel %vm1956, %v2554, 0
        %v2727 = vsel %vm1956, %v2555, 0
        %v2730 = vsel %vm1956, %v2556, 0
        %v2733 = vsel %vm1956, %v2557, 0
        %v2736 = vsel %vm1956, %v2558, 0
        %v2739 = vsel %vm1956, %v2559, 0
        %v2742 = vsel %vm1956, %v2560, 0
        %v2745 = vsel %vm1956, %v2561, 0
        %v2748 = vsel %vm1956, %v2562, 0
        %v2751 = vsel %vm1956, %v2563, 0
        %v2754 = vsel %vm1956, %v2564, 0
        %v2757 = vsel %vm1956, %v2565, 0
        %v2760 = vsel %vm1956, %v2566, 0
        %v2763 = vsel %vm1956, %v2567, 0
        %v2766 = vsel %vm1956, %v2568, 0
        %v2769 = vsel %vm1956, %v2569, 0
        %v2772 = vsel %vm1956, %v2570, 0
        %v2775 = vsel %vm1956, %v2571, 0
        %v2778 = vsel %vm1956, %v2572, 0
        %v2781 = vsel %vm1956, %v2573, 0
        %v2784 = vsel %vm1956, %v2574, 0
        %v2787 = vsel %vm1956, %v2575, 0
        %v2790 = vsel %vm1956, %v2576, 0
        %v2793 = vsel %vm1956, %v2577, 0
        %v2796 = vsel %vm1956, %v2578, 0
        %v2799 = vsel %vm1956, %v2579, 0
        %v2802 = vsel %vm1956, %v2580, 0
        %v2805 = vsel %vm1956, %v2581, 0
        %v2808 = vsel %vm1956, %v2582, 0
        %v2811 = vsel %vm1956, %v2583, 0
        %v2814 = vsel %vm1956, %v2584, 0
        %v2817 = vsel %vm1956, %v2585, 0
        %v2820 = vsel %vm1956, %v2586, 0
        %v2823 = vsel %vm1956, %v2587, 0
        %v2826 = vsel %vm1956, %v2588, 0
        %v2829 = vsel %vm1956, %v2589, 0
        %v2832 = vsel %vm1956, %v2590, 0
        %v2835 = vsel %vm1956, %v2591, 0
        %v2838 = vsel %vm1956, %v2592, 0
        %v2841 = vsel %vm1956, %v2593, 0
        %v2844 = vsel %vm1956, %v2594, 0
        %v2847 = vsel %vm1956, %v2595, 0
        %v2850 = vsel %vm1956, %v2596, 0
        %v2853 = vsel %vm1956, %v2597, 0
        %2855 = vmatprep.subr.mxu0 0.0
        %2856 = vmatpush1.msra.mxu0 %v2648
        %2857 = vmatprep.subr.mxu0 0.0
        %2858 = vmatpush1.msra.mxu0 %v2649
        %2859 = vmatprep.subr.mxu0 0.0
        %2860 = vmatpush1.msra.mxu0 %v2650
        %2861 = vmatprep.subr.mxu0 0.0
        %2862 = vmatpush1.msra.mxu0 %v2651
        %2863 = vmatprep.subr.mxu0 0.0
        %2864 = vmatpush1.msra.mxu0 %v2652
        %2865 = vmatprep.subr.mxu0 0.0
        %2866 = vmatpush1.msra.mxu0 %v2653
        %2867 = vmatprep.subr.mxu0 0.0
        %2868 = vmatpush1.msra.mxu0 %v2654
        %2869 = vmatprep.subr.mxu0 0.0
        %2870 = vmatpush1.msra.mxu0 %v2655
        %2871 = vmatprep.subr.mxu0 0.0
        %2872 = vmatpush1.msra.mxu0 0.0
        %2873 = vmatprep.subr.mxu0 0.0
        %2874 = vmatpush1.msra.mxu0 0.0
        %2875 = vmatprep.subr.mxu0 0.0
        %2876 = vmatpush1.msra.mxu0 0.0
        %2877 = vmatprep.subr.mxu0 0.0
        %2878 = vmatpush1.msra.mxu0 0.0
        %2879 = vmatprep.subr.mxu0 0.0
        %2880 = vmatpush1.msra.mxu0 0.0
        %2881 = vmatprep.subr.mxu0 0.0
        %2882 = vmatpush1.msra.mxu0 0.0
        %2883 = vmatprep.subr.mxu0 0.0
        %2884 = vmatpush1.msra.mxu0 0.0
        %2885 = vmatprep.subr.mxu0 0.0
        %2886 = vmatpush1.msra.mxu0 0.0
        %2887 = vmatprep.subr.mxu0 0.0
        %2888 = vmatpush1.msra.mxu0 0.0
        %2889 = vmatprep.subr.mxu0 0.0
        %2890 = vmatpush1.msra.mxu0 0.0
        %2891 = vmatprep.subr.mxu0 0.0
        %2892 = vmatpush1.msra.mxu0 0.0
        %2893 = vmatprep.subr.mxu0 0.0
        %2894 = vmatpush1.msra.mxu0 0.0
        %2895 = vmatprep.subr.mxu0 0.0
        %2896 = vmatpush1.msra.mxu0 0.0
        %2897 = vmatprep.subr.mxu0 0.0
        %2898 = vmatpush1.msra.mxu0 0.0
        %2899 = vmatprep.subr.mxu0 0.0
        %2900 = vmatpush1.msra.mxu0 0.0
        %2901 = vmatprep.subr.mxu0 0.0
        %2902 = vmatpush1.msra.mxu0 0.0
        %2903 = vmatprep.subr.mxu0 0.0
        %2904 = vmatpush1.msra.mxu0 0.0
        %2905 = vmatprep.subr.mxu0 0.0
        %2906 = vmatpush1.msra.mxu0 0.0
        %2907 = vmatprep.subr.mxu0 0.0
        %2908 = vmatpush1.msra.mxu0 0.0
        %2909 = vmatprep.subr.mxu0 0.0
        %2910 = vmatpush1.msra.mxu0 0.0
        %2911 = vmatprep.subr.mxu0 0.0
        %2912 = vmatpush1.msra.mxu0 0.0
        %2913 = vmatprep.subr.mxu0 0.0
        %2914 = vmatpush1.msra.mxu0 0.0
        %2915 = vmatprep.subr.mxu0 0.0
        %2916 = vmatpush1.msra.mxu0 0.0
        %2917 = vmatprep.subr.mxu0 0.0
        %2918 = vmatpush1.msra.mxu0 0.0
        %2919 = vmatprep.mubr.f32.mxu0 0.0
        %2920 = vmatmul.mubr.f32.gmra.mrb[0].mxu0 %v2664
        %v2921 = vpop.f32.mrb[0].mxu0
        %v2922 = vadd.f32 %v2661, %v2921
        %v2923 = vpop.f32.mrb[0].mxu0
        %2924 = vmatprep.mubr.f32.mxu0 0.0
        %2925 = vmatmul.mubr.f32.gmra.mrb[0].mxu0 %v2667
        %v2926 = vpop.f32.mrb[0].mxu0
        %v2927 = vadd.f32 %v2661, %v2926
        %v2928 = vpop.f32.mrb[0].mxu0
        %2929 = vmatprep.mubr.f32.mxu0 0.0
        %2930 = vmatmul.mubr.f32.gmra.mrb[0].mxu0 %v2670
        %v2931 = vpop.f32.mrb[0].mxu0
        %v2932 = vadd.f32 %v2661, %v2931
        %v2933 = vpop.f32.mrb[0].mxu0
        %2934 = vmatprep.mubr.f32.mxu0 0.0
        %2935 = vmatmul.mubr.f32.gmra.mrb[0].mxu0 %v2673
        %v2936 = vpop.f32.mrb[0].mxu0
        %v2937 = vadd.f32 %v2661, %v2936
        %v2938 = vpop.f32.mrb[0].mxu0
        %2939 = vmatprep.mubr.f32.mxu0 0.0
        %2940 = vmatmul.mubr.f32.gmra.mrb[0].mxu0 %v2676
        %v2941 = vpop.f32.mrb[0].mxu0
        %v2942 = vadd.f32 %v2661, %v2941
        %v2943 = vpop.f32.mrb[0].mxu0
        %2944 = vmatprep.mubr.f32.mxu0 0.0
        %2945 = vmatmul.mubr.f32.gmra.mrb[0].mxu0 %v2679
        %v2946 = vpop.f32.mrb[0].mxu0
        %v2947 = vadd.f32 %v2661, %v2946
        %v2948 = vpop.f32.mrb[0].mxu0
        %2949 = vmatprep.mubr.f32.mxu0 0.0
        %2950 = vmatmul.mubr.f32.gmra.mrb[0].mxu0 %v2682
        %v2951 = vpop.f32.mrb[0].mxu0
        %v2952 = vadd.f32 %v2661, %v2951
        %v2953 = vpop.f32.mrb[0].mxu0
        %2954 = vmatprep.mubr.f32.mxu0 0.0
        %2955 = vmatmul.mubr.f32.gmra.mrb[0].mxu0 %v2685
        %v2956 = vpop.f32.mrb[0].mxu0
        %v2957 = vadd.f32 %v2661, %v2956
        %v2958 = vpop.f32.mrb[0].mxu0
        %2959 = vmatprep.mubr.f32.mxu0 0.0
        %2960 = vmatmul.mubr.f32.gmra.mrb[0].mxu0 %v2688
        %v2961 = vpop.f32.mrb[0].mxu0
        %v2962 = vadd.f32 %v2661, %v2961
        %v2963 = vpop.f32.mrb[0].mxu0
        %2964 = vmatprep.mubr.f32.mxu0 0.0
        %2965 = vmatmul.mubr.f32.gmra.mrb[0].mxu0 %v2691
        %v2966 = vpop.f32.mrb[0].mxu0
        %v2967 = vadd.f32 %v2661, %v2966
        %v2968 = vpop.f32.mrb[0].mxu0
        %2969 = vmatprep.mubr.f32.mxu0 0.0
        %2970 = vmatmul.mubr.f32.gmra.mrb[0].mxu0 %v2694
        %v2971 = vpop.f32.mrb[0].mxu0
        %v2972 = vadd.f32 %v2661, %v2971
        %v2973 = vpop.f32.mrb[0].mxu0
        %2974 = vmatprep.mubr.f32.mxu0 0.0
        %2975 = vmatmul.mubr.f32.gmra.mrb[0].mxu0 %v2697
        %v2976 = vpop.f32.mrb[0].mxu0
        %v2977 = vadd.f32 %v2661, %v2976
        %v2978 = vpop.f32.mrb[0].mxu0
        %2979 = vmatprep.mubr.f32.mxu0 0.0
        %2980 = vmatmul.mubr.f32.gmra.mrb[0].mxu0 %v2700
        %v2981 = vpop.f32.mrb[0].mxu0
        %v2982 = vadd.f32 %v2661, %v2981
        %v2983 = vpop.f32.mrb[0].mxu0
        %2984 = vmatprep.mubr.f32.mxu0 0.0
        %2985 = vmatmul.mubr.f32.gmra.mrb[0].mxu0 %v2703
        %v2986 = vpop.f32.mrb[0].mxu0
        %v2987 = vadd.f32 %v2661, %v2986
        %v2988 = vpop.f32.mrb[0].mxu0
        %2989 = vmatprep.mubr.f32.mxu0 0.0
        %2990 = vmatmul.mubr.f32.gmra.mrb[0].mxu0 %v2706
        %v2991 = vpop.f32.mrb[0].mxu0
        %v2992 = vadd.f32 %v2661, %v2991
        %v2993 = vpop.f32.mrb[0].mxu0
        %2994 = vmatprep.mubr.f32.mxu0 0.0
        %2995 = vmatmul.mubr.f32.gmra.mrb[0].mxu0 %v2709
        %v2996 = vpop.f32.mrb[0].mxu0
        %v2997 = vadd.f32 %v2661, %v2996
        %v2998 = vpop.f32.mrb[0].mxu0
        %2999 = vmatprep.mubr.f32.mxu0 0.0
        %3000 = vmatmul.mubr.f32.gmra.mrb[0].mxu0 %v2712
        %v3001 = vpop.f32.mrb[0].mxu0
        %v3002 = vadd.f32 %v2661, %v3001
        %v3003 = vpop.f32.mrb[0].mxu0
        %3004 = vmatprep.mubr.f32.mxu0 0.0
        %3005 = vmatmul.mubr.f32.gmra.mrb[0].mxu0 %v2715
        %v3006 = vpop.f32.mrb[0].mxu0
        %v3007 = vadd.f32 %v2661, %v3006
        %v3008 = vpop.f32.mrb[0].mxu0
        %3009 = vmatprep.mubr.f32.mxu0 0.0
        %3010 = vmatmul.mubr.f32.gmra.mrb[0].mxu0 %v2718
        %v3011 = vpop.f32.mrb[0].mxu0
        %v3012 = vadd.f32 %v2661, %v3011
        %v3013 = vpop.f32.mrb[0].mxu0
        %3014 = vmatprep.mubr.f32.mxu0 0.0
        %3015 = vmatmul.mubr.f32.gmra.mrb[0].mxu0 %v2721
        %v3016 = vpop.f32.mrb[0].mxu0
        %v3017 = vadd.f32 %v2661, %v3016
        %v3018 = vpop.f32.mrb[0].mxu0
        %3019 = vmatprep.mubr.f32.mxu0 0.0
        %3020 = vmatmul.mubr.f32.gmra.mrb[0].mxu0 %v2724
        %v3021 = vpop.f32.mrb[0].mxu0
        %v3022 = vadd.f32 %v2661, %v3021
        %v3023 = vpop.f32.mrb[0].mxu0
        %3024 = vmatprep.mubr.f32.mxu0 0.0
        %3025 = vmatmul.mubr.f32.gmra.mrb[0].mxu0 %v2727
        %v3026 = vpop.f32.mrb[0].mxu0
        %v3027 = vadd.f32 %v2661, %v3026
        %v3028 = vpop.f32.mrb[0].mxu0
        %3029 = vmatprep.mubr.f32.mxu0 0.0
        %3030 = vmatmul.mubr.f32.gmra.mrb[0].mxu0 %v2730
        %v3031 = vpop.f32.mrb[0].mxu0
        %v3032 = vadd.f32 %v2661, %v3031
        %v3033 = vpop.f32.mrb[0].mxu0
        %3034 = vmatprep.mubr.f32.mxu0 0.0
        %3035 = vmatmul.mubr.f32.gmra.mrb[0].mxu0 %v2733
        %v3036 = vpop.f32.mrb[0].mxu0
        %v3037 = vadd.f32 %v2661, %v3036
        %v3038 = vpop.f32.mrb[0].mxu0
        %3039 = vmatprep.mubr.f32.mxu0 0.0
        %3040 = vmatmul.mubr.f32.gmra.mrb[0].mxu0 %v2736
        %v3041 = vpop.f32.mrb[0].mxu0
        %v3042 = vadd.f32 %v2661, %v3041
        %v3043 = vpop.f32.mrb[0].mxu0
        %3044 = vmatprep.mubr.f32.mxu0 0.0
        %3045 = vmatmul.mubr.f32.gmra.mrb[0].mxu0 %v2739
        %v3046 = vpop.f32.mrb[0].mxu0
        %v3047 = vadd.f32 %v2661, %v3046
        %v3048 = vpop.f32.mrb[0].mxu0
        %3049 = vmatprep.mubr.f32.mxu0 0.0
        %3050 = vmatmul.mubr.f32.gmra.mrb[0].mxu0 %v2742
        %v3051 = vpop.f32.mrb[0].mxu0
        %v3052 = vadd.f32 %v2661, %v3051
        %v3053 = vpop.f32.mrb[0].mxu0
        %3054 = vmatprep.mubr.f32.mxu0 0.0
        %3055 = vmatmul.mubr.f32.gmra.mrb[0].mxu0 %v2745
        %v3056 = vpop.f32.mrb[0].mxu0
        %v3057 = vadd.f32 %v2661, %v3056
        %v3058 = vpop.f32.mrb[0].mxu0
        %3059 = vmatprep.mubr.f32.mxu0 0.0
        %3060 = vmatmul.mubr.f32.gmra.mrb[0].mxu0 %v2748
        %v3061 = vpop.f32.mrb[0].mxu0
        %v3062 = vadd.f32 %v2661, %v3061
        %v3063 = vpop.f32.mrb[0].mxu0
        %3064 = vmatprep.mubr.f32.mxu0 0.0
        %3065 = vmatmul.mubr.f32.gmra.mrb[0].mxu0 %v2751
        %v3066 = vpop.f32.mrb[0].mxu0
        %v3067 = vadd.f32 %v2661, %v3066
        %v3068 = vpop.f32.mrb[0].mxu0
        %3069 = vmatprep.mubr.f32.mxu0 0.0
        %3070 = vmatmul.mubr.f32.gmra.mrb[0].mxu0 %v2754
        %v3071 = vpop.f32.mrb[0].mxu0
        %v3072 = vadd.f32 %v2661, %v3071
        %v3073 = vpop.f32.mrb[0].mxu0
        %3074 = vmatprep.mubr.f32.mxu0 0.0
        %3075 = vmatmul.mubr.f32.gmra.mrb[0].mxu0 %v2757
        %v3076 = vpop.f32.mrb[0].mxu0
        %v3077 = vadd.f32 %v2661, %v3076
        %v3078 = vpop.f32.mrb[0].mxu0
        %3079 = vmatprep.mubr.f32.mxu0 0.0
        %3080 = vmatmul.mubr.f32.gmra.mrb[0].mxu0 %v2760
        %v3081 = vpop.f32.mrb[0].mxu0
        %v3082 = vadd.f32 %v2661, %v3081
        %v3083 = vpop.f32.mrb[0].mxu0
        %3084 = vmatprep.mubr.f32.mxu0 0.0
        %3085 = vmatmul.mubr.f32.gmra.mrb[0].mxu0 %v2763
        %v3086 = vpop.f32.mrb[0].mxu0
        %v3087 = vadd.f32 %v2661, %v3086
        %v3088 = vpop.f32.mrb[0].mxu0
        %3089 = vmatprep.mubr.f32.mxu0 0.0
        %3090 = vmatmul.mubr.f32.gmra.mrb[0].mxu0 %v2766
        %v3091 = vpop.f32.mrb[0].mxu0
        %v3092 = vadd.f32 %v2661, %v3091
        %v3093 = vpop.f32.mrb[0].mxu0
        %3094 = vmatprep.mubr.f32.mxu0 0.0
        %3095 = vmatmul.mubr.f32.gmra.mrb[0].mxu0 %v2769
        %v3096 = vpop.f32.mrb[0].mxu0
        %v3097 = vadd.f32 %v2661, %v3096
        %v3098 = vpop.f32.mrb[0].mxu0
        %3099 = vmatprep.mubr.f32.mxu0 0.0
        %3100 = vmatmul.mubr.f32.gmra.mrb[0].mxu0 %v2772
        %v3101 = vpop.f32.mrb[0].mxu0
        %v3102 = vadd.f32 %v2661, %v3101
        %v3103 = vpop.f32.mrb[0].mxu0
        %3104 = vmatprep.mubr.f32.mxu0 0.0
        %3105 = vmatmul.mubr.f32.gmra.mrb[0].mxu0 %v2775
        %v3106 = vpop.f32.mrb[0].mxu0
        %v3107 = vadd.f32 %v2661, %v3106
        %v3108 = vpop.f32.mrb[0].mxu0
        %3109 = vmatprep.mubr.f32.mxu0 0.0
        %3110 = vmatmul.mubr.f32.gmra.mrb[0].mxu0 %v2778
        %v3111 = vpop.f32.mrb[0].mxu0
        %v3112 = vadd.f32 %v2661, %v3111
        %v3113 = vpop.f32.mrb[0].mxu0
        %3114 = vmatprep.mubr.f32.mxu0 0.0
        %3115 = vmatmul.mubr.f32.gmra.mrb[0].mxu0 %v2781
        %v3116 = vpop.f32.mrb[0].mxu0
        %v3117 = vadd.f32 %v2661, %v3116
        %v3118 = vpop.f32.mrb[0].mxu0
        %3119 = vmatprep.mubr.f32.mxu0 0.0
        %3120 = vmatmul.mubr.f32.gmra.mrb[0].mxu0 %v2784
        %v3121 = vpop.f32.mrb[0].mxu0
        %v3122 = vadd.f32 %v2661, %v3121
        %v3123 = vpop.f32.mrb[0].mxu0
        %3124 = vmatprep.mubr.f32.mxu0 0.0
        %3125 = vmatmul.mubr.f32.gmra.mrb[0].mxu0 %v2787
        %v3126 = vpop.f32.mrb[0].mxu0
        %v3127 = vadd.f32 %v2661, %v3126
        %v3128 = vpop.f32.mrb[0].mxu0
        %3129 = vmatprep.mubr.f32.mxu0 0.0
        %3130 = vmatmul.mubr.f32.gmra.mrb[0].mxu0 %v2790
        %v3131 = vpop.f32.mrb[0].mxu0
        %v3132 = vadd.f32 %v2661, %v3131
        %v3133 = vpop.f32.mrb[0].mxu0
        %3134 = vmatprep.mubr.f32.mxu0 0.0
        %3135 = vmatmul.mubr.f32.gmra.mrb[0].mxu0 %v2793
        %v3136 = vpop.f32.mrb[0].mxu0
        %v3137 = vadd.f32 %v2661, %v3136
        %v3138 = vpop.f32.mrb[0].mxu0
        %3139 = vmatprep.mubr.f32.mxu0 0.0
        %3140 = vmatmul.mubr.f32.gmra.mrb[0].mxu0 %v2796
        %v3141 = vpop.f32.mrb[0].mxu0
        %v3142 = vadd.f32 %v2661, %v3141
        %v3143 = vpop.f32.mrb[0].mxu0
        %3144 = vmatprep.mubr.f32.mxu0 0.0
        %3145 = vmatmul.mubr.f32.gmra.mrb[0].mxu0 %v2799
        %v3146 = vpop.f32.mrb[0].mxu0
        %v3147 = vadd.f32 %v2661, %v3146
        %v3148 = vpop.f32.mrb[0].mxu0
        %3149 = vmatprep.mubr.f32.mxu0 0.0
        %3150 = vmatmul.mubr.f32.gmra.mrb[0].mxu0 %v2802
        %v3151 = vpop.f32.mrb[0].mxu0
        %v3152 = vadd.f32 %v2661, %v3151
        %v3153 = vpop.f32.mrb[0].mxu0
        %3154 = vmatprep.mubr.f32.mxu0 0.0
        %3155 = vmatmul.mubr.f32.gmra.mrb[0].mxu0 %v2805
        %v3156 = vpop.f32.mrb[0].mxu0
        %v3157 = vadd.f32 %v2661, %v3156
        %v3158 = vpop.f32.mrb[0].mxu0
        %3159 = vmatprep.mubr.f32.mxu0 0.0
        %3160 = vmatmul.mubr.f32.gmra.mrb[0].mxu0 %v2808
        %v3161 = vpop.f32.mrb[0].mxu0
        %v3162 = vadd.f32 %v2661, %v3161
        %v3163 = vpop.f32.mrb[0].mxu0
        %3164 = vmatprep.mubr.f32.mxu0 0.0
        %3165 = vmatmul.mubr.f32.gmra.mrb[0].mxu0 %v2811
        %v3166 = vpop.f32.mrb[0].mxu0
        %v3167 = vadd.f32 %v2661, %v3166
        %v3168 = vpop.f32.mrb[0].mxu0
        %3169 = vmatprep.mubr.f32.mxu0 0.0
        %3170 = vmatmul.mubr.f32.gmra.mrb[0].mxu0 %v2814
        %v3171 = vpop.f32.mrb[0].mxu0
        %v3172 = vadd.f32 %v2661, %v3171
        %v3173 = vpop.f32.mrb[0].mxu0
        %3174 = vmatprep.mubr.f32.mxu0 0.0
        %3175 = vmatmul.mubr.f32.gmra.mrb[0].mxu0 %v2817
        %v3176 = vpop.f32.mrb[0].mxu0
        %v3177 = vadd.f32 %v2661, %v3176
        %v3178 = vpop.f32.mrb[0].mxu0
        %3179 = vmatprep.mubr.f32.mxu0 0.0
        %3180 = vmatmul.mubr.f32.gmra.mrb[0].mxu0 %v2820
        %v3181 = vpop.f32.mrb[0].mxu0
        %v3182 = vadd.f32 %v2661, %v3181
        %v3183 = vpop.f32.mrb[0].mxu0
        %3184 = vmatprep.mubr.f32.mxu0 0.0
        %3185 = vmatmul.mubr.f32.gmra.mrb[0].mxu0 %v2823
        %v3186 = vpop.f32.mrb[0].mxu0
        %v3187 = vadd.f32 %v2661, %v3186
        %v3188 = vpop.f32.mrb[0].mxu0
        %3189 = vmatprep.mubr.f32.mxu0 0.0
        %3190 = vmatmul.mubr.f32.gmra.mrb[0].mxu0 %v2826
        %v3191 = vpop.f32.mrb[0].mxu0
        %v3192 = vadd.f32 %v2661, %v3191
        %v3193 = vpop.f32.mrb[0].mxu0
        %3194 = vmatprep.mubr.f32.mxu0 0.0
        %3195 = vmatmul.mubr.f32.gmra.mrb[0].mxu0 %v2829
        %v3196 = vpop.f32.mrb[0].mxu0
        %v3197 = vadd.f32 %v2661, %v3196
        %v3198 = vpop.f32.mrb[0].mxu0
        %3199 = vmatprep.mubr.f32.mxu0 0.0
        %3200 = vmatmul.mubr.f32.gmra.mrb[0].mxu0 %v2832
        %v3201 = vpop.f32.mrb[0].mxu0
        %v3202 = vadd.f32 %v2661, %v3201
        %v3203 = vpop.f32.mrb[0].mxu0
        %3204 = vmatprep.mubr.f32.mxu0 0.0
        %3205 = vmatmul.mubr.f32.gmra.mrb[0].mxu0 %v2835
        %v3206 = vpop.f32.mrb[0].mxu0
        %v3207 = vadd.f32 %v2661, %v3206
        %v3208 = vpop.f32.mrb[0].mxu0
        %3209 = vmatprep.mubr.f32.mxu0 0.0
        %3210 = vmatmul.mubr.f32.gmra.mrb[0].mxu0 %v2838
        %v3211 = vpop.f32.mrb[0].mxu0
        %v3212 = vadd.f32 %v2661, %v3211
        %v3213 = vpop.f32.mrb[0].mxu0
        %3214 = vmatprep.mubr.f32.mxu0 0.0
        %3215 = vmatmul.mubr.f32.gmra.mrb[0].mxu0 %v2841
        %v3216 = vpop.f32.mrb[0].mxu0
        %v3217 = vadd.f32 %v2661, %v3216
        %v3218 = vpop.f32.mrb[0].mxu0
        %3219 = vmatprep.mubr.f32.mxu0 0.0
        %3220 = vmatmul.mubr.f32.gmra.mrb[0].mxu0 %v2844
        %v3221 = vpop.f32.mrb[0].mxu0
        %v3222 = vadd.f32 %v2661, %v3221
        %v3223 = vpop.f32.mrb[0].mxu0
        %3224 = vmatprep.mubr.f32.mxu0 0.0
        %3225 = vmatmul.mubr.f32.gmra.mrb[0].mxu0 %v2847
        %v3226 = vpop.f32.mrb[0].mxu0
        %v3227 = vadd.f32 %v2661, %v3226
        %v3228 = vpop.f32.mrb[0].mxu0
        %3229 = vmatprep.mubr.f32.mxu0 0.0
        %3230 = vmatmul.mubr.f32.gmra.mrb[0].mxu0 %v2850
        %v3231 = vpop.f32.mrb[0].mxu0
        %v3232 = vadd.f32 %v2661, %v3231
        %v3233 = vpop.f32.mrb[0].mxu0
        %3234 = vmatprep.mubr.f32.mxu0 0.0
        %3235 = vmatmul.mubr.f32.gmra.mrb[0].mxu0 %v2853
        %v3236 = vpop.f32.mrb[0].mxu0
        %v3237 = vadd.f32 %v2661, %v3236
        %v3238 = vpop.f32.mrb[0].mxu0
        %3239 = vdwg.mxu0
        %v3240 = vsub.f32 0.0, %v2922
        %v3241 = vsub.f32 0.0, %v2927
        %v3242 = vsub.f32 0.0, %v2932
        %v3243 = vsub.f32 0.0, %v2937
        %v3244 = vsub.f32 0.0, %v2942
        %v3245 = vsub.f32 0.0, %v2947
        %v3246 = vsub.f32 0.0, %v2952
        %v3247 = vsub.f32 0.0, %v2957
        %v3248 = vsub.f32 0.0, %v2962
        %v3249 = vsub.f32 0.0, %v2967
        %v3250 = vsub.f32 0.0, %v2972
        %v3251 = vsub.f32 0.0, %v2977
        %v3252 = vsub.f32 0.0, %v2982
        %v3253 = vsub.f32 0.0, %v2987
        %v3254 = vsub.f32 0.0, %v2992
        %v3255 = vsub.f32 0.0, %v2997
        %v3256 = vsub.f32 0.0, %v3002
        %v3257 = vsub.f32 0.0, %v3007
        %v3258 = vsub.f32 0.0, %v3012
        %v3259 = vsub.f32 0.0, %v3017
        %v3260 = vsub.f32 0.0, %v3022
        %v3261 = vsub.f32 0.0, %v3027
        %v3262 = vsub.f32 0.0, %v3032
        %v3263 = vsub.f32 0.0, %v3037
        %v3264 = vsub.f32 0.0, %v3042
        %v3265 = vsub.f32 0.0, %v3047
        %v3266 = vsub.f32 0.0, %v3052
        %v3267 = vsub.f32 0.0, %v3057
        %v3268 = vsub.f32 0.0, %v3062
        %v3269 = vsub.f32 0.0, %v3067
        %v3270 = vsub.f32 0.0, %v3072
        %v3271 = vsub.f32 0.0, %v3077
        %v3272 = vsub.f32 0.0, %v3082
        %v3273 = vsub.f32 0.0, %v3087
        %v3274 = vsub.f32 0.0, %v3092
        %v3275 = vsub.f32 0.0, %v3097
        %v3276 = vsub.f32 0.0, %v3102
        %v3277 = vsub.f32 0.0, %v3107
        %v3278 = vsub.f32 0.0, %v3112
        %v3279 = vsub.f32 0.0, %v3117
        %v3280 = vsub.f32 0.0, %v3122
        %v3281 = vsub.f32 0.0, %v3127
        %v3282 = vsub.f32 0.0, %v3132
        %v3283 = vsub.f32 0.0, %v3137
        %v3284 = vsub.f32 0.0, %v3142
        %v3285 = vsub.f32 0.0, %v3147
        %v3286 = vsub.f32 0.0, %v3152
        %v3287 = vsub.f32 0.0, %v3157
        %v3288 = vsub.f32 0.0, %v3162
        %v3289 = vsub.f32 0.0, %v3167
        %v3290 = vsub.f32 0.0, %v3172
        %v3291 = vsub.f32 0.0, %v3177
        %v3292 = vsub.f32 0.0, %v3182
        %v3293 = vsub.f32 0.0, %v3187
        %v3294 = vsub.f32 0.0, %v3192
        %v3295 = vsub.f32 0.0, %v3197
        %v3296 = vsub.f32 0.0, %v3202
        %v3297 = vsub.f32 0.0, %v3207
        %v3298 = vsub.f32 0.0, %v3212
        %v3299 = vsub.f32 0.0, %v3217
        %v3300 = vsub.f32 0.0, %v3222
        %v3301 = vsub.f32 0.0, %v3227
        %v3302 = vsub.f32 0.0, %v3232
        %v3303 = vsub.f32 0.0, %v3237
        %v3304 = vmul.f32 %v3240, 1.442695
        %v3305 = vpow.pop %v3304
        %v3306 = vmul.f32 %v3241, 1.442695
        %v3307 = vpow.pop %v3306
        %v3308 = vmul.f32 %v3242, 1.442695
        %v3309 = vpow.pop %v3308
        %v3310 = vmul.f32 %v3243, 1.442695
        %v3311 = vpow.pop %v3310
        %v3312 = vmul.f32 %v3244, 1.442695
        %v3313 = vpow.pop %v3312
        %v3314 = vmul.f32 %v3245, 1.442695
        %v3315 = vpow.pop %v3314
        %v3316 = vmul.f32 %v3246, 1.442695
        %v3317 = vpow.pop %v3316
        %v3318 = vmul.f32 %v3247, 1.442695
        %v3319 = vpow.pop %v3318
        %v3320 = vmul.f32 %v3248, 1.442695
        %v3321 = vpow.pop %v3320
        %v3322 = vmul.f32 %v3249, 1.442695
        %v3323 = vpow.pop %v3322
        %v3324 = vmul.f32 %v3250, 1.442695
        %v3325 = vpow.pop %v3324
        %v3326 = vmul.f32 %v3251, 1.442695
        %v3327 = vpow.pop %v3326
        %v3328 = vmul.f32 %v3252, 1.442695
        %v3329 = vpow.pop %v3328
        %v3330 = vmul.f32 %v3253, 1.442695
        %v3331 = vpow.pop %v3330
        %v3332 = vmul.f32 %v3254, 1.442695
        %v3333 = vpow.pop %v3332
        %v3334 = vmul.f32 %v3255, 1.442695
        %v3335 = vpow.pop %v3334
        %v3336 = vmul.f32 %v3256, 1.442695
        %v3337 = vpow.pop %v3336
        %v3338 = vmul.f32 %v3257, 1.442695
        %v3339 = vpow.pop %v3338
        %v3340 = vmul.f32 %v3258, 1.442695
        %v3341 = vpow.pop %v3340
        %v3342 = vmul.f32 %v3259, 1.442695
        %v3343 = vpow.pop %v3342
        %v3344 = vmul.f32 %v3260, 1.442695
        %v3345 = vpow.pop %v3344
        %v3346 = vmul.f32 %v3261, 1.442695
        %v3347 = vpow.pop %v3346
        %v3348 = vmul.f32 %v3262, 1.442695
        %v3349 = vpow.pop %v3348
        %v3350 = vmul.f32 %v3263, 1.442695
        %v3351 = vpow.pop %v3350
        %v3352 = vmul.f32 %v3264, 1.442695
        %v3353 = vpow.pop %v3352
        %v3354 = vmul.f32 %v3265, 1.442695
        %v3355 = vpow.pop %v3354
        %v3356 = vmul.f32 %v3266, 1.442695
        %v3357 = vpow.pop %v3356
        %v3358 = vmul.f32 %v3267, 1.442695
        %v3359 = vpow.pop %v3358
        %v3360 = vmul.f32 %v3268, 1.442695
        %v3361 = vpow.pop %v3360
        %v3362 = vmul.f32 %v3269, 1.442695
        %v3363 = vpow.pop %v3362
        %v3364 = vmul.f32 %v3270, 1.442695
        %v3365 = vpow.pop %v3364
        %v3366 = vmul.f32 %v3271, 1.442695
        %v3367 = vpow.pop %v3366
        %v3368 = vmul.f32 %v3272, 1.442695
        %v3369 = vpow.pop %v3368
        %v3370 = vmul.f32 %v3273, 1.442695
        %v3371 = vpow.pop %v3370
        %v3372 = vmul.f32 %v3274, 1.442695
        %v3373 = vpow.pop %v3372
        %v3374 = vmul.f32 %v3275, 1.442695
        %v3375 = vpow.pop %v3374
        %v3376 = vmul.f32 %v3276, 1.442695
        %v3377 = vpow.pop %v3376
        %v3378 = vmul.f32 %v3277, 1.442695
        %v3379 = vpow.pop %v3378
        %v3380 = vmul.f32 %v3278, 1.442695
        %v3381 = vpow.pop %v3380
        %v3382 = vmul.f32 %v3279, 1.442695
        %v3383 = vpow.pop %v3382
        %v3384 = vmul.f32 %v3280, 1.442695
        %v3385 = vpow.pop %v3384
        %v3386 = vmul.f32 %v3281, 1.442695
        %v3387 = vpow.pop %v3386
        %v3388 = vmul.f32 %v3282, 1.442695
        %v3389 = vpow.pop %v3388
        %v3390 = vmul.f32 %v3283, 1.442695
        %v3391 = vpow.pop %v3390
        %v3392 = vmul.f32 %v3284, 1.442695
        %v3393 = vpow.pop %v3392
        %v3394 = vmul.f32 %v3285, 1.442695
        %v3395 = vpow.pop %v3394
        %v3396 = vmul.f32 %v3286, 1.442695
        %v3397 = vpow.pop %v3396
        %v3398 = vmul.f32 %v3287, 1.442695
        %v3399 = vpow.pop %v3398
        %v3400 = vmul.f32 %v3288, 1.442695
        %v3401 = vpow.pop %v3400
        %v3402 = vmul.f32 %v3289, 1.442695
        %v3403 = vpow.pop %v3402
        %v3404 = vmul.f32 %v3290, 1.442695
        %v3405 = vpow.pop %v3404
        %v3406 = vmul.f32 %v3291, 1.442695
        %v3407 = vpow.pop %v3406
        %v3408 = vmul.f32 %v3292, 1.442695
        %v3409 = vpow.pop %v3408
        %v3410 = vmul.f32 %v3293, 1.442695
        %v3411 = vpow.pop %v3410
        %v3412 = vmul.f32 %v3294, 1.442695
        %v3413 = vpow.pop %v3412
        %v3414 = vmul.f32 %v3295, 1.442695
        %v3415 = vpow.pop %v3414
        %v3416 = vmul.f32 %v3296, 1.442695
        %v3417 = vpow.pop %v3416
        %v3418 = vmul.f32 %v3297, 1.442695
        %v3419 = vpow.pop %v3418
        %v3420 = vmul.f32 %v3298, 1.442695
        %v3421 = vpow.pop %v3420
        %v3422 = vmul.f32 %v3299, 1.442695
        %v3423 = vpow.pop %v3422
        %v3424 = vmul.f32 %v3300, 1.442695
        %v3425 = vpow.pop %v3424
        %v3426 = vmul.f32 %v3301, 1.442695
        %v3427 = vpow.pop %v3426
        %v3428 = vmul.f32 %v3302, 1.442695
        %v3429 = vpow.pop %v3428
        %v3430 = vmul.f32 %v3303, 1.442695
        %v3431 = vpow.pop %v3430
        %v3432 = vadd.f32 %v3305, 1.0
        %v3433 = vadd.f32 %v3307, 1.0
        %v3434 = vadd.f32 %v3309, 1.0
        %v3435 = vadd.f32 %v3311, 1.0
        %v3436 = vadd.f32 %v3313, 1.0
        %v3437 = vadd.f32 %v3315, 1.0
        %v3438 = vadd.f32 %v3317, 1.0
        %v3439 = vadd.f32 %v3319, 1.0
        %v3440 = vadd.f32 %v3321, 1.0
        %v3441 = vadd.f32 %v3323, 1.0
        %v3442 = vadd.f32 %v3325, 1.0
        %v3443 = vadd.f32 %v3327, 1.0
        %v3444 = vadd.f32 %v3329, 1.0
        %v3445 = vadd.f32 %v3331, 1.0
        %v3446 = vadd.f32 %v3333, 1.0
        %v3447 = vadd.f32 %v3335, 1.0
        %v3448 = vadd.f32 %v3337, 1.0
        %v3449 = vadd.f32 %v3339, 1.0
        %v3450 = vadd.f32 %v3341, 1.0
        %v3451 = vadd.f32 %v3343, 1.0
        %v3452 = vadd.f32 %v3345, 1.0
        %v3453 = vadd.f32 %v3347, 1.0
        %v3454 = vadd.f32 %v3349, 1.0
        %v3455 = vadd.f32 %v3351, 1.0
        %v3456 = vadd.f32 %v3353, 1.0
        %v3457 = vadd.f32 %v3355, 1.0
        %v3458 = vadd.f32 %v3357, 1.0
        %v3459 = vadd.f32 %v3359, 1.0
        %v3460 = vadd.f32 %v3361, 1.0
        %v3461 = vadd.f32 %v3363, 1.0
        %v3462 = vadd.f32 %v3365, 1.0
        %v3463 = vadd.f32 %v3367, 1.0
        %v3464 = vadd.f32 %v3369, 1.0
        %v3465 = vadd.f32 %v3371, 1.0
        %v3466 = vadd.f32 %v3373, 1.0
        %v3467 = vadd.f32 %v3375, 1.0
        %v3468 = vadd.f32 %v3377, 1.0
        %v3469 = vadd.f32 %v3379, 1.0
        %v3470 = vadd.f32 %v3381, 1.0
        %v3471 = vadd.f32 %v3383, 1.0
        %v3472 = vadd.f32 %v3385, 1.0
        %v3473 = vadd.f32 %v3387, 1.0
        %v3474 = vadd.f32 %v3389, 1.0
        %v3475 = vadd.f32 %v3391, 1.0
        %v3476 = vadd.f32 %v3393, 1.0
        %v3477 = vadd.f32 %v3395, 1.0
        %v3478 = vadd.f32 %v3397, 1.0
        %v3479 = vadd.f32 %v3399, 1.0
        %v3480 = vadd.f32 %v3401, 1.0
        %v3481 = vadd.f32 %v3403, 1.0
        %v3482 = vadd.f32 %v3405, 1.0
        %v3483 = vadd.f32 %v3407, 1.0
        %v3484 = vadd.f32 %v3409, 1.0
        %v3485 = vadd.f32 %v3411, 1.0
        %v3486 = vadd.f32 %v3413, 1.0
        %v3487 = vadd.f32 %v3415, 1.0
        %v3488 = vadd.f32 %v3417, 1.0
        %v3489 = vadd.f32 %v3419, 1.0
        %v3490 = vadd.f32 %v3421, 1.0
        %v3491 = vadd.f32 %v3423, 1.0
        %v3492 = vadd.f32 %v3425, 1.0
        %v3493 = vadd.f32 %v3427, 1.0
        %v3494 = vadd.f32 %v3429, 1.0
        %v3495 = vadd.f32 %v3431, 1.0
        %v3496 = vrcp.pop %v3432
        %v3497 = vmul.f32 1.0, %v3496
        %v3498 = vrcp.pop %v3433
        %v3499 = vmul.f32 1.0, %v3498
        %v3500 = vrcp.pop %v3434
        %v3501 = vmul.f32 1.0, %v3500
        %v3502 = vrcp.pop %v3435
        %v3503 = vmul.f32 1.0, %v3502
        %v3504 = vrcp.pop %v3436
        %v3505 = vmul.f32 1.0, %v3504
        %v3506 = vrcp.pop %v3437
        %v3507 = vmul.f32 1.0, %v3506
        %v3508 = vrcp.pop %v3438
        %v3509 = vmul.f32 1.0, %v3508
        %v3510 = vrcp.pop %v3439
        %v3511 = vmul.f32 1.0, %v3510
        %v3512 = vrcp.pop %v3440
        %v3513 = vmul.f32 1.0, %v3512
        %v3514 = vrcp.pop %v3441
        %v3515 = vmul.f32 1.0, %v3514
        %v3516 = vrcp.pop %v3442
        %v3517 = vmul.f32 1.0, %v3516
        %v3518 = vrcp.pop %v3443
        %v3519 = vmul.f32 1.0, %v3518
        %v3520 = vrcp.pop %v3444
        %v3521 = vmul.f32 1.0, %v3520
        %v3522 = vrcp.pop %v3445
        %v3523 = vmul.f32 1.0, %v3522
        %v3524 = vrcp.pop %v3446
        %v3525 = vmul.f32 1.0, %v3524
        %v3526 = vrcp.pop %v3447
        %v3527 = vmul.f32 1.0, %v3526
        %v3528 = vrcp.pop %v3448
        %v3529 = vmul.f32 1.0, %v3528
        %v3530 = vrcp.pop %v3449
        %v3531 = vmul.f32 1.0, %v3530
        %v3532 = vrcp.pop %v3450
        %v3533 = vmul.f32 1.0, %v3532
        %v3534 = vrcp.pop %v3451
        %v3535 = vmul.f32 1.0, %v3534
        %v3536 = vrcp.pop %v3452
        %v3537 = vmul.f32 1.0, %v3536
        %v3538 = vrcp.pop %v3453
        %v3539 = vmul.f32 1.0, %v3538
        %v3540 = vrcp.pop %v3454
        %v3541 = vmul.f32 1.0, %v3540
        %v3542 = vrcp.pop %v3455
        %v3543 = vmul.f32 1.0, %v3542
        %v3544 = vrcp.pop %v3456
        %v3545 = vmul.f32 1.0, %v3544
        %v3546 = vrcp.pop %v3457
        %v3547 = vmul.f32 1.0, %v3546
        %v3548 = vrcp.pop %v3458
        %v3549 = vmul.f32 1.0, %v3548
        %v3550 = vrcp.pop %v3459
        %v3551 = vmul.f32 1.0, %v3550
        %v3552 = vrcp.pop %v3460
        %v3553 = vmul.f32 1.0, %v3552
        %v3554 = vrcp.pop %v3461
        %v3555 = vmul.f32 1.0, %v3554
        %v3556 = vrcp.pop %v3462
        %v3557 = vmul.f32 1.0, %v3556
        %v3558 = vrcp.pop %v3463
        %v3559 = vmul.f32 1.0, %v3558
        %v3560 = vrcp.pop %v3464
        %v3561 = vmul.f32 1.0, %v3560
        %v3562 = vrcp.pop %v3465
        %v3563 = vmul.f32 1.0, %v3562
        %v3564 = vrcp.pop %v3466
        %v3565 = vmul.f32 1.0, %v3564
        %v3566 = vrcp.pop %v3467
        %v3567 = vmul.f32 1.0, %v3566
        %v3568 = vrcp.pop %v3468
        %v3569 = vmul.f32 1.0, %v3568
        %v3570 = vrcp.pop %v3469
        %v3571 = vmul.f32 1.0, %v3570
        %v3572 = vrcp.pop %v3470
        %v3573 = vmul.f32 1.0, %v3572
        %v3574 = vrcp.pop %v3471
        %v3575 = vmul.f32 1.0, %v3574
        %v3576 = vrcp.pop %v3472
        %v3577 = vmul.f32 1.0, %v3576
        %v3578 = vrcp.pop %v3473
        %v3579 = vmul.f32 1.0, %v3578
        %v3580 = vrcp.pop %v3474
        %v3581 = vmul.f32 1.0, %v3580
        %v3582 = vrcp.pop %v3475
        %v3583 = vmul.f32 1.0, %v3582
        %v3584 = vrcp.pop %v3476
        %v3585 = vmul.f32 1.0, %v3584
        %v3586 = vrcp.pop %v3477
        %v3587 = vmul.f32 1.0, %v3586
        %v3588 = vrcp.pop %v3478
        %v3589 = vmul.f32 1.0, %v3588
        %v3590 = vrcp.pop %v3479
        %v3591 = vmul.f32 1.0, %v3590
        %v3592 = vrcp.pop %v3480
        %v3593 = vmul.f32 1.0, %v3592
        %v3594 = vrcp.pop %v3481
        %v3595 = vmul.f32 1.0, %v3594
        %v3596 = vrcp.pop %v3482
        %v3597 = vmul.f32 1.0, %v3596
        %v3598 = vrcp.pop %v3483
        %v3599 = vmul.f32 1.0, %v3598
        %v3600 = vrcp.pop %v3484
        %v3601 = vmul.f32 1.0, %v3600
        %v3602 = vrcp.pop %v3485
        %v3603 = vmul.f32 1.0, %v3602
        %v3604 = vrcp.pop %v3486
        %v3605 = vmul.f32 1.0, %v3604
        %v3606 = vrcp.pop %v3487
        %v3607 = vmul.f32 1.0, %v3606
        %v3608 = vrcp.pop %v3488
        %v3609 = vmul.f32 1.0, %v3608
        %v3610 = vrcp.pop %v3489
        %v3611 = vmul.f32 1.0, %v3610
        %v3612 = vrcp.pop %v3490
        %v3613 = vmul.f32 1.0, %v3612
        %v3614 = vrcp.pop %v3491
        %v3615 = vmul.f32 1.0, %v3614
        %v3616 = vrcp.pop %v3492
        %v3617 = vmul.f32 1.0, %v3616
        %v3618 = vrcp.pop %v3493
        %v3619 = vmul.f32 1.0, %v3618
        %v3620 = vrcp.pop %v3494
        %v3621 = vmul.f32 1.0, %v3620
        %v3622 = vrcp.pop %v3495
        %v3623 = vmul.f32 1.0, %v3622
        %3624 = vst [vmem:[%s475] sm:$0xff] %v3497
        %3625 = vst [vmem:[%s475 + $0x8] sm:$0xff] %v3499
        %3626 = vst [vmem:[%s475 + $0x10] sm:$0xff] %v3501
        %3627 = vst [vmem:[%s475 + $0x18] sm:$0xff] %v3503
        %3628 = vst [vmem:[%s475 + $0x20] sm:$0xff] %v3505
        %3629 = vst [vmem:[%s475 + $0x28] sm:$0xff] %v3507
        %3630 = vst [vmem:[%s475 + $0x30] sm:$0xff] %v3509
        %3631 = vst [vmem:[%s475 + $0x38] sm:$0xff] %v3511
        %3632 = vst [vmem:[%s475 + $0x40] sm:$0xff] %v3513
        %3633 = vst [vmem:[%s475 + $0x48] sm:$0xff] %v3515
        %3634 = vst [vmem:[%s475 + $0x50] sm:$0xff] %v3517
        %3635 = vst [vmem:[%s475 + $0x58] sm:$0xff] %v3519
        %3636 = vst [vmem:[%s475 + $0x60] sm:$0xff] %v3521
        %3637 = vst [vmem:[%s475 + $0x68] sm:$0xff] %v3523
        %3638 = vst [vmem:[%s475 + $0x70] sm:$0xff] %v3525
        %3639 = vst [vmem:[%s475 + $0x78] sm:$0xff] %v3527
        %3640 = vst [vmem:[%s475 + $0x80] sm:$0xff] %v3529
        %3641 = vst [vmem:[%s475 + $0x88] sm:$0xff] %v3531
        %3642 = vst [vmem:[%s475 + $0x90] sm:$0xff] %v3533
        %3643 = vst [vmem:[%s475 + $0x98] sm:$0xff] %v3535
        %3644 = vst [vmem:[%s475 + $0xa0] sm:$0xff] %v3537
        %3645 = vst [vmem:[%s475 + $0xa8] sm:$0xff] %v3539
        %3646 = vst [vmem:[%s475 + $0xb0] sm:$0xff] %v3541
        %3647 = vst [vmem:[%s475 + $0xb8] sm:$0xff] %v3543
        %3648 = vst [vmem:[%s475 + $0xc0] sm:$0xff] %v3545
        %3649 = vst [vmem:[%s475 + $0xc8] sm:$0xff] %v3547
        %3650 = vst [vmem:[%s475 + $0xd0] sm:$0xff] %v3549
        %3651 = vst [vmem:[%s475 + $0xd8] sm:$0xff] %v3551
        %3652 = vst [vmem:[%s475 + $0xe0] sm:$0xff] %v3553
        %3653 = vst [vmem:[%s475 + $0xe8] sm:$0xff] %v3555
        %3654 = vst [vmem:[%s475 + $0xf0] sm:$0xff] %v3557
        %3655 = vst [vmem:[%s475 + $0xf8] sm:$0xff] %v3559
        %3656 = vst [vmem:[%s475 + $0x100] sm:$0xff] %v3561
        %3657 = vst [vmem:[%s475 + $0x108] sm:$0xff] %v3563
        %3658 = vst [vmem:[%s475 + $0x110] sm:$0xff] %v3565
        %3659 = vst [vmem:[%s475 + $0x118] sm:$0xff] %v3567
        %3660 = vst [vmem:[%s475 + $0x120] sm:$0xff] %v3569
        %3661 = vst [vmem:[%s475 + $0x128] sm:$0xff] %v3571
        %3662 = vst [vmem:[%s475 + $0x130] sm:$0xff] %v3573
        %3663 = vst [vmem:[%s475 + $0x138] sm:$0xff] %v3575
        %3664 = vst [vmem:[%s475 + $0x140] sm:$0xff] %v3577
        %3665 = vst [vmem:[%s475 + $0x148] sm:$0xff] %v3579
        %3666 = vst [vmem:[%s475 + $0x150] sm:$0xff] %v3581
        %3667 = vst [vmem:[%s475 + $0x158] sm:$0xff] %v3583
        %3668 = vst [vmem:[%s475 + $0x160] sm:$0xff] %v3585
        %3669 = vst [vmem:[%s475 + $0x168] sm:$0xff] %v3587
        %3670 = vst [vmem:[%s475 + $0x170] sm:$0xff] %v3589
        %3671 = vst [vmem:[%s475 + $0x178] sm:$0xff] %v3591
        %3672 = vst [vmem:[%s475 + $0x180] sm:$0xff] %v3593
        %3673 = vst [vmem:[%s475 + $0x188] sm:$0xff] %v3595
        %3674 = vst [vmem:[%s475 + $0x190] sm:$0xff] %v3597
        %3675 = vst [vmem:[%s475 + $0x198] sm:$0xff] %v3599
        %3676 = vst [vmem:[%s475 + $0x1a0] sm:$0xff] %v3601
        %3677 = vst [vmem:[%s475 + $0x1a8] sm:$0xff] %v3603
        %3678 = vst [vmem:[%s475 + $0x1b0] sm:$0xff] %v3605
        %3679 = vst [vmem:[%s475 + $0x1b8] sm:$0xff] %v3607
        %3680 = vst [vmem:[%s475 + $0x1c0] sm:$0xff] %v3609
        %3681 = vst [vmem:[%s475 + $0x1c8] sm:$0xff] %v3611
        %3682 = vst [vmem:[%s475 + $0x1d0] sm:$0xff] %v3613
        %3683 = vst [vmem:[%s475 + $0x1d8] sm:$0xff] %v3615
        %3684 = vst [vmem:[%s475 + $0x1e0] sm:$0xff] %v3617
        %3685 = vst [vmem:[%s475 + $0x1e8] sm:$0xff] %v3619
        %3686 = vst [vmem:[%s475 + $0x1f0] sm:$0xff] %v3621
        %3687 = vst [vmem:[%s475 + $0x1f8] sm:$0xff] %v3623
        %s3688 = sand.u32 %s336, 1
        %s3689 = scalar_lea.sflag [#allocation3], %s3688
        %s3690 = sand.u32 %s336, 1
        %s3691 = smul.addr %s3690, 512
        %s3692 = scalar_lea.vmem [#allocation5], %s3691
        // Predicated region
        $region81: #{tpu_custom_call.1} parent=75 // pred_check
          %p3693 = pneg %p346
        $region82: #{tpu_custom_call.1} parent=75 // pred_check_branch
          %3695 = sbr.rel (%p3693) target = $region84
        $region83: #{tpu_custom_call.1} parent=75 // pred_region
          %s3696 = smul.u32 64, %s29
          %s3698 = ssub.s32 8192, 8192
          %3699 = vsyncadd %s3689, %s3698
          %s3700 = smul.addr %s3696, 128
          %s3701 = scalar_lea.hbm %s14, %s3700
          %s3702 = sshll.u32 %s3692, 4
          %s3703 = int_to_ptr.vmem [resolvable:$true] %s3702
          %3708 = dma.vmem_to_hbm [thread:$0]  %s3703, 8192, %s3701, %s3689, 128, 128, 8
        $region84: #{tpu_custom_call.1} parent=75 // pred_fallthru
          _
      $region76: #{tpu_custom_call.1} parent=5 // pred_fallthru
        _
      %p3709 = scmp.le.s32.totalorder 2, %s24
      // Predicated region
      $region85: #{tpu_custom_call.1} parent=5 // pred_check
        %p3710 = pneg %p3709
      $region86: #{tpu_custom_call.1} parent=5 // pred_check_branch
        %3712 = sbr.rel (%p3710) target = $region88
      $region87: #{tpu_custom_call.1} parent=5 // pred_region
        %s3713 = ssub.s32 %s24, 2
        // Predicated region
        $region89: #{tpu_custom_call.1} parent=87 // pred_check
          %p3714 = pneg %p352
        $region90: #{tpu_custom_call.1} parent=87 // pred_check_branch
          %3716 = sbr.rel (%p3714) target = $region92
        $region91: #{tpu_custom_call.1} parent=87 // pred_region
          %s3717 = sand.u32 %s337, 1
          %s3718 = scalar_lea.sflag [#allocation3], %s3717
          %s3719 = sand.u32 %s337, 1
          %s3720 = smul.addr %s3719, 512
          %s3721 = scalar_lea.vmem [#allocation5], %s3720
          %3722 = dma.done %s3718, 8192
        $region92: #{tpu_custom_call.1} parent=87 // pred_fallthru
          _
      $region88: #{tpu_custom_call.1} parent=5 // pred_fallthru
        _
    $region6: #{tpu_custom_call.1} parent=1 // loop_footer
      %s28 = sadd.s32 1, %s24
    $region7: #{tpu_custom_call.1} parent=1 // loop_footer_branch
      %23 = sbr.rel target = $region3
    $region8: #{tpu_custom_call.1} parent=1 // loop_exit
      _
    %3723 = vsyncpa [#allocation3], 1
    %s3724 = scalar_lea.sflag [#allocation3], 1
    %3725 = vsyncpa %s3724, 1
    %3726 = vsyncpa [#allocation4], 1
    %s3727 = scalar_lea.sflag [#allocation4], 1
    %3728 = vsyncpa %s3727, 1

</llo_original>
